<compile_context>
chip_gen: v7x
topology: tpu7x:2x2x1
jax: 0.10.0
libtpu: 0.0.40
codegen_flags: <defaults>
</compile_context>

<pallas_src>
import numpy as np
import jax
import jax.numpy as jnp
from jax.experimental import pallas as pl
from jax.experimental.pallas import tpu as pltpu


def _make_fused_kernel(n_stages, pair_offsets, R, L, D, H, Hp, h_rows, pad_front):
    """Fused all-stages kernel for one sample (one grid step)."""
    hR = pad_front + R          # sublane-aligned start of interior rows in h_scr

    def kernel(*refs):
        x_ref = refs[0]                              # (1, S_al, W*Cin) f32
        wb_refs = refs[1:1 + 2 * n_stages]           # per stage: w (5,2K,Nl) bf16, b (1,Nl) f32
        o_ref = refs[1 + 2 * n_stages]               # (1, D*H, W*Cout)
        h_scr = refs[2 + 2 * n_stages] if n_stages > 1 else None

        lanes_out = o_ref.shape[2]

        def read_x(off):
            return x_ref[0, R + off:R + off + L, :]

        def read_h(off):
            return h_scr[hR + off:hR + off + L, :]

        def conv(read_rows, w_ref):
            # 4 K=256 + 1 K=128 lane-dense MXU matmuls (kw taps folded into the
            # banded weights, (kd,kh) taps paired along K); f32 accumulation.
            k = w_ref.shape[1] // 2
            acc = None
            for t, (oa, ob) in enumerate(pair_offsets):     # static unroll
                if ob is None:
                    lhs = read_rows(oa).astype(jnp.bfloat16)
                    p = jnp.dot(lhs, w_ref[t, :k, :],
                                preferred_element_type=jnp.float32)
                else:
                    lhs = jnp.concatenate(
                        [read_rows(oa), read_rows(ob)], axis=1
                    ).astype(jnp.bfloat16)
                    p = jnp.dot(lhs, w_ref[t],
                                preferred_element_type=jnp.float32)
                acc = p if acc is None else acc + p
            return acc

        if n_stages > 1:
            # Interior-row mask in the padded (D, Hp) row layout (compares only;
            # computed once, reused by every intermediate stage).
            row = jax.lax.broadcasted_iota(jnp.int32, (L, lanes_out), 0)
            interior = jnp.logical_and(row >= 0, row < H)        # d = 0
            for d in range(1, D):
                interior = jnp.logical_or(
                    interior,
                    jnp.logical_and(row >= d * Hp, row < d * Hp + H))
            # Halo rows outside the interior store range: aligned full-vreg zeros.
            h_scr[0:hR, :] = jnp.zeros((hR, lanes_out), jnp.float32)
            if h_rows > hR + L:
                h_scr[hR + L:h_rows, :] = jnp.zeros(
                    (h_rows - hR - L, lanes_out), jnp.float32)

        read_rows = read_x
        for s in range(n_stages):
            w_ref, b_ref = wb_refs[2 * s], wb_refs[2 * s + 1]
            acc = conv(read_rows, w_ref) + b_ref[...]            # bias bcast (f32)
            last = (s == n_stages - 1)
            if last:
                acc = acc + read_x(0)                            # fused residual add
            acc = jnp.maximum(acc, 0.0)                          # inter-stage / final ReLU
            if last:
                # Crop interior rows into the dense output slab (full-vreg stores:
                # H and lanes_out are 8/128-aligned for the supported shapes).
                for d in range(D):
                    o_ref[0, d * H:(d + 1) * H, :] = (
                        acc[d * Hp:d * Hp + H, :].astype(o_ref.dtype))
            else:
                # VPU select + one contiguous sublane-aligned store; halo rows
                # inside the range become exact zeros for the next stage's taps.
                h_scr[hR:hR + L, :] = jnp.where(interior, acc, 0.0)
                read_rows = read_h

    return kernel


def pack_params(params, W):
    """One-time host-side packing (off the hot path).

    params: list of (w (3,3,3,Cin_i,Cout), b (Cout,)) per stage, taps ordered
            (kd, kh, kw, ci, co).
    Returns per stage: (w_pairs (5, 2*W*Cin_i, W*Cout) bf16, b_tiled (1, W*Cout) f32).
    """
    Cout = np.asarray(params[0][0]).shape[-1]
    # band[kw, w_in, w_out] = 1 iff w_in == w_out + kw - 1 (out-of-range w_in ==
    # implicit zero padding along W).
    band = np.zeros((3, W, W), np.float32)
    for kw in range(3):
        for wo in range(W):
            wi = wo + kw - 1
            if 0 <= wi < W:
                band[kw, wi, wo] = 1.0

    packed = []
    for (w, b) in params:
        w = np.asarray(w, np.float32)
        cin = w.shape[3]
        # (9, W*Cin, W*Cout) block-banded weights: kw folded into the K dim.
        wb = np.einsum('kab,dhkio->dhaibo', band, w).reshape(9, W * cin, W * Cout)
        # Pair taps (0,1),(2,3),(4,5),(6,7) along K (K=256); tap 8 alone, zero-padded.
        pairs = [np.concatenate([wb[2 * p], wb[2 * p + 1]], axis=0) for p in range(4)]
        pairs.append(np.concatenate([wb[8], np.zeros_like(wb[8])], axis=0))
        w_pairs = jnp.asarray(np.stack(pairs, axis=0), jnp.bfloat16)
        b_tiled = jnp.asarray(
            np.tile(np.asarray(b, np.float32), W).reshape(1, W * Cout), jnp.float32)
        packed.append((w_pairs, b_tiled))
    return packed


def residual_conv_block(x, packed_params):
    """ResidualConvBlock.forward (normalization='none') via one fused Pallas call.

    x: (N, D, H, W, Cin) float32, channels-last (an NCDHW PyTorch input would be
       transposed at the boundary). packed_params: output of pack_params.
    """
    N, D, H, W, Cin = x.shape
    n_stages = len(packed_params)
    lanes_in = W * Cin
    lanes_out = packed_params[0][1].shape[-1]
    Cout = lanes_out // W
    # Fused residual add + shared inter-stage scratch require Cin == Cout and a
    # uniform Cout across stages (as in the PyTorch module with
    # n_filters_in == n_filters_out).
    assert Cin == Cout and Cout * W == lanes_out
    for (wp, bt) in packed_params:
        assert wp.shape[0] == 5 and wp.shape[2] == lanes_out
        assert bt.shape == (1, lanes_out)

    Dp, Hp = D + 2, H + 2              # D/H zero padding is physical rows;
    S = Dp * Hp                        # W padding is implicit in the banded weights
    R = Hp + 1                         # largest |row offset| of a (kd, kh) tap
    L = S - 2 * R                      # rows whose conv output we need
    L = ((L + 7) // 8) * 8             # sublane-align the compute slab
    S_al = ((2 * R + L + 7) // 8) * 8  # padded row count keeps all slices in-bounds
    pad_front = (-R) % 8               # shifts h_scr so its interior store is aligned
    h_rows = ((pad_front + 2 * R + L + 7) // 8) * 8

    # Pack x: pad D/H by one zero row each side, fold (W, C) into the lane axis.
    # TODO(synk): at production sizes handle the D/H halo in-kernel instead of
    # materializing padded copies in HBM.
    xp = jnp.pad(x, ((0, 0), (1, 1), (1, 1), (0, 0), (0, 0)))
    x_rows = xp.reshape(N, S, lanes_in)
    x_rows = jnp.pad(x_rows, ((0, 0), (0, S_al - S), (0, 0)))

    # Row offsets of the 9 (kd, kh) taps in the flattened (Dp, Hp) row index,
    # paired to match the K-stacked weights.
    offsets = tuple((kd - 1) * Hp + (kh - 1)
                    for kd in range(3) for kh in range(3))
    pair_offsets = tuple((offsets[2 * p], offsets[2 * p + 1]) for p in range(4))
    pair_offsets = pair_offsets + ((offsets[8], None),)

    args = [x_rows]
    in_specs = [pl.BlockSpec((1, S_al, lanes_in), lambda n: (n, 0, 0))]
    for (w_pairs, b_tiled) in packed_params:
        k2 = w_pairs.shape[1]
        args += [w_pairs, b_tiled]
        in_specs += [
            # Grid-invariant index_maps: fetched once by the pipeline.
            pl.BlockSpec((5, k2, lanes_out), lambda n: (0, 0, 0)),
            pl.BlockSpec((1, lanes_out), lambda n: (0, 0)),
        ]

    kernel = _make_fused_kernel(n_stages, pair_offsets, R, L, D, H, Hp,
                                h_rows, pad_front)

    scratch_shapes = []
    if n_stages > 1:
        scratch_shapes.append(pltpu.VMEM((h_rows, lanes_out), jnp.float32))

    out = pl.pallas_call(
        kernel,
        out_shape=jax.ShapeDtypeStruct((N, D * H, lanes_out), x.dtype),
        grid_spec=pltpu.PrefetchScalarGridSpec(
            num_scalar_prefetch=0,
            grid=(N,),
            in_specs=in_specs,
            out_specs=pl.BlockSpec((1, D * H, lanes_out), lambda n: (n, 0, 0)),
            scratch_shapes=scratch_shapes,
        ),
        compiler_params=pltpu.CompilerParams(
            dimension_semantics=("parallel",),
            vmem_limit_bytes=32 * 1024 * 1024,
        ),
    )(*args)

    return out.reshape(N, D, H, W, Cout)


def reference_block(x, params):
    """Pure-JAX f32 reference mirroring the PyTorch forward (channels-last)."""
    n_stages = len(params)
    h = x
    for i, (w, b) in enumerate(params):
        h = jax.lax.conv_general_dilated(
            h, w, window_strides=(1, 1, 1), padding='SAME',
            dimension_numbers=('NDHWC', 'DHWIO', 'NDHWC')) + b
        if i < n_stages - 1:
            h = jax.nn.relu(h)
    return jax.nn.relu(h + x)


if __name__ == "__main__":
    # ResidualConvBlock(n_stages=2, n_filters_in=16, n_filters_out=16, 'none')
    n_stages = 2
    N, D, H, W, C = 2, 8, 8, 8, 16

    key = jax.random.PRNGKey(0)
    keys = jax.random.split(key, 1 + 2 * n_stages)
    x = jax.random.normal(keys[0], (N, D, H, W, C), jnp.float32)

    params = []
    fan_in = 27 * C
    for i in range(n_stages):
        w = jax.random.normal(keys[1 + 2 * i], (3, 3, 3, C, C),
                              jnp.float32) * (2.0 / fan_in) ** 0.5
        b = jax.random.normal(keys[2 + 2 * i], (C,), jnp.float32) * 0.01
        params.append((w, b))

    packed = pack_params(params, W)          # one-time host-side packing
    y = residual_conv_block(x, packed)
    y = jax.block_until_ready(y)

    y_ref = reference_block(x, params)
    assert y.shape == x.shape and y.dtype == x.dtype
    # bf16 MXU operands with f32 accumulation/epilogue -> relaxed tolerance.
    np.testing.assert_allclose(np.asarray(y), np.asarray(y_ref),
                               rtol=5e-2, atol=5e-2)
    print("KERNEL_OK")
</pallas_src>

<mosaic_0001>
module attributes {stable_mosaic.version = 11 : i64} {
  func.func @kernel(%arg0: i32, %arg1: memref<1x104x128xf32, #tpu.memory_space<vmem>>, %arg2: memref<5x256x128xbf16, #tpu.memory_space<vmem>>, %arg3: memref<1x128xf32, #tpu.memory_space<vmem>>, %arg4: memref<5x256x128xbf16, #tpu.memory_space<vmem>>, %arg5: memref<1x128xf32, #tpu.memory_space<vmem>>, %arg6: memref<1x64x128xf32, #tpu.memory_space<vmem>>, %arg7: memref<112x128xf32, #tpu.memory_space<vmem>>) attributes {dimension_semantics = [#tpu.dimension_semantics<parallel>], iteration_bounds = array<i64: 2>, scalar_prefetch = 0 : i64, scratch_operands = 1 : i64, tpu.core_type = #tpu.core_type<tc>, window_params = [{transform_indices = @transform_0, window_bounds = array<i64: 1, 104, 128>}, {pipeline_mode = #tpu.pipeline_mode<synchronous>, transform_indices = @transform_1, window_bounds = array<i64: 5, 256, 128>}, {pipeline_mode = #tpu.pipeline_mode<synchronous>, transform_indices = @transform_2, window_bounds = array<i64: 1, 128>}, {pipeline_mode = #tpu.pipeline_mode<synchronous>, transform_indices = @transform_3, window_bounds = array<i64: 5, 256, 128>}, {pipeline_mode = #tpu.pipeline_mode<synchronous>, transform_indices = @transform_4, window_bounds = array<i64: 1, 128>}, {transform_indices = @transform_5, window_bounds = array<i64: 1, 64, 128>}]} {
    %0 = tpu.iota {dimensions = array<i32: 0>} : vector<80x128xi32>
    %c0_i32 = arith.constant 0 : i32
    %1 = vector.broadcast %c0_i32 : i32 to vector<80x128xi32>
    %2 = arith.cmpi sge, %0, %1 : vector<80x128xi32>
    %c8_i32 = arith.constant 8 : i32
    %3 = vector.broadcast %c8_i32 : i32 to vector<80x128xi32>
    %4 = arith.cmpi slt, %0, %3 : vector<80x128xi32>
    %5 = arith.andi %2, %4 : vector<80x128xi1>
    %c10_i32 = arith.constant 10 : i32
    %6 = vector.broadcast %c10_i32 : i32 to vector<80x128xi32>
    %7 = arith.cmpi sge, %0, %6 : vector<80x128xi32>
    %c18_i32 = arith.constant 18 : i32
    %8 = vector.broadcast %c18_i32 : i32 to vector<80x128xi32>
    %9 = arith.cmpi slt, %0, %8 : vector<80x128xi32>
    %10 = arith.andi %7, %9 : vector<80x128xi1>
    %11 = arith.ori %5, %10 : vector<80x128xi1>
    %c20_i32 = arith.constant 20 : i32
    %12 = vector.broadcast %c20_i32 : i32 to vector<80x128xi32>
    %13 = arith.cmpi sge, %0, %12 : vector<80x128xi32>
    %c28_i32 = arith.constant 28 : i32
    %14 = vector.broadcast %c28_i32 : i32 to vector<80x128xi32>
    %15 = arith.cmpi slt, %0, %14 : vector<80x128xi32>
    %16 = arith.andi %13, %15 : vector<80x128xi1>
    %17 = arith.ori %11, %16 : vector<80x128xi1>
    %c30_i32 = arith.constant 30 : i32
    %18 = vector.broadcast %c30_i32 : i32 to vector<80x128xi32>
    %19 = arith.cmpi sge, %0, %18 : vector<80x128xi32>
    %c38_i32 = arith.constant 38 : i32
    %20 = vector.broadcast %c38_i32 : i32 to vector<80x128xi32>
    %21 = arith.cmpi slt, %0, %20 : vector<80x128xi32>
    %22 = arith.andi %19, %21 : vector<80x128xi1>
    %23 = arith.ori %17, %22 : vector<80x128xi1>
    %c40_i32 = arith.constant 40 : i32
    %24 = vector.broadcast %c40_i32 : i32 to vector<80x128xi32>
    %25 = arith.cmpi sge, %0, %24 : vector<80x128xi32>
    %c48_i32 = arith.constant 48 : i32
    %26 = vector.broadcast %c48_i32 : i32 to vector<80x128xi32>
    %27 = arith.cmpi slt, %0, %26 : vector<80x128xi32>
    %28 = arith.andi %25, %27 : vector<80x128xi1>
    %29 = arith.ori %23, %28 : vector<80x128xi1>
    %c50_i32 = arith.constant 50 : i32
    %30 = vector.broadcast %c50_i32 : i32 to vector<80x128xi32>
    %31 = arith.cmpi sge, %0, %30 : vector<80x128xi32>
    %c58_i32 = arith.constant 58 : i32
    %32 = vector.broadcast %c58_i32 : i32 to vector<80x128xi32>
    %33 = arith.cmpi slt, %0, %32 : vector<80x128xi32>
    %34 = arith.andi %31, %33 : vector<80x128xi1>
    %35 = arith.ori %29, %34 : vector<80x128xi1>
    %c60_i32 = arith.constant 60 : i32
    %36 = vector.broadcast %c60_i32 : i32 to vector<80x128xi32>
    %37 = arith.cmpi sge, %0, %36 : vector<80x128xi32>
    %c68_i32 = arith.constant 68 : i32
    %38 = vector.broadcast %c68_i32 : i32 to vector<80x128xi32>
    %39 = arith.cmpi slt, %0, %38 : vector<80x128xi32>
    %40 = arith.andi %37, %39 : vector<80x128xi1>
    %41 = arith.ori %35, %40 : vector<80x128xi1>
    %c70_i32 = arith.constant 70 : i32
    %42 = vector.broadcast %c70_i32 : i32 to vector<80x128xi32>
    %43 = arith.cmpi sge, %0, %42 : vector<80x128xi32>
    %c78_i32 = arith.constant 78 : i32
    %44 = vector.broadcast %c78_i32 : i32 to vector<80x128xi32>
    %45 = arith.cmpi slt, %0, %44 : vector<80x128xi32>
    %46 = arith.andi %43, %45 : vector<80x128xi1>
    %47 = arith.ori %41, %46 : vector<80x128xi1>
    %cst = arith.constant 0.000000e+00 : f32
    %48 = vector.broadcast %cst : f32 to vector<16x128xf32>
    %c0 = arith.constant 0 : index
    %c0_0 = arith.constant 0 : index
    %49 = vector.load %arg7[%c0, %c0_0] : memref<112x128xf32, #tpu.memory_space<vmem>>, vector<16x128xf32>
    tpu.vector_store %arg7[%c0, %c0_0], %48 {strides = array<i32>} : memref<112x128xf32, #tpu.memory_space<vmem>>, vector<16x128xf32>,
    %cst_1 = arith.constant 0.000000e+00 : f32
    %50 = vector.broadcast %cst_1 : f32 to vector<16x128xf32>
    %c96 = arith.constant 96 : index
    %c0_2 = arith.constant 0 : index
    %51 = vector.load %arg7[%c96, %c0_2] : memref<112x128xf32, #tpu.memory_space<vmem>>, vector<16x128xf32>
    tpu.vector_store %arg7[%c96, %c0_2], %50 {strides = array<i32>} : memref<112x128xf32, #tpu.memory_space<vmem>>, vector<16x128xf32>,
    %c0_3 = arith.constant 0 : index
    %c0_4 = arith.constant 0 : index
    %c0_5 = arith.constant 0 : index
    %52 = vector.load %arg1[%c0_3, %c0_4, %c0_5] : memref<1x104x128xf32, #tpu.memory_space<vmem>>, vector<1x80x128xf32>
    %53 = vector.shape_cast %52 : vector<1x80x128xf32> to vector<80x128xf32>
    %c0_6 = arith.constant 0 : index
    %c1 = arith.constant 1 : index
    %c0_7 = arith.constant 0 : index
    %54 = vector.load %arg1[%c0_6, %c1, %c0_7] : memref<1x104x128xf32, #tpu.memory_space<vmem>>, vector<1x80x128xf32>
    %55 = vector.shape_cast %54 : vector<1x80x128xf32> to vector<80x128xf32>
    %56 = tpu.concatenate %53, %55 in 1 : vector<80x128xf32>, vector<80x128xf32> -> vector<80x256xf32>
    %57 = arith.truncf %56 : vector<80x256xf32> to vector<80x256xbf16>
    %c0_8 = arith.constant 0 : index
    %c0_9 = arith.constant 0 : index
    %c0_10 = arith.constant 0 : index
    %58 = vector.load %arg2[%c0_8, %c0_9, %c0_10] : memref<5x256x128xbf16, #tpu.memory_space<vmem>>, vector<1x256x128xbf16>
    %59 = vector.shape_cast %58 : vector<1x256x128xbf16> to vector<256x128xbf16>
    %cst_11 = arith.constant dense<0.000000e+00> : vector<80x128xf32>
    %60 = tpu.matmul %57, %59, %cst_11 {dimension_numbers = #tpu.dot_dimension_numbers<[1], [0], [0], [1], [0, 0, 1, 1], [], []>} : vector<80x256xbf16>, vector<256x128xbf16>, vector<80x128xf32> -> vector<80x128xf32>
    %c0_12 = arith.constant 0 : index
    %c2 = arith.constant 2 : index
    %c0_13 = arith.constant 0 : index
    %61 = vector.load %arg1[%c0_12, %c2, %c0_13] : memref<1x104x128xf32, #tpu.memory_space<vmem>>, vector<1x80x128xf32>
    %62 = vector.shape_cast %61 : vector<1x80x128xf32> to vector<80x128xf32>
    %c0_14 = arith.constant 0 : index
    %c10 = arith.constant 10 : index
    %c0_15 = arith.constant 0 : index
    %63 = vector.load %arg1[%c0_14, %c10, %c0_15] : memref<1x104x128xf32, #tpu.memory_space<vmem>>, vector<1x80x128xf32>
    %64 = vector.shape_cast %63 : vector<1x80x128xf32> to vector<80x128xf32>
    %65 = tpu.concatenate %62, %64 in 1 : vector<80x128xf32>, vector<80x128xf32> -> vector<80x256xf32>
    %66 = arith.truncf %65 : vector<80x256xf32> to vector<80x256xbf16>
    %c1_16 = arith.constant 1 : index
    %c0_17 = arith.constant 0 : index
    %c0_18 = arith.constant 0 : index
    %67 = vector.load %arg2[%c1_16, %c0_17, %c0_18] : memref<5x256x128xbf16, #tpu.memory_space<vmem>>, vector<1x256x128xbf16>
    %68 = vector.shape_cast %67 : vector<1x256x128xbf16> to vector<256x128xbf16>
    %cst_19 = arith.constant dense<0.000000e+00> : vector<80x128xf32>
    %69 = tpu.matmul %66, %68, %cst_19 {dimension_numbers = #tpu.dot_dimension_numbers<[1], [0], [0], [1], [0, 0, 1, 1], [], []>} : vector<80x256xbf16>, vector<256x128xbf16>, vector<80x128xf32> -> vector<80x128xf32>
    %70 = arith.addf %60, %69 : vector<80x128xf32>
    %c0_20 = arith.constant 0 : index
    %c11 = arith.constant 11 : index
    %c0_21 = arith.constant 0 : index
    %71 = vector.load %arg1[%c0_20, %c11, %c0_21] : memref<1x104x128xf32, #tpu.memory_space<vmem>>, vector<1x80x128xf32>
    %72 = vector.shape_cast %71 : vector<1x80x128xf32> to vector<80x128xf32>
    %c0_22 = arith.constant 0 : index
    %c12 = arith.constant 12 : index
    %c0_23 = arith.constant 0 : index
    %73 = vector.load %arg1[%c0_22, %c12, %c0_23] : memref<1x104x128xf32, #tpu.memory_space<vmem>>, vector<1x80x128xf32>
    %74 = vector.shape_cast %73 : vector<1x80x128xf32> to vector<80x128xf32>
    %75 = tpu.concatenate %72, %74 in 1 : vector<80x128xf32>, vector<80x128xf32> -> vector<80x256xf32>
    %76 = arith.truncf %75 : vector<80x256xf32> to vector<80x256xbf16>
    %c2_24 = arith.constant 2 : index
    %c0_25 = arith.constant 0 : index
    %c0_26 = arith.constant 0 : index
    %77 = vector.load %arg2[%c2_24, %c0_25, %c0_26] : memref<5x256x128xbf16, #tpu.memory_space<vmem>>, vector<1x256x128xbf16>
    %78 = vector.shape_cast %77 : vector<1x256x128xbf16> to vector<256x128xbf16>
    %cst_27 = arith.constant dense<0.000000e+00> : vector<80x128xf32>
    %79 = tpu.matmul %76, %78, %cst_27 {dimension_numbers = #tpu.dot_dimension_numbers<[1], [0], [0], [1], [0, 0, 1, 1], [], []>} : vector<80x256xbf16>, vector<256x128xbf16>, vector<80x128xf32> -> vector<80x128xf32>
    %80 = arith.addf %70, %79 : vector<80x128xf32>
    %c0_28 = arith.constant 0 : index
    %c20 = arith.constant 20 : index
    %c0_29 = arith.constant 0 : index
    %81 = vector.load %arg1[%c0_28, %c20, %c0_29] : memref<1x104x128xf32, #tpu.memory_space<vmem>>, vector<1x80x128xf32>
    %82 = vector.shape_cast %81 : vector<1x80x128xf32> to vector<80x128xf32>
    %c0_30 = arith.constant 0 : index
    %c21 = arith.constant 21 : index
    %c0_31 = arith.constant 0 : index
    %83 = vector.load %arg1[%c0_30, %c21, %c0_31] : memref<1x104x128xf32, #tpu.memory_space<vmem>>, vector<1x80x128xf32>
    %84 = vector.shape_cast %83 : vector<1x80x128xf32> to vector<80x128xf32>
    %85 = tpu.concatenate %82, %84 in 1 : vector<80x128xf32>, vector<80x128xf32> -> vector<80x256xf32>
    %86 = arith.truncf %85 : vector<80x256xf32> to vector<80x256xbf16>
    %c3 = arith.constant 3 : index
    %c0_32 = arith.constant 0 : index
    %c0_33 = arith.constant 0 : index
    %87 = vector.load %arg2[%c3, %c0_32, %c0_33] : memref<5x256x128xbf16, #tpu.memory_space<vmem>>, vector<1x256x128xbf16>
    %88 = vector.shape_cast %87 : vector<1x256x128xbf16> to vector<256x128xbf16>
    %cst_34 = arith.constant dense<0.000000e+00> : vector<80x128xf32>
    %89 = tpu.matmul %86, %88, %cst_34 {dimension_numbers = #tpu.dot_dimension_numbers<[1], [0], [0], [1], [0, 0, 1, 1], [], []>} : vector<80x256xbf16>, vector<256x128xbf16>, vector<80x128xf32> -> vector<80x128xf32>
    %90 = arith.addf %80, %89 : vector<80x128xf32>
    %c0_35 = arith.constant 0 : index
    %c22 = arith.constant 22 : index
    %c0_36 = arith.constant 0 : index
    %91 = vector.load %arg1[%c0_35, %c22, %c0_36] : memref<1x104x128xf32, #tpu.memory_space<vmem>>, vector<1x80x128xf32>
    %92 = vector.shape_cast %91 : vector<1x80x128xf32> to vector<80x128xf32>
    %93 = arith.truncf %92 : vector<80x128xf32> to vector<80x128xbf16>
    %c4 = arith.constant 4 : index
    %c0_37 = arith.constant 0 : index
    %c0_38 = arith.constant 0 : index
    %94 = vector.load %arg2[%c4, %c0_37, %c0_38] : memref<5x256x128xbf16, #tpu.memory_space<vmem>>, vector<1x128x128xbf16>
    %95 = vector.shape_cast %94 : vector<1x128x128xbf16> to vector<128x128xbf16>
    %cst_39 = arith.constant dense<0.000000e+00> : vector<80x128xf32>
    %96 = tpu.matmul %93, %95, %cst_39 {dimension_numbers = #tpu.dot_dimension_numbers<[1], [0], [0], [1], [0, 0, 1, 1], [], []>} : vector<80x128xbf16>, vector<128x128xbf16>, vector<80x128xf32> -> vector<80x128xf32>
    %97 = arith.addf %90, %96 : vector<80x128xf32>
    %c0_40 = arith.constant 0 : index
    %c0_41 = arith.constant 0 : index
    %98 = vector.load %arg3[%c0_40, %c0_41] : memref<1x128xf32, #tpu.memory_space<vmem>>, vector<1x128xf32>
    %99 = vector.broadcast %98 : vector<1x128xf32> to vector<80x128xf32>
    %100 = arith.addf %97, %99 : vector<80x128xf32>
    %cst_42 = arith.constant 0.000000e+00 : f32
    %101 = vector.broadcast %cst_42 : f32 to vector<80x128xf32>
    %102 = arith.maximumf %100, %101 : vector<80x128xf32>
    %cst_43 = arith.constant 0.000000e+00 : f32
    %103 = vector.broadcast %cst_43 : f32 to vector<80x128xf32>
    %104 = arith.select %47, %102, %103 : vector<80x128xi1>, vector<80x128xf32>
    %c16 = arith.constant 16 : index
    %c0_44 = arith.constant 0 : index
    %105 = vector.load %arg7[%c16, %c0_44] : memref<112x128xf32, #tpu.memory_space<vmem>>, vector<80x128xf32>
    tpu.vector_store %arg7[%c16, %c0_44], %104 {strides = array<i32>} : memref<112x128xf32, #tpu.memory_space<vmem>>, vector<80x128xf32>,
    %c5 = arith.constant 5 : index
    %c0_45 = arith.constant 0 : index
    %106 = vector.load %arg7[%c5, %c0_45] : memref<112x128xf32, #tpu.memory_space<vmem>>, vector<80x128xf32>
    %c6 = arith.constant 6 : index
    %c0_46 = arith.constant 0 : index
    %107 = vector.load %arg7[%c6, %c0_46] : memref<112x128xf32, #tpu.memory_space<vmem>>, vector<80x128xf32>
    %108 = tpu.concatenate %106, %107 in 1 : vector<80x128xf32>, vector<80x128xf32> -> vector<80x256xf32>
    %109 = arith.truncf %108 : vector<80x256xf32> to vector<80x256xbf16>
    %c0_47 = arith.constant 0 : index
    %c0_48 = arith.constant 0 : index
    %c0_49 = arith.constant 0 : index
    %110 = vector.load %arg4[%c0_47, %c0_48, %c0_49] : memref<5x256x128xbf16, #tpu.memory_space<vmem>>, vector<1x256x128xbf16>
    %111 = vector.shape_cast %110 : vector<1x256x128xbf16> to vector<256x128xbf16>
    %cst_50 = arith.constant dense<0.000000e+00> : vector<80x128xf32>
    %112 = tpu.matmul %109, %111, %cst_50 {dimension_numbers = #tpu.dot_dimension_numbers<[1], [0], [0], [1], [0, 0, 1, 1], [], []>} : vector<80x256xbf16>, vector<256x128xbf16>, vector<80x128xf32> -> vector<80x128xf32>
    %c7 = arith.constant 7 : index
    %c0_51 = arith.constant 0 : index
    %113 = vector.load %arg7[%c7, %c0_51] : memref<112x128xf32, #tpu.memory_space<vmem>>, vector<80x128xf32>
    %c15 = arith.constant 15 : index
    %c0_52 = arith.constant 0 : index
    %114 = vector.load %arg7[%c15, %c0_52] : memref<112x128xf32, #tpu.memory_space<vmem>>, vector<80x128xf32>
    %115 = tpu.concatenate %113, %114 in 1 : vector<80x128xf32>, vector<80x128xf32> -> vector<80x256xf32>
    %116 = arith.truncf %115 : vector<80x256xf32> to vector<80x256xbf16>
    %c1_53 = arith.constant 1 : index
    %c0_54 = arith.constant 0 : index
    %c0_55 = arith.constant 0 : index
    %117 = vector.load %arg4[%c1_53, %c0_54, %c0_55] : memref<5x256x128xbf16, #tpu.memory_space<vmem>>, vector<1x256x128xbf16>
    %118 = vector.shape_cast %117 : vector<1x256x128xbf16> to vector<256x128xbf16>
    %cst_56 = arith.constant dense<0.000000e+00> : vector<80x128xf32>
    %119 = tpu.matmul %116, %118, %cst_56 {dimension_numbers = #tpu.dot_dimension_numbers<[1], [0], [0], [1], [0, 0, 1, 1], [], []>} : vector<80x256xbf16>, vector<256x128xbf16>, vector<80x128xf32> -> vector<80x128xf32>
    %120 = arith.addf %112, %119 : vector<80x128xf32>
    %c16_57 = arith.constant 16 : index
    %c0_58 = arith.constant 0 : index
    %121 = vector.load %arg7[%c16_57, %c0_58] : memref<112x128xf32, #tpu.memory_space<vmem>>, vector<80x128xf32>
    %c17 = arith.constant 17 : index
    %c0_59 = arith.constant 0 : index
    %122 = vector.load %arg7[%c17, %c0_59] : memref<112x128xf32, #tpu.memory_space<vmem>>, vector<80x128xf32>
    %123 = tpu.concatenate %121, %122 in 1 : vector<80x128xf32>, vector<80x128xf32> -> vector<80x256xf32>
    %124 = arith.truncf %123 : vector<80x256xf32> to vector<80x256xbf16>
    %c2_60 = arith.constant 2 : index
    %c0_61 = arith.constant 0 : index
    %c0_62 = arith.constant 0 : index
    %125 = vector.load %arg4[%c2_60, %c0_61, %c0_62] : memref<5x256x128xbf16, #tpu.memory_space<vmem>>, vector<1x256x128xbf16>
    %126 = vector.shape_cast %125 : vector<1x256x128xbf16> to vector<256x128xbf16>
    %cst_63 = arith.constant dense<0.000000e+00> : vector<80x128xf32>
    %127 = tpu.matmul %124, %126, %cst_63 {dimension_numbers = #tpu.dot_dimension_numbers<[1], [0], [0], [1], [0, 0, 1, 1], [], []>} : vector<80x256xbf16>, vector<256x128xbf16>, vector<80x128xf32> -> vector<80x128xf32>
    %128 = arith.addf %120, %127 : vector<80x128xf32>
    %c25 = arith.constant 25 : index
    %c0_64 = arith.constant 0 : index
    %129 = vector.load %arg7[%c25, %c0_64] : memref<112x128xf32, #tpu.memory_space<vmem>>, vector<80x128xf32>
    %c26 = arith.constant 26 : index
    %c0_65 = arith.constant 0 : index
    %130 = vector.load %arg7[%c26, %c0_65] : memref<112x128xf32, #tpu.memory_space<vmem>>, vector<80x128xf32>
    %131 = tpu.concatenate %129, %130 in 1 : vector<80x128xf32>, vector<80x128xf32> -> vector<80x256xf32>
    %132 = arith.truncf %131 : vector<80x256xf32> to vector<80x256xbf16>
    %c3_66 = arith.constant 3 : index
    %c0_67 = arith.constant 0 : index
    %c0_68 = arith.constant 0 : index
    %133 = vector.load %arg4[%c3_66, %c0_67, %c0_68] : memref<5x256x128xbf16, #tpu.memory_space<vmem>>, vector<1x256x128xbf16>
    %134 = vector.shape_cast %133 : vector<1x256x128xbf16> to vector<256x128xbf16>
    %cst_69 = arith.constant dense<0.000000e+00> : vector<80x128xf32>
    %135 = tpu.matmul %132, %134, %cst_69 {dimension_numbers = #tpu.dot_dimension_numbers<[1], [0], [0], [1], [0, 0, 1, 1], [], []>} : vector<80x256xbf16>, vector<256x128xbf16>, vector<80x128xf32> -> vector<80x128xf32>
    %136 = arith.addf %128, %135 : vector<80x128xf32>
    %c27 = arith.constant 27 : index
    %c0_70 = arith.constant 0 : index
    %137 = vector.load %arg7[%c27, %c0_70] : memref<112x128xf32, #tpu.memory_space<vmem>>, vector<80x128xf32>
    %138 = arith.truncf %137 : vector<80x128xf32> to vector<80x128xbf16>
    %c4_71 = arith.constant 4 : index
    %c0_72 = arith.constant 0 : index
    %c0_73 = arith.constant 0 : index
    %139 = vector.load %arg4[%c4_71, %c0_72, %c0_73] : memref<5x256x128xbf16, #tpu.memory_space<vmem>>, vector<1x128x128xbf16>
    %140 = vector.shape_cast %139 : vector<1x128x128xbf16> to vector<128x128xbf16>
    %cst_74 = arith.constant dense<0.000000e+00> : vector<80x128xf32>
    %141 = tpu.matmul %138, %140, %cst_74 {dimension_numbers = #tpu.dot_dimension_numbers<[1], [0], [0], [1], [0, 0, 1, 1], [], []>} : vector<80x128xbf16>, vector<128x128xbf16>, vector<80x128xf32> -> vector<80x128xf32>
    %142 = arith.addf %136, %141 : vector<80x128xf32>
    %c0_75 = arith.constant 0 : index
    %c0_76 = arith.constant 0 : index
    %143 = vector.load %arg5[%c0_75, %c0_76] : memref<1x128xf32, #tpu.memory_space<vmem>>, vector<1x128xf32>
    %144 = vector.broadcast %143 : vector<1x128xf32> to vector<80x128xf32>
    %145 = arith.addf %142, %144 : vector<80x128xf32>
    %c0_77 = arith.constant 0 : index
    %c11_78 = arith.constant 11 : index
    %c0_79 = arith.constant 0 : index
    %146 = vector.load %arg1[%c0_77, %c11_78, %c0_79] : memref<1x104x128xf32, #tpu.memory_space<vmem>>, vector<1x80x128xf32>
    %147 = vector.shape_cast %146 : vector<1x80x128xf32> to vector<80x128xf32>
    %148 = arith.addf %145, %147 : vector<80x128xf32>
    %cst_80 = arith.constant 0.000000e+00 : f32
    %149 = vector.broadcast %cst_80 : f32 to vector<80x128xf32>
    %150 = arith.maximumf %148, %149 : vector<80x128xf32>
    %151 = vector.extract_strided_slice %150 {offsets = [0, 0], sizes = [8, 128], strides = [1, 1]} : vector<80x128xf32> to vector<8x128xf32>
    %c0_81 = arith.constant 0 : index
    %c0_82 = arith.constant 0 : index
    %c0_83 = arith.constant 0 : index
    %152 = vector.load %arg6[%c0_81, %c0_82, %c0_83] : memref<1x64x128xf32, #tpu.memory_space<vmem>>, vector<1x8x128xf32>
    %153 = vector.shape_cast %152 : vector<1x8x128xf32> to vector<8x128xf32>
    %154 = vector.shape_cast %151 : vector<8x128xf32> to vector<1x8x128xf32>
    tpu.vector_store %arg6[%c0_81, %c0_82, %c0_83], %154 {strides = array<i32>} : memref<1x64x128xf32, #tpu.memory_space<vmem>>, vector<1x8x128xf32>,
    %155 = vector.extract_strided_slice %150 {offsets = [10, 0], sizes = [8, 128], strides = [1, 1]} : vector<80x128xf32> to vector<8x128xf32>
    %c0_84 = arith.constant 0 : index
    %c8 = arith.constant 8 : index
    %c0_85 = arith.constant 0 : index
    %156 = vector.load %arg6[%c0_84, %c8, %c0_85] : memref<1x64x128xf32, #tpu.memory_space<vmem>>, vector<1x8x128xf32>
    %157 = vector.shape_cast %156 : vector<1x8x128xf32> to vector<8x128xf32>
    %158 = vector.shape_cast %155 : vector<8x128xf32> to vector<1x8x128xf32>
    tpu.vector_store %arg6[%c0_84, %c8, %c0_85], %158 {strides = array<i32>} : memref<1x64x128xf32, #tpu.memory_space<vmem>>, vector<1x8x128xf32>,
    %159 = vector.extract_strided_slice %150 {offsets = [20, 0], sizes = [8, 128], strides = [1, 1]} : vector<80x128xf32> to vector<8x128xf32>
    %c0_86 = arith.constant 0 : index
    %c16_87 = arith.constant 16 : index
    %c0_88 = arith.constant 0 : index
    %160 = vector.load %arg6[%c0_86, %c16_87, %c0_88] : memref<1x64x128xf32, #tpu.memory_space<vmem>>, vector<1x8x128xf32>
    %161 = vector.shape_cast %160 : vector<1x8x128xf32> to vector<8x128xf32>
    %162 = vector.shape_cast %159 : vector<8x128xf32> to vector<1x8x128xf32>
    tpu.vector_store %arg6[%c0_86, %c16_87, %c0_88], %162 {strides = array<i32>} : memref<1x64x128xf32, #tpu.memory_space<vmem>>, vector<1x8x128xf32>,
    %163 = vector.extract_strided_slice %150 {offsets = [30, 0], sizes = [8, 128], strides = [1, 1]} : vector<80x128xf32> to vector<8x128xf32>
    %c0_89 = arith.constant 0 : index
    %c24 = arith.constant 24 : index
    %c0_90 = arith.constant 0 : index
    %164 = vector.load %arg6[%c0_89, %c24, %c0_90] : memref<1x64x128xf32, #tpu.memory_space<vmem>>, vector<1x8x128xf32>
    %165 = vector.shape_cast %164 : vector<1x8x128xf32> to vector<8x128xf32>
    %166 = vector.shape_cast %163 : vector<8x128xf32> to vector<1x8x128xf32>
    tpu.vector_store %arg6[%c0_89, %c24, %c0_90], %166 {strides = array<i32>} : memref<1x64x128xf32, #tpu.memory_space<vmem>>, vector<1x8x128xf32>,
    %167 = vector.extract_strided_slice %150 {offsets = [40, 0], sizes = [8, 128], strides = [1, 1]} : vector<80x128xf32> to vector<8x128xf32>
    %c0_91 = arith.constant 0 : index
    %c32 = arith.constant 32 : index
    %c0_92 = arith.constant 0 : index
    %168 = vector.load %arg6[%c0_91, %c32, %c0_92] : memref<1x64x128xf32, #tpu.memory_space<vmem>>, vector<1x8x128xf32>
    %169 = vector.shape_cast %168 : vector<1x8x128xf32> to vector<8x128xf32>
    %170 = vector.shape_cast %167 : vector<8x128xf32> to vector<1x8x128xf32>
    tpu.vector_store %arg6[%c0_91, %c32, %c0_92], %170 {strides = array<i32>} : memref<1x64x128xf32, #tpu.memory_space<vmem>>, vector<1x8x128xf32>,
    %171 = vector.extract_strided_slice %150 {offsets = [50, 0], sizes = [8, 128], strides = [1, 1]} : vector<80x128xf32> to vector<8x128xf32>
    %c0_93 = arith.constant 0 : index
    %c40 = arith.constant 40 : index
    %c0_94 = arith.constant 0 : index
    %172 = vector.load %arg6[%c0_93, %c40, %c0_94] : memref<1x64x128xf32, #tpu.memory_space<vmem>>, vector<1x8x128xf32>
    %173 = vector.shape_cast %172 : vector<1x8x128xf32> to vector<8x128xf32>
    %174 = vector.shape_cast %171 : vector<8x128xf32> to vector<1x8x128xf32>
    tpu.vector_store %arg6[%c0_93, %c40, %c0_94], %174 {strides = array<i32>} : memref<1x64x128xf32, #tpu.memory_space<vmem>>, vector<1x8x128xf32>,
    %175 = vector.extract_strided_slice %150 {offsets = [60, 0], sizes = [8, 128], strides = [1, 1]} : vector<80x128xf32> to vector<8x128xf32>
    %c0_95 = arith.constant 0 : index
    %c48 = arith.constant 48 : index
    %c0_96 = arith.constant 0 : index
    %176 = vector.load %arg6[%c0_95, %c48, %c0_96] : memref<1x64x128xf32, #tpu.memory_space<vmem>>, vector<1x8x128xf32>
    %177 = vector.shape_cast %176 : vector<1x8x128xf32> to vector<8x128xf32>
    %178 = vector.shape_cast %175 : vector<8x128xf32> to vector<1x8x128xf32>
    tpu.vector_store %arg6[%c0_95, %c48, %c0_96], %178 {strides = array<i32>} : memref<1x64x128xf32, #tpu.memory_space<vmem>>, vector<1x8x128xf32>,
    %179 = vector.extract_strided_slice %150 {offsets = [70, 0], sizes = [8, 128], strides = [1, 1]} : vector<80x128xf32> to vector<8x128xf32>
    %c0_97 = arith.constant 0 : index
    %c56 = arith.constant 56 : index
    %c0_98 = arith.constant 0 : index
    %180 = vector.load %arg6[%c0_97, %c56, %c0_98] : memref<1x64x128xf32, #tpu.memory_space<vmem>>, vector<1x8x128xf32>
    %181 = vector.shape_cast %180 : vector<1x8x128xf32> to vector<8x128xf32>
    %182 = vector.shape_cast %179 : vector<8x128xf32> to vector<1x8x128xf32>
    tpu.vector_store %arg6[%c0_97, %c56, %c0_98], %182 {strides = array<i32>} : memref<1x64x128xf32, #tpu.memory_space<vmem>>, vector<1x8x128xf32>,
    return
  }
  func.func @transform_0(%arg0: i32) -> (i32, i32, i32) {
    %c0_i32 = arith.constant 0 : i32
    %c0_i32_0 = arith.constant 0 : i32
    %c0_i32_1 = arith.constant 0 : i32
    return %arg0, %c0_i32, %c0_i32_0 : i32, i32, i32
  }
  func.func @transform_1(%arg0: i32) -> (i32, i32, i32) {
    %c0_i32 = arith.constant 0 : i32
    %c0_i32_0 = arith.constant 0 : i32
    %c0_i32_1 = arith.constant 0 : i32
    %c0_i32_2 = arith.constant 0 : i32
    return %c0_i32, %c0_i32_0, %c0_i32_1 : i32, i32, i32
  }
  func.func @transform_2(%arg0: i32) -> (i32, i32) {
    %c0_i32 = arith.constant 0 : i32
    %c0_i32_0 = arith.constant 0 : i32
    %c0_i32_1 = arith.constant 0 : i32
    return %c0_i32, %c0_i32_0 : i32, i32
  }
  func.func @transform_3(%arg0: i32) -> (i32, i32, i32) {
    %c0_i32 = arith.constant 0 : i32
    %c0_i32_0 = arith.constant 0 : i32
    %c0_i32_1 = arith.constant 0 : i32
    %c0_i32_2 = arith.constant 0 : i32
    return %c0_i32, %c0_i32_0, %c0_i32_1 : i32, i32, i32
  }
  func.func @transform_4(%arg0: i32) -> (i32, i32) {
    %c0_i32 = arith.constant 0 : i32
    %c0_i32_0 = arith.constant 0 : i32
    %c0_i32_1 = arith.constant 0 : i32
    return %c0_i32, %c0_i32_0 : i32, i32
  }
  func.func @transform_5(%arg0: i32) -> (i32, i32, i32) {
    %c0_i32 = arith.constant 0 : i32
    %c0_i32_0 = arith.constant 0 : i32
    %c0_i32_1 = arith.constant 0 : i32
    return %arg0, %c0_i32, %c0_i32_0 : i32, i32, i32
  }
}

</mosaic_0001>

<llo_original>
// kernel: tpu_custom_call.1
$region0: #{tpu_custom_call.1}
  #allocation0 [shape = 'u32[]', space=smem, size = 0x4, offset = 0x4, fixed_abs, tag = 'smem constant byte address 0x4 - core index']
  #allocation1 [shape = 'u32[144,128]{1,0:T(1,128)}', space=vmem, size = 0x12000, scoped, tag = 'internal scratch']
  #allocation2 [shape = 'f32[112,128]{1,0:T(8,128)}', space=vmem, size = 0xe000, scoped, tag = 'scratch operand']
  %s0 = inlined_call_operand.hbm [shape: f32[2,104,128], index: 0, kind: input, shape index: {}]
  %s1 = inlined_call_operand.hbm [shape: bf16[5,256,128], index: 1, kind: input, shape index: {}]
  %s2 = inlined_call_operand.vmem [shape: f32[1,128], index: 2, kind: input, shape index: {}]
  %s3 = inlined_call_operand.hbm [shape: bf16[5,256,128], index: 3, kind: input, shape index: {}]
  %s4 = inlined_call_operand.vmem [shape: f32[1,128], index: 4, kind: input, shape index: {}]
  %s5 = inlined_call_operand.hbm [shape: f32[2,64,128], index: 5, kind: output, shape index: {}]
  %s6 = sld [smem:[#allocation0]]
  $region65: #{tpu_custom_call.1} parent=0
    _
  %s8 = ssub.s32 1, %s6
  %s9 = scalar_select 0, %s8, %s6
  $region1: #{tpu_custom_call.1} parent=0
    #allocation3 [shape = 'u8[106496]{0}', space=vmem, size = 0x1a000, scoped, tag = 'input window, operand 0']
    #allocation4 [shape = 's32[2]{0}', space=sflag, size = 0x8, scoped, tag = 'scoped memory for tpu_custom_call.1']
    #allocation5 [shape = 's32[2]{0}', space=sflag, size = 0x8, scoped, tag = 'scoped memory for tpu_custom_call.1']
    #allocation6 [shape = 'u8[327680]{0}', space=vmem, size = 0x50000, scoped, tag = 'input window, operand 1, single buffered']
    #allocation7 [shape = 's32[1]{0}', space=sflag, size = 0x4, scoped, tag = 'scoped memory for tpu_custom_call.1']
    #allocation8 [shape = 'u8[327680]{0}', space=vmem, size = 0x50000, scoped, tag = 'input window, operand 3, single buffered']
    #allocation9 [shape = 'u8[65536]{0}', space=vmem, size = 0x10000, scoped, tag = 'output window, operand 0']
    %10 = vsyncpa [#allocation4], 0
    %s11 = scalar_lea.sflag [#allocation4], 1
    %12 = vsyncpa %s11, 0
    %13 = vsyncpa [#allocation7], 0
    %14 = vsyncpa [#allocation5], 0
    %s15 = scalar_lea.sflag [#allocation5], 1
    %16 = vsyncpa %s15, 0
    loop: start=0, step=1, limit=4
    $region2: #{tpu_custom_call.1} parent=1 // loop_pre_header
      _
    $region3: #{tpu_custom_call.1} parent=1 // loop_header
      %s18 = sphi 0, %s22
      %p19 = scmp.ge.s32.totalorder %s18, 4
      %s28 = sphi 0, %s30
      %s31 = sphi 0, %s28
      %s32 = sphi 0, %s31
      %s48 = sphi 0, %s32
      %s52 = sphi 0, %s52
      %s54 = sphi 0, %s52
      %s55 = sphi 0, %s54
      %s69 = sphi 0, %s55
      %s73 = sphi 0, %s73
      %s75 = sphi 0, %s73
      %s76 = sphi 0, %s75
      %s90 = sphi 0, %s76
      %s94 = sphi 0, %s94
      %s96 = sphi 0, %s94
      %s97 = sphi 0, %s96
      %s111 = sphi 0, %s97
      %s115 = sphi 0, %s115
      %s117 = sphi 0, %s115
      %s118 = sphi 0, %s117
      %s132 = sphi 0, %s118
      %s138 = sphi 0, %s140
      %s141 = sphi 0, %s138
      %s142 = sphi 0, %s141
      %s158 = sphi 0, %s142
    $region4: #{tpu_custom_call.1} parent=1 // loop_header_branch
      %21 = sbr.rel (%p19) target = $region8
    $region5: #{tpu_custom_call.1} parent=1 // loop_body
      %s23 = ssub.s32 %s18, 1
      %s24 = ssub.s32 %s18, 2
      %s25 = sadd.s32 %s18, 1
      %s26 = ssub.s32 %s18, %s25
      %p27 = scmp.eq.s32.totalorder %s26, 0
      %s29 = sadd.s32 %s28, 1
      %s30 = scalar_select %p27, %s28, %s29
      %p33 = pneg %p27
      %p34 = scmp.eq.s32.totalorder %s18, 1
      %p35 = por %p33, %p34
      %p36 = scmp.ne.s32.totalorder %s28, %s31
      %p37 = scmp.eq.s32.totalorder %s18, 0
      %p38 = por %p36, %p37
      %p39 = scmp.ne.s32.totalorder %s28, %s31
      %p40 = scmp.eq.s32.totalorder %s23, 1
      %p41 = por %p39, %p40
      %p42 = scmp.ne.s32.totalorder %s31, %s32
      %p43 = scmp.eq.s32.totalorder %s23, 0
      %p44 = por %p42, %p43
      %p45 = scmp.ne.s32.totalorder %s31, %s32
      %p46 = scmp.eq.s32.totalorder %s24, 1
      %p47 = por %p45, %p46
      %p49 = scmp.ne.s32.totalorder %s32, %s48
      %p50 = scmp.eq.s32.totalorder %s24, 0
      %p51 = por %p49, %p50
      %s53 = sadd.s32 %s52, 1
      %p56 = scmp.eq.s32.totalorder %s18, 1
      %p57 = scmp.ne.s32.totalorder %s52, %s54
      %p58 = scmp.eq.s32.totalorder %s18, 0
      %p59 = por %p57, %p58
      %p60 = scmp.ne.s32.totalorder %s52, %s54
      %p61 = scmp.eq.s32.totalorder %s23, 1
      %p62 = por %p60, %p61
      %p63 = scmp.ne.s32.totalorder %s54, %s55
      %p64 = scmp.eq.s32.totalorder %s23, 0
      %p65 = por %p63, %p64
      %p66 = scmp.ne.s32.totalorder %s54, %s55
      %p67 = scmp.eq.s32.totalorder %s24, 1
      %p68 = por %p66, %p67
      %p70 = scmp.ne.s32.totalorder %s55, %s69
      %p71 = scmp.eq.s32.totalorder %s24, 0
      %p72 = por %p70, %p71
      %s74 = sadd.s32 %s73, 1
      %p77 = scmp.eq.s32.totalorder %s18, 1
      %p78 = scmp.ne.s32.totalorder %s73, %s75
      %p79 = scmp.eq.s32.totalorder %s18, 0
      %p80 = por %p78, %p79
      %p81 = scmp.ne.s32.totalorder %s73, %s75
      %p82 = scmp.eq.s32.totalorder %s23, 1
      %p83 = por %p81, %p82
      %p84 = scmp.ne.s32.totalorder %s75, %s76
      %p85 = scmp.eq.s32.totalorder %s23, 0
      %p86 = por %p84, %p85
      %p87 = scmp.ne.s32.totalorder %s75, %s76
      %p88 = scmp.eq.s32.totalorder %s24, 1
      %p89 = por %p87, %p88
      %p91 = scmp.ne.s32.totalorder %s76, %s90
      %p92 = scmp.eq.s32.totalorder %s24, 0
      %p93 = por %p91, %p92
      %s95 = sadd.s32 %s94, 1
      %p98 = scmp.eq.s32.totalorder %s18, 1
      %p99 = scmp.ne.s32.totalorder %s94, %s96
      %p100 = scmp.eq.s32.totalorder %s18, 0
      %p101 = por %p99, %p100
      %p102 = scmp.ne.s32.totalorder %s94, %s96
      %p103 = scmp.eq.s32.totalorder %s23, 1
      %p104 = por %p102, %p103
      %p105 = scmp.ne.s32.totalorder %s96, %s97
      %p106 = scmp.eq.s32.totalorder %s23, 0
      %p107 = por %p105, %p106
      %p108 = scmp.ne.s32.totalorder %s96, %s97
      %p109 = scmp.eq.s32.totalorder %s24, 1
      %p110 = por %p108, %p109
      %p112 = scmp.ne.s32.totalorder %s97, %s111
      %p113 = scmp.eq.s32.totalorder %s24, 0
      %p114 = por %p112, %p113
      %s116 = sadd.s32 %s115, 1
      %p119 = scmp.eq.s32.totalorder %s18, 1
      %p120 = scmp.ne.s32.totalorder %s115, %s117
      %p121 = scmp.eq.s32.totalorder %s18, 0
      %p122 = por %p120, %p121
      %p123 = scmp.ne.s32.totalorder %s115, %s117
      %p124 = scmp.eq.s32.totalorder %s23, 1
      %p125 = por %p123, %p124
      %p126 = scmp.ne.s32.totalorder %s117, %s118
      %p127 = scmp.eq.s32.totalorder %s23, 0
      %p128 = por %p126, %p127
      %p129 = scmp.ne.s32.totalorder %s117, %s118
      %p130 = scmp.eq.s32.totalorder %s24, 1
      %p131 = por %p129, %p130
      %p133 = scmp.ne.s32.totalorder %s118, %s132
      %p134 = scmp.eq.s32.totalorder %s24, 0
      %p135 = por %p133, %p134
      %s136 = ssub.s32 %s18, %s25
      %p137 = scmp.eq.s32.totalorder %s136, 0
      %s139 = sadd.s32 %s138, 1
      %s140 = scalar_select %p137, %s138, %s139
      %p143 = pneg %p137
      %p144 = scmp.eq.s32.totalorder %s18, 1
      %p145 = por %p143, %p144
      %p146 = scmp.ne.s32.totalorder %s138, %s141
      %p147 = scmp.eq.s32.totalorder %s18, 0
      %p148 = por %p146, %p147
      %p149 = scmp.ne.s32.totalorder %s138, %s141
      %p150 = scmp.eq.s32.totalorder %s23, 1
      %p151 = por %p149, %p150
      %p152 = scmp.ne.s32.totalorder %s141, %s142
      %p153 = scmp.eq.s32.totalorder %s23, 0
      %p154 = por %p152, %p153
      %p155 = scmp.ne.s32.totalorder %s141, %s142
      %p156 = scmp.eq.s32.totalorder %s24, 1
      %p157 = por %p155, %p156
      %p159 = scmp.ne.s32.totalorder %s142, %s158
      %p160 = scmp.eq.s32.totalorder %s24, 0
      %p161 = por %p159, %p160
      %p162 = scmp.le.s32.totalorder 1, %s18
      %p163 = scmp.lt.s32.totalorder %s18, 3
      %p164 = pnand %p162, %p163
      %p165 = pneg %p164
      // Predicated region
      $region9: #{tpu_custom_call.1} parent=5 // pred_check
        _
      $region10: #{tpu_custom_call.1} parent=5 // pred_check_branch
        %167 = sbr.rel (%p164) target = $region12
      $region11: #{tpu_custom_call.1} parent=5 // pred_region
        %s168 = ssub.s32 %s18, 1
        // Predicated region
        $region13: #{tpu_custom_call.1} parent=11 // pred_check
          %p169 = pneg %p65
        $region14: #{tpu_custom_call.1} parent=11 // pred_check_branch
          %171 = sbr.rel (%p169) target = $region16
        $region15: #{tpu_custom_call.1} parent=11 // pred_region
          %s173 = ssub.s32 10240, 10240
          %174 = vsyncadd [#allocation7], %s173
          %s175 = sshll.u32 [#allocation6], 4
          %s176 = int_to_ptr.vmem [resolvable:$true] %s175
          %181 = dma.hbm_to_vmem [thread:$0]  %s1, 10240, %s176, [#allocation7], 64, 64, 4
        $region16: #{tpu_custom_call.1} parent=11 // pred_fallthru
          _
        // Predicated region
        $region17: #{tpu_custom_call.1} parent=11 // pred_check
          %p182 = pneg %p86
        $region18: #{tpu_custom_call.1} parent=11 // pred_check_branch
          %184 = sbr.rel (%p182) target = $region20
        $region19: #{tpu_custom_call.1} parent=11 // pred_region
          _
        $region20: #{tpu_custom_call.1} parent=11 // pred_fallthru
          _
        // Predicated region
        $region21: #{tpu_custom_call.1} parent=11 // pred_check
          %p185 = pneg %p107
        $region22: #{tpu_custom_call.1} parent=11 // pred_check_branch
          %187 = sbr.rel (%p185) target = $region24
        $region23: #{tpu_custom_call.1} parent=11 // pred_region
          %s189 = ssub.s32 10240, 10240
          %190 = vsyncadd [#allocation7], %s189
          %s191 = sshll.u32 [#allocation8], 4
          %s192 = int_to_ptr.vmem [resolvable:$true] %s191
          %197 = dma.hbm_to_vmem [thread:$0]  %s3, 10240, %s192, [#allocation7], 64, 64, 4
        $region24: #{tpu_custom_call.1} parent=11 // pred_fallthru
          _
        // Predicated region
        $region25: #{tpu_custom_call.1} parent=11 // pred_check
          %p198 = pneg %p128
        $region26: #{tpu_custom_call.1} parent=11 // pred_check_branch
          %200 = sbr.rel (%p198) target = $region28
        $region27: #{tpu_custom_call.1} parent=11 // pred_region
          _
        $region28: #{tpu_custom_call.1} parent=11 // pred_fallthru
          _
      $region12: #{tpu_custom_call.1} parent=5 // pred_fallthru
        _
      %p201 = scmp.lt.s32.totalorder %s18, 2
      // Predicated region
      $region29: #{tpu_custom_call.1} parent=5 // pred_check
        %p202 = pneg %p201
      $region30: #{tpu_custom_call.1} parent=5 // pred_check_branch
        %204 = sbr.rel (%p202) target = $region32
      $region31: #{tpu_custom_call.1} parent=5 // pred_region
        // Predicated region
        $region33: #{tpu_custom_call.1} parent=31 // pred_check
          %p205 = pneg %p38
        $region34: #{tpu_custom_call.1} parent=31 // pred_check_branch
          %207 = sbr.rel (%p205) target = $region36
        $region35: #{tpu_custom_call.1} parent=31 // pred_region
          %s208 = sand.u32 %s28, 1
          %s209 = scalar_lea.sflag [#allocation4], %s208
          %s210 = sand.u32 %s28, 1
          %s211 = smul.addr %s210, 104
          %s212 = scalar_lea.vmem [#allocation3], %s211
          %s214 = ssub.s32 1664, 1664
          %215 = vsyncadd %s209, %s214
          %s216 = smul.addr %s18, 13
          %s217 = smul.addr %s216, 128
          %s218 = scalar_lea.hbm %s0, %s217
          %s219 = sshll.u32 %s212, 4
          %s220 = int_to_ptr.vmem [resolvable:$true] %s219
          %225 = dma.hbm_to_vmem [thread:$0]  %s218, 1664, %s220, %s209, 128, 128, 8
        $region36: #{tpu_custom_call.1} parent=31 // pred_fallthru
          _
      $region32: #{tpu_custom_call.1} parent=5 // pred_fallthru
        _
      %p226 = scmp.le.s32.totalorder 1, %s18
      %p227 = scmp.lt.s32.totalorder %s18, 3
      %p228 = pnand %p226, %p227
      %p229 = pneg %p228
      // Predicated region
      $region37: #{tpu_custom_call.1} parent=5 // pred_check
        _
      $region38: #{tpu_custom_call.1} parent=5 // pred_check_branch
        %231 = sbr.rel (%p228) target = $region40
      $region39: #{tpu_custom_call.1} parent=5 // pred_region
        %s232 = ssub.s32 %s18, 1
        %s233 = sand.u32 %s31, 1
        %s234 = scalar_lea.sflag [#allocation4], %s233
        %s235 = sand.u32 %s31, 1
        %s236 = smul.addr %s235, 104
        %s237 = scalar_lea.vmem [#allocation3], %s236
        // Predicated region
        $region41: #{tpu_custom_call.1} parent=39 // pred_check
          %p238 = pneg %p44
        $region42: #{tpu_custom_call.1} parent=39 // pred_check_branch
          %240 = sbr.rel (%p238) target = $region44
        $region43: #{tpu_custom_call.1} parent=39 // pred_region
          %241 = dma.done %s234, 1664
        $region44: #{tpu_custom_call.1} parent=39 // pred_fallthru
          _
        // Predicated region
        $region45: #{tpu_custom_call.1} parent=39 // pred_check
          %p242 = pneg %p65
        $region46: #{tpu_custom_call.1} parent=39 // pred_check_branch
          %244 = sbr.rel (%p242) target = $region48
        $region47: #{tpu_custom_call.1} parent=39 // pred_region
          %245 = dma.done [#allocation7], 10240
        $region48: #{tpu_custom_call.1} parent=39 // pred_fallthru
          _
        // Predicated region
        $region49: #{tpu_custom_call.1} parent=39 // pred_check
          %p246 = pneg %p107
        $region50: #{tpu_custom_call.1} parent=39 // pred_check_branch
          %248 = sbr.rel (%p246) target = $region52
        $region51: #{tpu_custom_call.1} parent=39 // pred_region
          %249 = dma.done [#allocation7], 10240
        $region52: #{tpu_custom_call.1} parent=39 // pred_fallthru
          _
        %s250 = sand.u32 %s31, 1
        %s251 = scalar_lea.sflag [#allocation4], %s250
        %s252 = sand.u32 %s31, 1
        %s253 = smul.addr %s252, 104
        %s254 = scalar_lea.vmem [#allocation3], %s253
        %p255 = pneg %p44
        %p256 = pneg %p41
        %p257 = pneg %p65
        %p258 = pneg %p62
        %p259 = pneg %p86
        %p260 = pneg %p83
        %p261 = pneg %p107
        %p262 = pneg %p104
        %p263 = pneg %p128
        %p264 = pneg %p125
        %p265 = pneg %p154
        %p266 = pneg %p151
        %s267 = sand.u32 %s141, 1
        %s268 = scalar_lea.sflag [#allocation5], %s267
        %s269 = sand.u32 %s141, 1
        %s270 = smul.addr %s269, 64
        %s271 = scalar_lea.vmem [#allocation9], %s270
        %v273 = vlaneseq
        %v274 = vshrl.u32 %v273, 7
        %v275 = vadd.s32 %v274, 8
        %v276 = vadd.s32 %v274, 16
        %v277 = vadd.s32 %v274, 24
        %v278 = vadd.s32 %v274, 32
        %v279 = vadd.s32 %v274, 40
        %v280 = vadd.s32 %v274, 48
        %v281 = vadd.s32 %v274, 56
        %v282 = vadd.s32 %v274, 64
        %v283 = vadd.s32 %v274, 72
        %vm284 = vcmp.ge.s32.totalorder %v274, 0
        %vm285 = vcmp.ge.s32.totalorder %v275, 0
        %vm286 = vcmp.ge.s32.totalorder %v276, 0
        %vm287 = vcmp.ge.s32.totalorder %v277, 0
        %vm288 = vcmp.ge.s32.totalorder %v278, 0
        %vm289 = vcmp.ge.s32.totalorder %v279, 0
        %vm290 = vcmp.ge.s32.totalorder %v280, 0
        %vm291 = vcmp.ge.s32.totalorder %v281, 0
        %vm292 = vcmp.ge.s32.totalorder %v282, 0
        %vm293 = vcmp.ge.s32.totalorder %v283, 0
        %vm294 = vcmp.lt.s32.totalorder %v274, 8
        %vm295 = vcmp.lt.s32.totalorder %v275, 8
        %vm296 = vcmp.lt.s32.totalorder %v276, 8
        %vm297 = vcmp.lt.s32.totalorder %v277, 8
        %vm298 = vcmp.lt.s32.totalorder %v278, 8
        %vm299 = vcmp.lt.s32.totalorder %v279, 8
        %vm300 = vcmp.lt.s32.totalorder %v280, 8
        %vm301 = vcmp.lt.s32.totalorder %v281, 8
        %vm302 = vcmp.lt.s32.totalorder %v282, 8
        %vm303 = vcmp.lt.s32.totalorder %v283, 8
        %vm304 = vmand %vm284, %vm294
        %vm305 = vmand %vm285, %vm295
        %vm306 = vmand %vm286, %vm296
        %vm307 = vmand %vm287, %vm297
        %vm308 = vmand %vm288, %vm298
        %vm309 = vmand %vm289, %vm299
        %vm310 = vmand %vm290, %vm300
        %vm311 = vmand %vm291, %vm301
        %vm312 = vmand %vm292, %vm302
        %vm313 = vmand %vm293, %vm303
        %vm314 = vcmp.ge.s32.totalorder %v274, 10
        %vm315 = vcmp.ge.s32.totalorder %v275, 10
        %vm316 = vcmp.ge.s32.totalorder %v276, 10
        %vm317 = vcmp.ge.s32.totalorder %v277, 10
        %vm318 = vcmp.ge.s32.totalorder %v278, 10
        %vm319 = vcmp.ge.s32.totalorder %v279, 10
        %vm320 = vcmp.ge.s32.totalorder %v280, 10
        %vm321 = vcmp.ge.s32.totalorder %v281, 10
        %vm322 = vcmp.ge.s32.totalorder %v282, 10
        %vm323 = vcmp.ge.s32.totalorder %v283, 10
        %vm324 = vcmp.lt.s32.totalorder %v274, 18
        %vm325 = vcmp.lt.s32.totalorder %v275, 18
        %vm326 = vcmp.lt.s32.totalorder %v276, 18
        %vm327 = vcmp.lt.s32.totalorder %v277, 18
        %vm328 = vcmp.lt.s32.totalorder %v278, 18
        %vm329 = vcmp.lt.s32.totalorder %v279, 18
        %vm330 = vcmp.lt.s32.totalorder %v280, 18
        %vm331 = vcmp.lt.s32.totalorder %v281, 18
        %vm332 = vcmp.lt.s32.totalorder %v282, 18
        %vm333 = vcmp.lt.s32.totalorder %v283, 18
        %vm334 = vmand %vm314, %vm324
        %vm335 = vmand %vm315, %vm325
        %vm336 = vmand %vm316, %vm326
        %vm337 = vmand %vm317, %vm327
        %vm338 = vmand %vm318, %vm328
        %vm339 = vmand %vm319, %vm329
        %vm340 = vmand %vm320, %vm330
        %vm341 = vmand %vm321, %vm331
        %vm342 = vmand %vm322, %vm332
        %vm343 = vmand %vm323, %vm333
        %vm344 = vmor %vm304, %vm334
        %vm345 = vmor %vm305, %vm335
        %vm346 = vmor %vm306, %vm336
        %vm347 = vmor %vm307, %vm337
        %vm348 = vmor %vm308, %vm338
        %vm349 = vmor %vm309, %vm339
        %vm350 = vmor %vm310, %vm340
        %vm351 = vmor %vm311, %vm341
        %vm352 = vmor %vm312, %vm342
        %vm353 = vmor %vm313, %vm343
        %vm354 = vcmp.ge.s32.totalorder %v274, 20
        %vm355 = vcmp.ge.s32.totalorder %v275, 20
        %vm356 = vcmp.ge.s32.totalorder %v276, 20
        %vm357 = vcmp.ge.s32.totalorder %v277, 20
        %vm358 = vcmp.ge.s32.totalorder %v278, 20
        %vm359 = vcmp.ge.s32.totalorder %v279, 20
        %vm360 = vcmp.ge.s32.totalorder %v280, 20
        %vm361 = vcmp.ge.s32.totalorder %v281, 20
        %vm362 = vcmp.ge.s32.totalorder %v282, 20
        %vm363 = vcmp.ge.s32.totalorder %v283, 20
        %vm364 = vcmp.lt.s32.totalorder %v274, 28
        %vm365 = vcmp.lt.s32.totalorder %v275, 28
        %vm366 = vcmp.lt.s32.totalorder %v276, 28
        %vm367 = vcmp.lt.s32.totalorder %v277, 28
        %vm368 = vcmp.lt.s32.totalorder %v278, 28
        %vm369 = vcmp.lt.s32.totalorder %v279, 28
        %vm370 = vcmp.lt.s32.totalorder %v280, 28
        %vm371 = vcmp.lt.s32.totalorder %v281, 28
        %vm372 = vcmp.lt.s32.totalorder %v282, 28
        %vm373 = vcmp.lt.s32.totalorder %v283, 28
        %vm374 = vmand %vm354, %vm364
        %vm375 = vmand %vm355, %vm365
        %vm376 = vmand %vm356, %vm366
        %vm377 = vmand %vm357, %vm367
        %vm378 = vmand %vm358, %vm368
        %vm379 = vmand %vm359, %vm369
        %vm380 = vmand %vm360, %vm370
        %vm381 = vmand %vm361, %vm371
        %vm382 = vmand %vm362, %vm372
        %vm383 = vmand %vm363, %vm373
        %vm384 = vmor %vm344, %vm374
        %vm385 = vmor %vm345, %vm375
        %vm386 = vmor %vm346, %vm376
        %vm387 = vmor %vm347, %vm377
        %vm388 = vmor %vm348, %vm378
        %vm389 = vmor %vm349, %vm379
        %vm390 = vmor %vm350, %vm380
        %vm391 = vmor %vm351, %vm381
        %vm392 = vmor %vm352, %vm382
        %vm393 = vmor %vm353, %vm383
        %vm394 = vcmp.ge.s32.totalorder %v274, 30
        %vm395 = vcmp.ge.s32.totalorder %v275, 30
        %vm396 = vcmp.ge.s32.totalorder %v276, 30
        %vm397 = vcmp.ge.s32.totalorder %v277, 30
        %vm398 = vcmp.ge.s32.totalorder %v278, 30
        %vm399 = vcmp.ge.s32.totalorder %v279, 30
        %vm400 = vcmp.ge.s32.totalorder %v280, 30
        %vm401 = vcmp.ge.s32.totalorder %v281, 30
        %vm402 = vcmp.ge.s32.totalorder %v282, 30
        %vm403 = vcmp.ge.s32.totalorder %v283, 30
        %vm404 = vcmp.lt.s32.totalorder %v274, 38
        %vm405 = vcmp.lt.s32.totalorder %v275, 38
        %vm406 = vcmp.lt.s32.totalorder %v276, 38
        %vm407 = vcmp.lt.s32.totalorder %v277, 38
        %vm408 = vcmp.lt.s32.totalorder %v278, 38
        %vm409 = vcmp.lt.s32.totalorder %v279, 38
        %vm410 = vcmp.lt.s32.totalorder %v280, 38
        %vm411 = vcmp.lt.s32.totalorder %v281, 38
        %vm412 = vcmp.lt.s32.totalorder %v282, 38
        %vm413 = vcmp.lt.s32.totalorder %v283, 38
        %vm414 = vmand %vm394, %vm404
        %vm415 = vmand %vm395, %vm405
        %vm416 = vmand %vm396, %vm406
        %vm417 = vmand %vm397, %vm407
        %vm418 = vmand %vm398, %vm408
        %vm419 = vmand %vm399, %vm409
        %vm420 = vmand %vm400, %vm410
        %vm421 = vmand %vm401, %vm411
        %vm422 = vmand %vm402, %vm412
        %vm423 = vmand %vm403, %vm413
        %vm424 = vmor %vm384, %vm414
        %vm425 = vmor %vm385, %vm415
        %vm426 = vmor %vm386, %vm416
        %vm427 = vmor %vm387, %vm417
        %vm428 = vmor %vm388, %vm418
        %vm429 = vmor %vm389, %vm419
        %vm430 = vmor %vm390, %vm420
        %vm431 = vmor %vm391, %vm421
        %vm432 = vmor %vm392, %vm422
        %vm433 = vmor %vm393, %vm423
        %vm434 = vcmp.ge.s32.totalorder %v274, 40
        %vm435 = vcmp.ge.s32.totalorder %v275, 40
        %vm436 = vcmp.ge.s32.totalorder %v276, 40
        %vm437 = vcmp.ge.s32.totalorder %v277, 40
        %vm438 = vcmp.ge.s32.totalorder %v278, 40
        %vm439 = vcmp.ge.s32.totalorder %v279, 40
        %vm440 = vcmp.ge.s32.totalorder %v280, 40
        %vm441 = vcmp.ge.s32.totalorder %v281, 40
        %vm442 = vcmp.ge.s32.totalorder %v282, 40
        %vm443 = vcmp.ge.s32.totalorder %v283, 40
        %vm444 = vcmp.lt.s32.totalorder %v274, 48
        %vm445 = vcmp.lt.s32.totalorder %v275, 48
        %vm446 = vcmp.lt.s32.totalorder %v276, 48
        %vm447 = vcmp.lt.s32.totalorder %v277, 48
        %vm448 = vcmp.lt.s32.totalorder %v278, 48
        %vm449 = vcmp.lt.s32.totalorder %v279, 48
        %vm450 = vcmp.lt.s32.totalorder %v280, 48
        %vm451 = vcmp.lt.s32.totalorder %v281, 48
        %vm452 = vcmp.lt.s32.totalorder %v282, 48
        %vm453 = vcmp.lt.s32.totalorder %v283, 48
        %vm454 = vmand %vm434, %vm444
        %vm455 = vmand %vm435, %vm445
        %vm456 = vmand %vm436, %vm446
        %vm457 = vmand %vm437, %vm447
        %vm458 = vmand %vm438, %vm448
        %vm459 = vmand %vm439, %vm449
        %vm460 = vmand %vm440, %vm450
        %vm461 = vmand %vm441, %vm451
        %vm462 = vmand %vm442, %vm452
        %vm463 = vmand %vm443, %vm453
        %vm464 = vmor %vm424, %vm454
        %vm465 = vmor %vm425, %vm455
        %vm466 = vmor %vm426, %vm456
        %vm467 = vmor %vm427, %vm457
        %vm468 = vmor %vm428, %vm458
        %vm469 = vmor %vm429, %vm459
        %vm470 = vmor %vm430, %vm460
        %vm471 = vmor %vm431, %vm461
        %vm472 = vmor %vm432, %vm462
        %vm473 = vmor %vm433, %vm463
        %vm474 = vcmp.ge.s32.totalorder %v274, 50
        %vm475 = vcmp.ge.s32.totalorder %v275, 50
        %vm476 = vcmp.ge.s32.totalorder %v276, 50
        %vm477 = vcmp.ge.s32.totalorder %v277, 50
        %vm478 = vcmp.ge.s32.totalorder %v278, 50
        %vm479 = vcmp.ge.s32.totalorder %v279, 50
        %vm480 = vcmp.ge.s32.totalorder %v280, 50
        %vm481 = vcmp.ge.s32.totalorder %v281, 50
        %vm482 = vcmp.ge.s32.totalorder %v282, 50
        %vm483 = vcmp.ge.s32.totalorder %v283, 50
        %vm484 = vcmp.lt.s32.totalorder %v274, 58
        %vm485 = vcmp.lt.s32.totalorder %v275, 58
        %vm486 = vcmp.lt.s32.totalorder %v276, 58
        %vm487 = vcmp.lt.s32.totalorder %v277, 58
        %vm488 = vcmp.lt.s32.totalorder %v278, 58
        %vm489 = vcmp.lt.s32.totalorder %v279, 58
        %vm490 = vcmp.lt.s32.totalorder %v280, 58
        %vm491 = vcmp.lt.s32.totalorder %v281, 58
        %vm492 = vcmp.lt.s32.totalorder %v282, 58
        %vm493 = vcmp.lt.s32.totalorder %v283, 58
        %vm494 = vmand %vm474, %vm484
        %vm495 = vmand %vm475, %vm485
        %vm496 = vmand %vm476, %vm486
        %vm497 = vmand %vm477, %vm487
        %vm498 = vmand %vm478, %vm488
        %vm499 = vmand %vm479, %vm489
        %vm500 = vmand %vm480, %vm490
        %vm501 = vmand %vm481, %vm491
        %vm502 = vmand %vm482, %vm492
        %vm503 = vmand %vm483, %vm493
        %vm504 = vmor %vm464, %vm494
        %vm505 = vmor %vm465, %vm495
        %vm506 = vmor %vm466, %vm496
        %vm507 = vmor %vm467, %vm497
        %vm508 = vmor %vm468, %vm498
        %vm509 = vmor %vm469, %vm499
        %vm510 = vmor %vm470, %vm500
        %vm511 = vmor %vm471, %vm501
        %vm512 = vmor %vm472, %vm502
        %vm513 = vmor %vm473, %vm503
        %vm514 = vcmp.ge.s32.totalorder %v274, 60
        %vm515 = vcmp.ge.s32.totalorder %v275, 60
        %vm516 = vcmp.ge.s32.totalorder %v276, 60
        %vm517 = vcmp.ge.s32.totalorder %v277, 60
        %vm518 = vcmp.ge.s32.totalorder %v278, 60
        %vm519 = vcmp.ge.s32.totalorder %v279, 60
        %vm520 = vcmp.ge.s32.totalorder %v280, 60
        %vm521 = vcmp.ge.s32.totalorder %v281, 60
        %vm522 = vcmp.ge.s32.totalorder %v282, 60
        %vm523 = vcmp.ge.s32.totalorder %v283, 60
        %vm524 = vcmp.lt.s32.totalorder %v274, 68
        %vm525 = vcmp.lt.s32.totalorder %v275, 68
        %vm526 = vcmp.lt.s32.totalorder %v276, 68
        %vm527 = vcmp.lt.s32.totalorder %v277, 68
        %vm528 = vcmp.lt.s32.totalorder %v278, 68
        %vm529 = vcmp.lt.s32.totalorder %v279, 68
        %vm530 = vcmp.lt.s32.totalorder %v280, 68
        %vm531 = vcmp.lt.s32.totalorder %v281, 68
        %vm532 = vcmp.lt.s32.totalorder %v282, 68
        %vm533 = vcmp.lt.s32.totalorder %v283, 68
        %vm534 = vmand %vm514, %vm524
        %vm535 = vmand %vm515, %vm525
        %vm536 = vmand %vm516, %vm526
        %vm537 = vmand %vm517, %vm527
        %vm538 = vmand %vm518, %vm528
        %vm539 = vmand %vm519, %vm529
        %vm540 = vmand %vm520, %vm530
        %vm541 = vmand %vm521, %vm531
        %vm542 = vmand %vm522, %vm532
        %vm543 = vmand %vm523, %vm533
        %vm544 = vmor %vm504, %vm534
        %vm545 = vmor %vm505, %vm535
        %vm546 = vmor %vm506, %vm536
        %vm547 = vmor %vm507, %vm537
        %vm548 = vmor %vm508, %vm538
        %vm549 = vmor %vm509, %vm539
        %vm550 = vmor %vm510, %vm540
        %vm551 = vmor %vm511, %vm541
        %vm552 = vmor %vm512, %vm542
        %vm553 = vmor %vm513, %vm543
        %vm554 = vcmp.ge.s32.totalorder %v274, 70
        %vm555 = vcmp.ge.s32.totalorder %v275, 70
        %vm556 = vcmp.ge.s32.totalorder %v276, 70
        %vm557 = vcmp.ge.s32.totalorder %v277, 70
        %vm558 = vcmp.ge.s32.totalorder %v278, 70
        %vm559 = vcmp.ge.s32.totalorder %v279, 70
        %vm560 = vcmp.ge.s32.totalorder %v280, 70
        %vm561 = vcmp.ge.s32.totalorder %v281, 70
        %vm562 = vcmp.ge.s32.totalorder %v282, 70
        %vm563 = vcmp.ge.s32.totalorder %v283, 70
        %vm564 = vcmp.lt.s32.totalorder %v274, 78
        %vm565 = vcmp.lt.s32.totalorder %v275, 78
        %vm566 = vcmp.lt.s32.totalorder %v276, 78
        %vm567 = vcmp.lt.s32.totalorder %v277, 78
        %vm568 = vcmp.lt.s32.totalorder %v278, 78
        %vm569 = vcmp.lt.s32.totalorder %v279, 78
        %vm570 = vcmp.lt.s32.totalorder %v280, 78
        %vm571 = vcmp.lt.s32.totalorder %v281, 78
        %vm572 = vcmp.lt.s32.totalorder %v282, 78
        %vm573 = vcmp.lt.s32.totalorder %v283, 78
        %vm574 = vmand %vm554, %vm564
        %vm575 = vmand %vm555, %vm565
        %vm576 = vmand %vm556, %vm566
        %vm577 = vmand %vm557, %vm567
        %vm578 = vmand %vm558, %vm568
        %vm579 = vmand %vm559, %vm569
        %vm580 = vmand %vm560, %vm570
        %vm581 = vmand %vm561, %vm571
        %vm582 = vmand %vm562, %vm572
        %vm583 = vmand %vm563, %vm573
        %vm584 = vmor %vm544, %vm574
        %vm585 = vmor %vm545, %vm575
        %vm586 = vmor %vm546, %vm576
        %vm587 = vmor %vm547, %vm577
        %vm588 = vmor %vm548, %vm578
        %vm589 = vmor %vm549, %vm579
        %vm590 = vmor %vm550, %vm580
        %vm591 = vmor %vm551, %vm581
        %vm592 = vmor %vm552, %vm582
        %vm593 = vmor %vm553, %vm583
        %594 = vst [vmem:[#allocation2] sm:$0xff] 0.0
        %595 = vst [vmem:[#allocation2 + $0x8] sm:$0xff] 0.0
        %596 = vst [vmem:[#allocation2 + $0x60] sm:$0xff] 0.0
        %597 = vst [vmem:[#allocation2 + $0x68] sm:$0xff] 0.0
        %v598 = vld [vmem:[%s237] sm:$0xff]
        %v599 = vld [vmem:[%s237 + $0x8] sm:$0xff]
        %v600 = vld [vmem:[%s237 + $0x10] sm:$0xff]
        %v601 = vld [vmem:[%s237 + $0x18] sm:$0xff]
        %v602 = vld [vmem:[%s237 + $0x20] sm:$0xff]
        %v603 = vld [vmem:[%s237 + $0x28] sm:$0xff]
        %v604 = vld [vmem:[%s237 + $0x30] sm:$0xff]
        %v605 = vld [vmem:[%s237 + $0x38] sm:$0xff]
        %v606 = vld [vmem:[%s237 + $0x40] sm:$0xff]
        %v607 = vld [vmem:[%s237 + $0x48] sm:$0xff]
        %v608 = vld [vmem:[%s237 + $0x1] sm:$0xff]
        %v609 = vld [vmem:[%s237 + $0x9] sm:$0xff]
        %v610 = vld [vmem:[%s237 + $0x11] sm:$0xff]
        %v611 = vld [vmem:[%s237 + $0x19] sm:$0xff]
        %v612 = vld [vmem:[%s237 + $0x21] sm:$0xff]
        %v613 = vld [vmem:[%s237 + $0x29] sm:$0xff]
        %v614 = vld [vmem:[%s237 + $0x31] sm:$0xff]
        %v615 = vld [vmem:[%s237 + $0x39] sm:$0xff]
        %v616 = vld [vmem:[%s237 + $0x41] sm:$0xff]
        %v617 = vld [vmem:[%s237 + $0x49] sm:$0xff]
        %v618 = vpack.c.bf16 %v599, %v598
        %v619 = vpack.c.bf16 %v609, %v608
        %v620 = vpack.c.bf16 %v601, %v600
        %v621 = vpack.c.bf16 %v611, %v610
        %v622 = vpack.c.bf16 %v603, %v602
        %v623 = vpack.c.bf16 %v613, %v612
        %v624 = vpack.c.bf16 %v605, %v604
        %v625 = vpack.c.bf16 %v615, %v614
        %v626 = vpack.c.bf16 %v607, %v606
        %v627 = vpack.c.bf16 %v617, %v616
        %v628 = vld [vmem:[#allocation6] sm:$0xf]
        %v629 = vld [vmem:[#allocation6 + $0x4] sm:$0xf]
        %v630 = vld [vmem:[#allocation6 + $0x8] sm:$0xf]
        %v631 = vld [vmem:[#allocation6 + $0xc] sm:$0xf]
        %v632 = vld [vmem:[#allocation6 + $0x10] sm:$0xf]
        %v633 = vld [vmem:[#allocation6 + $0x14] sm:$0xf]
        %v634 = vld [vmem:[#allocation6 + $0x18] sm:$0xf]
        %v635 = vld [vmem:[#allocation6 + $0x1c] sm:$0xf]
        %v636 = vld [vmem:[#allocation6 + $0x20] sm:$0xf]
        %v637 = vld [vmem:[#allocation6 + $0x24] sm:$0xf]
        %v638 = vld [vmem:[#allocation6 + $0x28] sm:$0xf]
        %v639 = vld [vmem:[#allocation6 + $0x2c] sm:$0xf]
        %v640 = vld [vmem:[#allocation6 + $0x30] sm:$0xf]
        %v641 = vld [vmem:[#allocation6 + $0x34] sm:$0xf]
        %v642 = vld [vmem:[#allocation6 + $0x38] sm:$0xf]
        %v643 = vld [vmem:[#allocation6 + $0x3c] sm:$0xf]
        %v644 = vld [vmem:[#allocation6 + $0x40] sm:$0xf]
        %v645 = vld [vmem:[#allocation6 + $0x44] sm:$0xf]
        %v646 = vld [vmem:[#allocation6 + $0x48] sm:$0xf]
        %v647 = vld [vmem:[#allocation6 + $0x4c] sm:$0xf]
        %v648 = vld [vmem:[#allocation6 + $0x50] sm:$0xf]
        %v649 = vld [vmem:[#allocation6 + $0x54] sm:$0xf]
        %v650 = vld [vmem:[#allocation6 + $0x58] sm:$0xf]
        %v651 = vld [vmem:[#allocation6 + $0x5c] sm:$0xf]
        %v652 = vld [vmem:[#allocation6 + $0x60] sm:$0xf]
        %v653 = vld [vmem:[#allocation6 + $0x64] sm:$0xf]
        %v654 = vld [vmem:[#allocation6 + $0x68] sm:$0xf]
        %v655 = vld [vmem:[#allocation6 + $0x6c] sm:$0xf]
        %v656 = vld [vmem:[#allocation6 + $0x70] sm:$0xf]
        %v657 = vld [vmem:[#allocation6 + $0x74] sm:$0xf]
        %v658 = vld [vmem:[#allocation6 + $0x78] sm:$0xf]
        %v659 = vld [vmem:[#allocation6 + $0x7c] sm:$0xf]
        %v660 = vld [vmem:[%s237 + $0x2] sm:$0xff]
        %v661 = vld [vmem:[%s237 + $0xa] sm:$0xff]
        %v662 = vld [vmem:[%s237 + $0x12] sm:$0xff]
        %v663 = vld [vmem:[%s237 + $0x1a] sm:$0xff]
        %v664 = vld [vmem:[%s237 + $0x22] sm:$0xff]
        %v665 = vld [vmem:[%s237 + $0x2a] sm:$0xff]
        %v666 = vld [vmem:[%s237 + $0x32] sm:$0xff]
        %v667 = vld [vmem:[%s237 + $0x3a] sm:$0xff]
        %v668 = vld [vmem:[%s237 + $0x42] sm:$0xff]
        %v669 = vld [vmem:[%s237 + $0x4a] sm:$0xff]
        %v670 = vld [vmem:[%s237 + $0x52] sm:$0xff]
        %v671 = vpack.c.bf16 %v661, %v660
        %v672 = vpack.c.bf16 %v662, %v661
        %v673 = vpack.c.bf16 %v663, %v662
        %v674 = vpack.c.bf16 %v664, %v663
        %v675 = vpack.c.bf16 %v665, %v664
        %v676 = vpack.c.bf16 %v666, %v665
        %v677 = vpack.c.bf16 %v667, %v666
        %v678 = vpack.c.bf16 %v668, %v667
        %v679 = vpack.c.bf16 %v669, %v668
        %v680 = vpack.c.bf16 %v670, %v669
        %s681 = scalar_lea.vmem [#allocation6], 128
        %v682 = vld [vmem:[%s681] sm:$0xf]
        %v683 = vld [vmem:[%s681 + $0x4] sm:$0xf]
        %v684 = vld [vmem:[%s681 + $0x8] sm:$0xf]
        %v685 = vld [vmem:[%s681 + $0xc] sm:$0xf]
        %v686 = vld [vmem:[%s681 + $0x10] sm:$0xf]
        %v687 = vld [vmem:[%s681 + $0x14] sm:$0xf]
        %v688 = vld [vmem:[%s681 + $0x18] sm:$0xf]
        %v689 = vld [vmem:[%s681 + $0x1c] sm:$0xf]
        %v690 = vld [vmem:[%s681 + $0x20] sm:$0xf]
        %v691 = vld [vmem:[%s681 + $0x24] sm:$0xf]
        %v692 = vld [vmem:[%s681 + $0x28] sm:$0xf]
        %v693 = vld [vmem:[%s681 + $0x2c] sm:$0xf]
        %v694 = vld [vmem:[%s681 + $0x30] sm:$0xf]
        %v695 = vld [vmem:[%s681 + $0x34] sm:$0xf]
        %v696 = vld [vmem:[%s681 + $0x38] sm:$0xf]
        %v697 = vld [vmem:[%s681 + $0x3c] sm:$0xf]
        %v698 = vld [vmem:[%s681 + $0x40] sm:$0xf]
        %v699 = vld [vmem:[%s681 + $0x44] sm:$0xf]
        %v700 = vld [vmem:[%s681 + $0x48] sm:$0xf]
        %v701 = vld [vmem:[%s681 + $0x4c] sm:$0xf]
        %v702 = vld [vmem:[%s681 + $0x50] sm:$0xf]
        %v703 = vld [vmem:[%s681 + $0x54] sm:$0xf]
        %v704 = vld [vmem:[%s681 + $0x58] sm:$0xf]
        %v705 = vld [vmem:[%s681 + $0x5c] sm:$0xf]
        %v706 = vld [vmem:[%s681 + $0x60] sm:$0xf]
        %v707 = vld [vmem:[%s681 + $0x64] sm:$0xf]
        %v708 = vld [vmem:[%s681 + $0x68] sm:$0xf]
        %v709 = vld [vmem:[%s681 + $0x6c] sm:$0xf]
        %v710 = vld [vmem:[%s681 + $0x70] sm:$0xf]
        %v711 = vld [vmem:[%s681 + $0x74] sm:$0xf]
        %v712 = vld [vmem:[%s681 + $0x78] sm:$0xf]
        %v713 = vld [vmem:[%s681 + $0x7c] sm:$0xf]
        %v746 = vunpack.c.l.b16 %v682
        %v747 = vunpack.c.l.b16 %v683
        %v748 = vunpack.c.l.b16 %v684
        %v749 = vunpack.c.l.b16 %v685
        %v750 = vunpack.c.l.b16 %v686
        %v751 = vunpack.c.l.b16 %v687
        %v752 = vunpack.c.l.b16 %v688
        %v753 = vunpack.c.l.b16 %v689
        %v754 = vunpack.c.l.b16 %v690
        %v755 = vunpack.c.l.b16 %v691
        %v756 = vunpack.c.l.b16 %v692
        %v757 = vunpack.c.l.b16 %v693
        %v758 = vunpack.c.l.b16 %v694
        %v759 = vunpack.c.l.b16 %v695
        %v760 = vunpack.c.l.b16 %v696
        %v761 = vunpack.c.l.b16 %v697
        %v762 = vunpack.c.l.b16 %v698
        %v763 = vunpack.c.l.b16 %v699
        %v764 = vunpack.c.l.b16 %v700
        %v765 = vunpack.c.l.b16 %v701
        %v766 = vunpack.c.l.b16 %v702
        %v767 = vunpack.c.l.b16 %v703
        %v768 = vunpack.c.l.b16 %v704
        %v769 = vunpack.c.l.b16 %v705
        %v770 = vunpack.c.l.b16 %v706
        %v771 = vunpack.c.l.b16 %v707
        %v772 = vunpack.c.l.b16 %v708
        %v773 = vunpack.c.l.b16 %v709
        %v774 = vunpack.c.l.b16 %v710
        %v775 = vunpack.c.l.b16 %v711
        %v776 = vunpack.c.l.b16 %v712
        %v777 = vunpack.c.l.b16 %v713
        %v778 = vpack.c.b16 %v747, %v746
        %v779 = vpack.c.b16 %v749, %v748
        %v780 = vpack.c.b16 %v751, %v750
        %v781 = vpack.c.b16 %v753, %v752
        %v782 = vpack.c.b16 %v755, %v754
        %v783 = vpack.c.b16 %v757, %v756
        %v784 = vpack.c.b16 %v759, %v758
        %v785 = vpack.c.b16 %v761, %v760
        %v786 = vpack.c.b16 %v763, %v762
        %v787 = vpack.c.b16 %v765, %v764
        %v788 = vpack.c.b16 %v767, %v766
        %v789 = vpack.c.b16 %v769, %v768
        %v790 = vpack.c.b16 %v771, %v770
        %v791 = vpack.c.b16 %v773, %v772
        %v792 = vpack.c.b16 %v775, %v774
        %v793 = vpack.c.b16 %v777, %v776
        %810 = vmatprep.subr.bf16.mxu0 0
        %811 = vmatpush1.bf16.msra.mxu0 %v778
        %812 = vmatprep.subr.bf16.mxu0 0
        %813 = vmatpush1.bf16.msra.mxu0 %v779
        %814 = vmatprep.subr.bf16.mxu0 0
        %815 = vmatpush1.bf16.msra.mxu0 %v780
        %816 = vmatprep.subr.bf16.mxu0 0
        %817 = vmatpush1.bf16.msra.mxu0 %v781
        %818 = vmatprep.subr.bf16.mxu0 0
        %819 = vmatpush1.bf16.msra.mxu0 %v782
        %820 = vmatprep.subr.bf16.mxu0 0
        %821 = vmatpush1.bf16.msra.mxu0 %v783
        %822 = vmatprep.subr.bf16.mxu0 0
        %823 = vmatpush1.bf16.msra.mxu0 %v784
        %824 = vmatprep.subr.bf16.mxu0 0
        %825 = vmatpush1.bf16.msra.mxu0 %v785
        %826 = vmatprep.subr.bf16.mxu0 0
        %827 = vmatpush1.bf16.msra.mxu0 %v786
        %828 = vmatprep.subr.bf16.mxu0 0
        %829 = vmatpush1.bf16.msra.mxu0 %v787
        %830 = vmatprep.subr.bf16.mxu0 0
        %831 = vmatpush1.bf16.msra.mxu0 %v788
        %832 = vmatprep.subr.bf16.mxu0 0
        %833 = vmatpush1.bf16.msra.mxu0 %v789
        %834 = vmatprep.subr.bf16.mxu0 0
        %835 = vmatpush1.bf16.msra.mxu0 %v790
        %836 = vmatprep.subr.bf16.mxu0 0
        %837 = vmatpush1.bf16.msra.mxu0 %v791
        %838 = vmatprep.subr.bf16.mxu0 0
        %839 = vmatpush1.bf16.msra.mxu0 %v792
        %840 = vmatprep.subr.bf16.mxu0 0
        %841 = vmatpush1.bf16.msra.mxu0 %v793
        %842 = vmatprep.mubr.bf16.mxu0 %v672
        %843 = vmatmul.mubr.bf16.gmra.mrb[0].mxu0 %v671
        %v844 = vpop.f32.mrb[0].mxu0
        %v845 = vadd.f32 0.0, %v844
        %v846 = vpop.f32.mrb[0].mxu0
        %v847 = vpop.f32.mrb[0].mxu0
        %v848 = vadd.f32 0.0, %v847
        %v849 = vpop.f32.mrb[0].mxu0
        %850 = vmatprep.mubr.bf16.mxu0 %v674
        %851 = vmatmul.mubr.bf16.gmra.mrb[0].mxu0 %v673
        %v852 = vpop.f32.mrb[0].mxu0
        %v853 = vadd.f32 0.0, %v852
        %v854 = vpop.f32.mrb[0].mxu0
        %v855 = vpop.f32.mrb[0].mxu0
        %v856 = vadd.f32 0.0, %v855
        %v857 = vpop.f32.mrb[0].mxu0
        %858 = vmatprep.mubr.bf16.mxu0 %v676
        %859 = vmatmul.mubr.bf16.gmra.mrb[0].mxu0 %v675
        %v860 = vpop.f32.mrb[0].mxu0
        %v861 = vadd.f32 0.0, %v860
        %v862 = vpop.f32.mrb[0].mxu0
        %v863 = vpop.f32.mrb[0].mxu0
        %v864 = vadd.f32 0.0, %v863
        %v865 = vpop.f32.mrb[0].mxu0
        %866 = vmatprep.mubr.bf16.mxu0 %v678
        %867 = vmatmul.mubr.bf16.gmra.mrb[0].mxu0 %v677
        %v868 = vpop.f32.mrb[0].mxu0
        %v869 = vadd.f32 0.0, %v868
        %v870 = vpop.f32.mrb[0].mxu0
        %v871 = vpop.f32.mrb[0].mxu0
        %v872 = vadd.f32 0.0, %v871
        %v873 = vpop.f32.mrb[0].mxu0
        %874 = vmatprep.mubr.bf16.mxu0 %v680
        %875 = vmatmul.mubr.bf16.gmra.mrb[0].mxu0 %v679
        %v876 = vpop.f32.mrb[0].mxu0
        %v877 = vadd.f32 0.0, %v876
        %v878 = vpop.f32.mrb[0].mxu0
        %v879 = vpop.f32.mrb[0].mxu0
        %v880 = vadd.f32 0.0, %v879
        %v881 = vpop.f32.mrb[0].mxu0
        %882 = vdwg.mxu0
        %v915 = vunpack.c.l.b16 %v628
        %v916 = vunpack.c.l.b16 %v629
        %v917 = vunpack.c.l.b16 %v630
        %v918 = vunpack.c.l.b16 %v631
        %v919 = vunpack.c.l.b16 %v632
        %v920 = vunpack.c.l.b16 %v633
        %v921 = vunpack.c.l.b16 %v634
        %v922 = vunpack.c.l.b16 %v635
        %v923 = vunpack.c.l.b16 %v636
        %v924 = vunpack.c.l.b16 %v637
        %v925 = vunpack.c.l.b16 %v638
        %v926 = vunpack.c.l.b16 %v639
        %v927 = vunpack.c.l.b16 %v640
        %v928 = vunpack.c.l.b16 %v641
        %v929 = vunpack.c.l.b16 %v642
        %v930 = vunpack.c.l.b16 %v643
        %v931 = vunpack.c.l.b16 %v644
        %v932 = vunpack.c.l.b16 %v645
        %v933 = vunpack.c.l.b16 %v646
        %v934 = vunpack.c.l.b16 %v647
        %v935 = vunpack.c.l.b16 %v648
        %v936 = vunpack.c.l.b16 %v649
        %v937 = vunpack.c.l.b16 %v650
        %v938 = vunpack.c.l.b16 %v651
        %v939 = vunpack.c.l.b16 %v652
        %v940 = vunpack.c.l.b16 %v653
        %v941 = vunpack.c.l.b16 %v654
        %v942 = vunpack.c.l.b16 %v655
        %v943 = vunpack.c.l.b16 %v656
        %v944 = vunpack.c.l.b16 %v657
        %v945 = vunpack.c.l.b16 %v658
        %v946 = vunpack.c.l.b16 %v659
        %v947 = vpack.c.b16 %v916, %v915
        %v948 = vpack.c.b16 %v918, %v917
        %v949 = vpack.c.b16 %v920, %v919
        %v950 = vpack.c.b16 %v922, %v921
        %v951 = vpack.c.b16 %v924, %v923
        %v952 = vpack.c.b16 %v926, %v925
        %v953 = vpack.c.b16 %v928, %v927
        %v954 = vpack.c.b16 %v930, %v929
        %v955 = vpack.c.b16 %v932, %v931
        %v956 = vpack.c.b16 %v934, %v933
        %v957 = vpack.c.b16 %v936, %v935
        %v958 = vpack.c.b16 %v938, %v937
        %v959 = vpack.c.b16 %v940, %v939
        %v960 = vpack.c.b16 %v942, %v941
        %v961 = vpack.c.b16 %v944, %v943
        %v962 = vpack.c.b16 %v946, %v945
        %979 = vmatprep.subr.bf16.mxu0 0
        %980 = vmatpush1.bf16.msra.mxu0 %v947
        %981 = vmatprep.subr.bf16.mxu0 0
        %982 = vmatpush1.bf16.msra.mxu0 %v948
        %983 = vmatprep.subr.bf16.mxu0 0
        %984 = vmatpush1.bf16.msra.mxu0 %v949
        %985 = vmatprep.subr.bf16.mxu0 0
        %986 = vmatpush1.bf16.msra.mxu0 %v950
        %987 = vmatprep.subr.bf16.mxu0 0
        %988 = vmatpush1.bf16.msra.mxu0 %v951
        %989 = vmatprep.subr.bf16.mxu0 0
        %990 = vmatpush1.bf16.msra.mxu0 %v952
        %991 = vmatprep.subr.bf16.mxu0 0
        %992 = vmatpush1.bf16.msra.mxu0 %v953
        %993 = vmatprep.subr.bf16.mxu0 0
        %994 = vmatpush1.bf16.msra.mxu0 %v954
        %995 = vmatprep.subr.bf16.mxu0 0
        %996 = vmatpush1.bf16.msra.mxu0 %v955
        %997 = vmatprep.subr.bf16.mxu0 0
        %998 = vmatpush1.bf16.msra.mxu0 %v956
        %999 = vmatprep.subr.bf16.mxu0 0
        %1000 = vmatpush1.bf16.msra.mxu0 %v957
        %1001 = vmatprep.subr.bf16.mxu0 0
        %1002 = vmatpush1.bf16.msra.mxu0 %v958
        %1003 = vmatprep.subr.bf16.mxu0 0
        %1004 = vmatpush1.bf16.msra.mxu0 %v959
        %1005 = vmatprep.subr.bf16.mxu0 0
        %1006 = vmatpush1.bf16.msra.mxu0 %v960
        %1007 = vmatprep.subr.bf16.mxu0 0
        %1008 = vmatpush1.bf16.msra.mxu0 %v961
        %1009 = vmatprep.subr.bf16.mxu0 0
        %1010 = vmatpush1.bf16.msra.mxu0 %v962
        %1011 = vmatprep.mubr.bf16.mxu0 %v619
        %1012 = vmatmul.mubr.bf16.gmra.mrb[0].mxu0 %v618
        %v1013 = vpop.f32.mrb[0].mxu0
        %v1014 = vadd.f32 %v845, %v1013
        %v1015 = vpop.f32.mrb[0].mxu0
        %v1016 = vpop.f32.mrb[0].mxu0
        %v1017 = vadd.f32 %v848, %v1016
        %v1018 = vpop.f32.mrb[0].mxu0
        %1019 = vmatprep.mubr.bf16.mxu0 %v621
        %1020 = vmatmul.mubr.bf16.gmra.mrb[0].mxu0 %v620
        %v1021 = vpop.f32.mrb[0].mxu0
        %v1022 = vadd.f32 %v853, %v1021
        %v1023 = vpop.f32.mrb[0].mxu0
        %v1024 = vpop.f32.mrb[0].mxu0
        %v1025 = vadd.f32 %v856, %v1024
        %v1026 = vpop.f32.mrb[0].mxu0
        %1027 = vmatprep.mubr.bf16.mxu0 %v623
        %1028 = vmatmul.mubr.bf16.gmra.mrb[0].mxu0 %v622
        %v1029 = vpop.f32.mrb[0].mxu0
        %v1030 = vadd.f32 %v861, %v1029
        %v1031 = vpop.f32.mrb[0].mxu0
        %v1032 = vpop.f32.mrb[0].mxu0
        %v1033 = vadd.f32 %v864, %v1032
        %v1034 = vpop.f32.mrb[0].mxu0
        %1035 = vmatprep.mubr.bf16.mxu0 %v625
        %1036 = vmatmul.mubr.bf16.gmra.mrb[0].mxu0 %v624
        %v1037 = vpop.f32.mrb[0].mxu0
        %v1038 = vadd.f32 %v869, %v1037
        %v1039 = vpop.f32.mrb[0].mxu0
        %v1040 = vpop.f32.mrb[0].mxu0
        %v1041 = vadd.f32 %v872, %v1040
        %v1042 = vpop.f32.mrb[0].mxu0
        %1043 = vmatprep.mubr.bf16.mxu0 %v627
        %1044 = vmatmul.mubr.bf16.gmra.mrb[0].mxu0 %v626
        %v1045 = vpop.f32.mrb[0].mxu0
        %v1046 = vadd.f32 %v877, %v1045
        %v1047 = vpop.f32.mrb[0].mxu0
        %v1048 = vpop.f32.mrb[0].mxu0
        %v1049 = vadd.f32 %v880, %v1048
        %v1050 = vpop.f32.mrb[0].mxu0
        %1051 = vdwg.mxu0
        %v1052 = vld [vmem:[%s237 + $0xb] sm:$0xff]
        %v1053 = vld [vmem:[%s237 + $0x13] sm:$0xff]
        %v1054 = vld [vmem:[%s237 + $0x1b] sm:$0xff]
        %v1055 = vld [vmem:[%s237 + $0x23] sm:$0xff]
        %v1056 = vld [vmem:[%s237 + $0x2b] sm:$0xff]
        %v1057 = vld [vmem:[%s237 + $0x33] sm:$0xff]
        %v1058 = vld [vmem:[%s237 + $0x3b] sm:$0xff]
        %v1059 = vld [vmem:[%s237 + $0x43] sm:$0xff]
        %v1060 = vld [vmem:[%s237 + $0x4b] sm:$0xff]
        %v1061 = vld [vmem:[%s237 + $0x53] sm:$0xff]
        %v1062 = vld [vmem:[%s237 + $0xc] sm:$0xff]
        %v1063 = vld [vmem:[%s237 + $0x14] sm:$0xff]
        %v1064 = vld [vmem:[%s237 + $0x1c] sm:$0xff]
        %v1065 = vld [vmem:[%s237 + $0x24] sm:$0xff]
        %v1066 = vld [vmem:[%s237 + $0x2c] sm:$0xff]
        %v1067 = vld [vmem:[%s237 + $0x34] sm:$0xff]
        %v1068 = vld [vmem:[%s237 + $0x3c] sm:$0xff]
        %v1069 = vld [vmem:[%s237 + $0x44] sm:$0xff]
        %v1070 = vld [vmem:[%s237 + $0x4c] sm:$0xff]
        %v1071 = vld [vmem:[%s237 + $0x54] sm:$0xff]
        %v1072 = vpack.c.bf16 %v1053, %v1052
        %v1073 = vpack.c.bf16 %v1063, %v1062
        %v1074 = vpack.c.bf16 %v1055, %v1054
        %v1075 = vpack.c.bf16 %v1065, %v1064
        %v1076 = vpack.c.bf16 %v1057, %v1056
        %v1077 = vpack.c.bf16 %v1067, %v1066
        %v1078 = vpack.c.bf16 %v1059, %v1058
        %v1079 = vpack.c.bf16 %v1069, %v1068
        %v1080 = vpack.c.bf16 %v1061, %v1060
        %v1081 = vpack.c.bf16 %v1071, %v1070
        %s1082 = scalar_lea.vmem [#allocation6], 256
        %v1083 = vld [vmem:[%s1082] sm:$0xf]
        %v1084 = vld [vmem:[%s1082 + $0x4] sm:$0xf]
        %v1085 = vld [vmem:[%s1082 + $0x8] sm:$0xf]
        %v1086 = vld [vmem:[%s1082 + $0xc] sm:$0xf]
        %v1087 = vld [vmem:[%s1082 + $0x10] sm:$0xf]
        %v1088 = vld [vmem:[%s1082 + $0x14] sm:$0xf]
        %v1089 = vld [vmem:[%s1082 + $0x18] sm:$0xf]
        %v1090 = vld [vmem:[%s1082 + $0x1c] sm:$0xf]
        %v1091 = vld [vmem:[%s1082 + $0x20] sm:$0xf]
        %v1092 = vld [vmem:[%s1082 + $0x24] sm:$0xf]
        %v1093 = vld [vmem:[%s1082 + $0x28] sm:$0xf]
        %v1094 = vld [vmem:[%s1082 + $0x2c] sm:$0xf]
        %v1095 = vld [vmem:[%s1082 + $0x30] sm:$0xf]
        %v1096 = vld [vmem:[%s1082 + $0x34] sm:$0xf]
        %v1097 = vld [vmem:[%s1082 + $0x38] sm:$0xf]
        %v1098 = vld [vmem:[%s1082 + $0x3c] sm:$0xf]
        %v1099 = vld [vmem:[%s1082 + $0x40] sm:$0xf]
        %v1100 = vld [vmem:[%s1082 + $0x44] sm:$0xf]
        %v1101 = vld [vmem:[%s1082 + $0x48] sm:$0xf]
        %v1102 = vld [vmem:[%s1082 + $0x4c] sm:$0xf]
        %v1103 = vld [vmem:[%s1082 + $0x50] sm:$0xf]
        %v1104 = vld [vmem:[%s1082 + $0x54] sm:$0xf]
        %v1105 = vld [vmem:[%s1082 + $0x58] sm:$0xf]
        %v1106 = vld [vmem:[%s1082 + $0x5c] sm:$0xf]
        %v1107 = vld [vmem:[%s1082 + $0x60] sm:$0xf]
        %v1108 = vld [vmem:[%s1082 + $0x64] sm:$0xf]
        %v1109 = vld [vmem:[%s1082 + $0x68] sm:$0xf]
        %v1110 = vld [vmem:[%s1082 + $0x6c] sm:$0xf]
        %v1111 = vld [vmem:[%s1082 + $0x70] sm:$0xf]
        %v1112 = vld [vmem:[%s1082 + $0x74] sm:$0xf]
        %v1113 = vld [vmem:[%s1082 + $0x78] sm:$0xf]
        %v1114 = vld [vmem:[%s1082 + $0x7c] sm:$0xf]
        %v1147 = vunpack.c.l.b16 %v1083
        %v1148 = vunpack.c.l.b16 %v1084
        %v1149 = vunpack.c.l.b16 %v1085
        %v1150 = vunpack.c.l.b16 %v1086
        %v1151 = vunpack.c.l.b16 %v1087
        %v1152 = vunpack.c.l.b16 %v1088
        %v1153 = vunpack.c.l.b16 %v1089
        %v1154 = vunpack.c.l.b16 %v1090
        %v1155 = vunpack.c.l.b16 %v1091
        %v1156 = vunpack.c.l.b16 %v1092
        %v1157 = vunpack.c.l.b16 %v1093
        %v1158 = vunpack.c.l.b16 %v1094
        %v1159 = vunpack.c.l.b16 %v1095
        %v1160 = vunpack.c.l.b16 %v1096
        %v1161 = vunpack.c.l.b16 %v1097
        %v1162 = vunpack.c.l.b16 %v1098
        %v1163 = vunpack.c.l.b16 %v1099
        %v1164 = vunpack.c.l.b16 %v1100
        %v1165 = vunpack.c.l.b16 %v1101
        %v1166 = vunpack.c.l.b16 %v1102
        %v1167 = vunpack.c.l.b16 %v1103
        %v1168 = vunpack.c.l.b16 %v1104
        %v1169 = vunpack.c.l.b16 %v1105
        %v1170 = vunpack.c.l.b16 %v1106
        %v1171 = vunpack.c.l.b16 %v1107
        %v1172 = vunpack.c.l.b16 %v1108
        %v1173 = vunpack.c.l.b16 %v1109
        %v1174 = vunpack.c.l.b16 %v1110
        %v1175 = vunpack.c.l.b16 %v1111
        %v1176 = vunpack.c.l.b16 %v1112
        %v1177 = vunpack.c.l.b16 %v1113
        %v1178 = vunpack.c.l.b16 %v1114
        %v1179 = vpack.c.b16 %v1148, %v1147
        %v1180 = vpack.c.b16 %v1150, %v1149
        %v1181 = vpack.c.b16 %v1152, %v1151
        %v1182 = vpack.c.b16 %v1154, %v1153
        %v1183 = vpack.c.b16 %v1156, %v1155
        %v1184 = vpack.c.b16 %v1158, %v1157
        %v1185 = vpack.c.b16 %v1160, %v1159
        %v1186 = vpack.c.b16 %v1162, %v1161
        %v1187 = vpack.c.b16 %v1164, %v1163
        %v1188 = vpack.c.b16 %v1166, %v1165
        %v1189 = vpack.c.b16 %v1168, %v1167
        %v1190 = vpack.c.b16 %v1170, %v1169
        %v1191 = vpack.c.b16 %v1172, %v1171
        %v1192 = vpack.c.b16 %v1174, %v1173
        %v1193 = vpack.c.b16 %v1176, %v1175
        %v1194 = vpack.c.b16 %v1178, %v1177
        %1211 = vmatprep.subr.bf16.mxu0 0
        %1212 = vmatpush1.bf16.msra.mxu0 %v1179
        %1213 = vmatprep.subr.bf16.mxu0 0
        %1214 = vmatpush1.bf16.msra.mxu0 %v1180
        %1215 = vmatprep.subr.bf16.mxu0 0
        %1216 = vmatpush1.bf16.msra.mxu0 %v1181
        %1217 = vmatprep.subr.bf16.mxu0 0
        %1218 = vmatpush1.bf16.msra.mxu0 %v1182
        %1219 = vmatprep.subr.bf16.mxu0 0
        %1220 = vmatpush1.bf16.msra.mxu0 %v1183
        %1221 = vmatprep.subr.bf16.mxu0 0
        %1222 = vmatpush1.bf16.msra.mxu0 %v1184
        %1223 = vmatprep.subr.bf16.mxu0 0
        %1224 = vmatpush1.bf16.msra.mxu0 %v1185
        %1225 = vmatprep.subr.bf16.mxu0 0
        %1226 = vmatpush1.bf16.msra.mxu0 %v1186
        %1227 = vmatprep.subr.bf16.mxu0 0
        %1228 = vmatpush1.bf16.msra.mxu0 %v1187
        %1229 = vmatprep.subr.bf16.mxu0 0
        %1230 = vmatpush1.bf16.msra.mxu0 %v1188
        %1231 = vmatprep.subr.bf16.mxu0 0
        %1232 = vmatpush1.bf16.msra.mxu0 %v1189
        %1233 = vmatprep.subr.bf16.mxu0 0
        %1234 = vmatpush1.bf16.msra.mxu0 %v1190
        %1235 = vmatprep.subr.bf16.mxu0 0
        %1236 = vmatpush1.bf16.msra.mxu0 %v1191
        %1237 = vmatprep.subr.bf16.mxu0 0
        %1238 = vmatpush1.bf16.msra.mxu0 %v1192
        %1239 = vmatprep.subr.bf16.mxu0 0
        %1240 = vmatpush1.bf16.msra.mxu0 %v1193
        %1241 = vmatprep.subr.bf16.mxu0 0
        %1242 = vmatpush1.bf16.msra.mxu0 %v1194
        %1243 = vmatprep.mubr.bf16.mxu0 %v1073
        %1244 = vmatmul.mubr.bf16.gmra.mrb[0].mxu0 %v1072
        %v1245 = vpop.f32.mrb[0].mxu0
        %v1246 = vadd.f32 0.0, %v1245
        %v1247 = vpop.f32.mrb[0].mxu0
        %v1248 = vpop.f32.mrb[0].mxu0
        %v1249 = vadd.f32 0.0, %v1248
        %v1250 = vpop.f32.mrb[0].mxu0
        %1251 = vmatprep.mubr.bf16.mxu0 %v1075
        %1252 = vmatmul.mubr.bf16.gmra.mrb[0].mxu0 %v1074
        %v1253 = vpop.f32.mrb[0].mxu0
        %v1254 = vadd.f32 0.0, %v1253
        %v1255 = vpop.f32.mrb[0].mxu0
        %v1256 = vpop.f32.mrb[0].mxu0
        %v1257 = vadd.f32 0.0, %v1256
        %v1258 = vpop.f32.mrb[0].mxu0
        %1259 = vmatprep.mubr.bf16.mxu0 %v1077
        %1260 = vmatmul.mubr.bf16.gmra.mrb[0].mxu0 %v1076
        %v1261 = vpop.f32.mrb[0].mxu0
        %v1262 = vadd.f32 0.0, %v1261
        %v1263 = vpop.f32.mrb[0].mxu0
        %v1264 = vpop.f32.mrb[0].mxu0
        %v1265 = vadd.f32 0.0, %v1264
        %v1266 = vpop.f32.mrb[0].mxu0
        %1267 = vmatprep.mubr.bf16.mxu0 %v1079
        %1268 = vmatmul.mubr.bf16.gmra.mrb[0].mxu0 %v1078
        %v1269 = vpop.f32.mrb[0].mxu0
        %v1270 = vadd.f32 0.0, %v1269
        %v1271 = vpop.f32.mrb[0].mxu0
        %v1272 = vpop.f32.mrb[0].mxu0
        %v1273 = vadd.f32 0.0, %v1272
        %v1274 = vpop.f32.mrb[0].mxu0
        %1275 = vmatprep.mubr.bf16.mxu0 %v1081
        %1276 = vmatmul.mubr.bf16.gmra.mrb[0].mxu0 %v1080
        %v1277 = vpop.f32.mrb[0].mxu0
        %v1278 = vadd.f32 0.0, %v1277
        %v1279 = vpop.f32.mrb[0].mxu0
        %v1280 = vpop.f32.mrb[0].mxu0
        %v1281 = vadd.f32 0.0, %v1280
        %v1282 = vpop.f32.mrb[0].mxu0
        %1283 = vdwg.mxu0
        %v1284 = vadd.f32 %v1014, %v1246
        %v1285 = vadd.f32 %v1017, %v1249
        %v1286 = vadd.f32 %v1022, %v1254
        %v1287 = vadd.f32 %v1025, %v1257
        %v1288 = vadd.f32 %v1030, %v1262
        %v1289 = vadd.f32 %v1033, %v1265
        %v1290 = vadd.f32 %v1038, %v1270
        %v1291 = vadd.f32 %v1041, %v1273
        %v1292 = vadd.f32 %v1046, %v1278
        %v1293 = vadd.f32 %v1049, %v1281
        %v1294 = vld [vmem:[%s237 + $0x14] sm:$0xff]
        %v1295 = vld [vmem:[%s237 + $0x1c] sm:$0xff]
        %v1296 = vld [vmem:[%s237 + $0x24] sm:$0xff]
        %v1297 = vld [vmem:[%s237 + $0x2c] sm:$0xff]
        %v1298 = vld [vmem:[%s237 + $0x34] sm:$0xff]
        %v1299 = vld [vmem:[%s237 + $0x3c] sm:$0xff]
        %v1300 = vld [vmem:[%s237 + $0x44] sm:$0xff]
        %v1301 = vld [vmem:[%s237 + $0x4c] sm:$0xff]
        %v1302 = vld [vmem:[%s237 + $0x54] sm:$0xff]
        %v1303 = vld [vmem:[%s237 + $0x5c] sm:$0xff]
        %v1304 = vld [vmem:[%s237 + $0x15] sm:$0xff]
        %v1305 = vld [vmem:[%s237 + $0x1d] sm:$0xff]
        %v1306 = vld [vmem:[%s237 + $0x25] sm:$0xff]
        %v1307 = vld [vmem:[%s237 + $0x2d] sm:$0xff]
        %v1308 = vld [vmem:[%s237 + $0x35] sm:$0xff]
        %v1309 = vld [vmem:[%s237 + $0x3d] sm:$0xff]
        %v1310 = vld [vmem:[%s237 + $0x45] sm:$0xff]
        %v1311 = vld [vmem:[%s237 + $0x4d] sm:$0xff]
        %v1312 = vld [vmem:[%s237 + $0x55] sm:$0xff]
        %v1313 = vld [vmem:[%s237 + $0x5d] sm:$0xff]
        %v1314 = vpack.c.bf16 %v1295, %v1294
        %v1315 = vpack.c.bf16 %v1305, %v1304
        %v1316 = vpack.c.bf16 %v1297, %v1296
        %v1317 = vpack.c.bf16 %v1307, %v1306
        %v1318 = vpack.c.bf16 %v1299, %v1298
        %v1319 = vpack.c.bf16 %v1309, %v1308
        %v1320 = vpack.c.bf16 %v1301, %v1300
        %v1321 = vpack.c.bf16 %v1311, %v1310
        %v1322 = vpack.c.bf16 %v1303, %v1302
        %v1323 = vpack.c.bf16 %v1313, %v1312
        %s1324 = scalar_lea.vmem [#allocation6], 384
        %v1325 = vld [vmem:[%s1324] sm:$0xf]
        %v1326 = vld [vmem:[%s1324 + $0x4] sm:$0xf]
        %v1327 = vld [vmem:[%s1324 + $0x8] sm:$0xf]
        %v1328 = vld [vmem:[%s1324 + $0xc] sm:$0xf]
        %v1329 = vld [vmem:[%s1324 + $0x10] sm:$0xf]
        %v1330 = vld [vmem:[%s1324 + $0x14] sm:$0xf]
        %v1331 = vld [vmem:[%s1324 + $0x18] sm:$0xf]
        %v1332 = vld [vmem:[%s1324 + $0x1c] sm:$0xf]
        %v1333 = vld [vmem:[%s1324 + $0x20] sm:$0xf]
        %v1334 = vld [vmem:[%s1324 + $0x24] sm:$0xf]
        %v1335 = vld [vmem:[%s1324 + $0x28] sm:$0xf]
        %v1336 = vld [vmem:[%s1324 + $0x2c] sm:$0xf]
        %v1337 = vld [vmem:[%s1324 + $0x30] sm:$0xf]
        %v1338 = vld [vmem:[%s1324 + $0x34] sm:$0xf]
        %v1339 = vld [vmem:[%s1324 + $0x38] sm:$0xf]
        %v1340 = vld [vmem:[%s1324 + $0x3c] sm:$0xf]
        %v1341 = vld [vmem:[%s1324 + $0x40] sm:$0xf]
        %v1342 = vld [vmem:[%s1324 + $0x44] sm:$0xf]
        %v1343 = vld [vmem:[%s1324 + $0x48] sm:$0xf]
        %v1344 = vld [vmem:[%s1324 + $0x4c] sm:$0xf]
        %v1345 = vld [vmem:[%s1324 + $0x50] sm:$0xf]
        %v1346 = vld [vmem:[%s1324 + $0x54] sm:$0xf]
        %v1347 = vld [vmem:[%s1324 + $0x58] sm:$0xf]
        %v1348 = vld [vmem:[%s1324 + $0x5c] sm:$0xf]
        %v1349 = vld [vmem:[%s1324 + $0x60] sm:$0xf]
        %v1350 = vld [vmem:[%s1324 + $0x64] sm:$0xf]
        %v1351 = vld [vmem:[%s1324 + $0x68] sm:$0xf]
        %v1352 = vld [vmem:[%s1324 + $0x6c] sm:$0xf]
        %v1353 = vld [vmem:[%s1324 + $0x70] sm:$0xf]
        %v1354 = vld [vmem:[%s1324 + $0x74] sm:$0xf]
        %v1355 = vld [vmem:[%s1324 + $0x78] sm:$0xf]
        %v1356 = vld [vmem:[%s1324 + $0x7c] sm:$0xf]
        %v1389 = vunpack.c.l.b16 %v1325
        %v1390 = vunpack.c.l.b16 %v1326
        %v1391 = vunpack.c.l.b16 %v1327
        %v1392 = vunpack.c.l.b16 %v1328
        %v1393 = vunpack.c.l.b16 %v1329
        %v1394 = vunpack.c.l.b16 %v1330
        %v1395 = vunpack.c.l.b16 %v1331
        %v1396 = vunpack.c.l.b16 %v1332
        %v1397 = vunpack.c.l.b16 %v1333
        %v1398 = vunpack.c.l.b16 %v1334
        %v1399 = vunpack.c.l.b16 %v1335
        %v1400 = vunpack.c.l.b16 %v1336
        %v1401 = vunpack.c.l.b16 %v1337
        %v1402 = vunpack.c.l.b16 %v1338
        %v1403 = vunpack.c.l.b16 %v1339
        %v1404 = vunpack.c.l.b16 %v1340
        %v1405 = vunpack.c.l.b16 %v1341
        %v1406 = vunpack.c.l.b16 %v1342
        %v1407 = vunpack.c.l.b16 %v1343
        %v1408 = vunpack.c.l.b16 %v1344
        %v1409 = vunpack.c.l.b16 %v1345
        %v1410 = vunpack.c.l.b16 %v1346
        %v1411 = vunpack.c.l.b16 %v1347
        %v1412 = vunpack.c.l.b16 %v1348
        %v1413 = vunpack.c.l.b16 %v1349
        %v1414 = vunpack.c.l.b16 %v1350
        %v1415 = vunpack.c.l.b16 %v1351
        %v1416 = vunpack.c.l.b16 %v1352
        %v1417 = vunpack.c.l.b16 %v1353
        %v1418 = vunpack.c.l.b16 %v1354
        %v1419 = vunpack.c.l.b16 %v1355
        %v1420 = vunpack.c.l.b16 %v1356
        %v1421 = vpack.c.b16 %v1390, %v1389
        %v1422 = vpack.c.b16 %v1392, %v1391
        %v1423 = vpack.c.b16 %v1394, %v1393
        %v1424 = vpack.c.b16 %v1396, %v1395
        %v1425 = vpack.c.b16 %v1398, %v1397
        %v1426 = vpack.c.b16 %v1400, %v1399
        %v1427 = vpack.c.b16 %v1402, %v1401
        %v1428 = vpack.c.b16 %v1404, %v1403
        %v1429 = vpack.c.b16 %v1406, %v1405
        %v1430 = vpack.c.b16 %v1408, %v1407
        %v1431 = vpack.c.b16 %v1410, %v1409
        %v1432 = vpack.c.b16 %v1412, %v1411
        %v1433 = vpack.c.b16 %v1414, %v1413
        %v1434 = vpack.c.b16 %v1416, %v1415
        %v1435 = vpack.c.b16 %v1418, %v1417
        %v1436 = vpack.c.b16 %v1420, %v1419
        %1453 = vmatprep.subr.bf16.mxu0 0
        %1454 = vmatpush1.bf16.msra.mxu0 %v1421
        %1455 = vmatprep.subr.bf16.mxu0 0
        %1456 = vmatpush1.bf16.msra.mxu0 %v1422
        %1457 = vmatprep.subr.bf16.mxu0 0
        %1458 = vmatpush1.bf16.msra.mxu0 %v1423
        %1459 = vmatprep.subr.bf16.mxu0 0
        %1460 = vmatpush1.bf16.msra.mxu0 %v1424
        %1461 = vmatprep.subr.bf16.mxu0 0
        %1462 = vmatpush1.bf16.msra.mxu0 %v1425
        %1463 = vmatprep.subr.bf16.mxu0 0
        %1464 = vmatpush1.bf16.msra.mxu0 %v1426
        %1465 = vmatprep.subr.bf16.mxu0 0
        %1466 = vmatpush1.bf16.msra.mxu0 %v1427
        %1467 = vmatprep.subr.bf16.mxu0 0
        %1468 = vmatpush1.bf16.msra.mxu0 %v1428
        %1469 = vmatprep.subr.bf16.mxu0 0
        %1470 = vmatpush1.bf16.msra.mxu0 %v1429
        %1471 = vmatprep.subr.bf16.mxu0 0
        %1472 = vmatpush1.bf16.msra.mxu0 %v1430
        %1473 = vmatprep.subr.bf16.mxu0 0
        %1474 = vmatpush1.bf16.msra.mxu0 %v1431
        %1475 = vmatprep.subr.bf16.mxu0 0
        %1476 = vmatpush1.bf16.msra.mxu0 %v1432
        %1477 = vmatprep.subr.bf16.mxu0 0
        %1478 = vmatpush1.bf16.msra.mxu0 %v1433
        %1479 = vmatprep.subr.bf16.mxu0 0
        %1480 = vmatpush1.bf16.msra.mxu0 %v1434
        %1481 = vmatprep.subr.bf16.mxu0 0
        %1482 = vmatpush1.bf16.msra.mxu0 %v1435
        %1483 = vmatprep.subr.bf16.mxu0 0
        %1484 = vmatpush1.bf16.msra.mxu0 %v1436
        %1485 = vmatprep.mubr.bf16.mxu0 %v1315
        %1486 = vmatmul.mubr.bf16.gmra.mrb[0].mxu0 %v1314
        %v1487 = vpop.f32.mrb[0].mxu0
        %v1488 = vadd.f32 0.0, %v1487
        %v1489 = vpop.f32.mrb[0].mxu0
        %v1490 = vpop.f32.mrb[0].mxu0
        %v1491 = vadd.f32 0.0, %v1490
        %v1492 = vpop.f32.mrb[0].mxu0
        %1493 = vmatprep.mubr.bf16.mxu0 %v1317
        %1494 = vmatmul.mubr.bf16.gmra.mrb[0].mxu0 %v1316
        %v1495 = vpop.f32.mrb[0].mxu0
        %v1496 = vadd.f32 0.0, %v1495
        %v1497 = vpop.f32.mrb[0].mxu0
        %v1498 = vpop.f32.mrb[0].mxu0
        %v1499 = vadd.f32 0.0, %v1498
        %v1500 = vpop.f32.mrb[0].mxu0
        %1501 = vmatprep.mubr.bf16.mxu0 %v1319
        %1502 = vmatmul.mubr.bf16.gmra.mrb[0].mxu0 %v1318
        %v1503 = vpop.f32.mrb[0].mxu0
        %v1504 = vadd.f32 0.0, %v1503
        %v1505 = vpop.f32.mrb[0].mxu0
        %v1506 = vpop.f32.mrb[0].mxu0
        %v1507 = vadd.f32 0.0, %v1506
        %v1508 = vpop.f32.mrb[0].mxu0
        %1509 = vmatprep.mubr.bf16.mxu0 %v1321
        %1510 = vmatmul.mubr.bf16.gmra.mrb[0].mxu0 %v1320
        %v1511 = vpop.f32.mrb[0].mxu0
        %v1512 = vadd.f32 0.0, %v1511
        %v1513 = vpop.f32.mrb[0].mxu0
        %v1514 = vpop.f32.mrb[0].mxu0
        %v1515 = vadd.f32 0.0, %v1514
        %v1516 = vpop.f32.mrb[0].mxu0
        %1517 = vmatprep.mubr.bf16.mxu0 %v1323
        %1518 = vmatmul.mubr.bf16.gmra.mrb[0].mxu0 %v1322
        %v1519 = vpop.f32.mrb[0].mxu0
        %v1520 = vadd.f32 0.0, %v1519
        %v1521 = vpop.f32.mrb[0].mxu0
        %v1522 = vpop.f32.mrb[0].mxu0
        %v1523 = vadd.f32 0.0, %v1522
        %v1524 = vpop.f32.mrb[0].mxu0
        %1525 = vdwg.mxu0
        %v1526 = vadd.f32 %v1284, %v1488
        %v1527 = vadd.f32 %v1285, %v1491
        %v1528 = vadd.f32 %v1286, %v1496
        %v1529 = vadd.f32 %v1287, %v1499
        %v1530 = vadd.f32 %v1288, %v1504
        %v1531 = vadd.f32 %v1289, %v1507
        %v1532 = vadd.f32 %v1290, %v1512
        %v1533 = vadd.f32 %v1291, %v1515
        %v1534 = vadd.f32 %v1292, %v1520
        %v1535 = vadd.f32 %v1293, %v1523
        %v1536 = vld [vmem:[%s237 + $0x16] sm:$0xff]
        %v1537 = vld [vmem:[%s237 + $0x1e] sm:$0xff]
        %v1538 = vld [vmem:[%s237 + $0x26] sm:$0xff]
        %v1539 = vld [vmem:[%s237 + $0x2e] sm:$0xff]
        %v1540 = vld [vmem:[%s237 + $0x36] sm:$0xff]
        %v1541 = vld [vmem:[%s237 + $0x3e] sm:$0xff]
        %v1542 = vld [vmem:[%s237 + $0x46] sm:$0xff]
        %v1543 = vld [vmem:[%s237 + $0x4e] sm:$0xff]
        %v1544 = vld [vmem:[%s237 + $0x56] sm:$0xff]
        %v1545 = vld [vmem:[%s237 + $0x5e] sm:$0xff]
        %v1546 = vpack.c.bf16 %v1537, %v1536
        %v1547 = vpack.c.bf16 %v1539, %v1538
        %v1548 = vpack.c.bf16 %v1541, %v1540
        %v1549 = vpack.c.bf16 %v1543, %v1542
        %v1550 = vpack.c.bf16 %v1545, %v1544
        %s1551 = scalar_lea.vmem [#allocation6], 512
        %v1552 = vld [vmem:[%s1551] sm:$0xf]
        %v1553 = vld [vmem:[%s1551 + $0x4] sm:$0xf]
        %v1554 = vld [vmem:[%s1551 + $0x8] sm:$0xf]
        %v1555 = vld [vmem:[%s1551 + $0xc] sm:$0xf]
        %v1556 = vld [vmem:[%s1551 + $0x10] sm:$0xf]
        %v1557 = vld [vmem:[%s1551 + $0x14] sm:$0xf]
        %v1558 = vld [vmem:[%s1551 + $0x18] sm:$0xf]
        %v1559 = vld [vmem:[%s1551 + $0x1c] sm:$0xf]
        %v1560 = vld [vmem:[%s1551 + $0x20] sm:$0xf]
        %v1561 = vld [vmem:[%s1551 + $0x24] sm:$0xf]
        %v1562 = vld [vmem:[%s1551 + $0x28] sm:$0xf]
        %v1563 = vld [vmem:[%s1551 + $0x2c] sm:$0xf]
        %v1564 = vld [vmem:[%s1551 + $0x30] sm:$0xf]
        %v1565 = vld [vmem:[%s1551 + $0x34] sm:$0xf]
        %v1566 = vld [vmem:[%s1551 + $0x38] sm:$0xf]
        %v1567 = vld [vmem:[%s1551 + $0x3c] sm:$0xf]
        %v1584 = vunpack.c.l.b16 %v1552
        %v1585 = vunpack.c.l.b16 %v1553
        %v1586 = vunpack.c.l.b16 %v1554
        %v1587 = vunpack.c.l.b16 %v1555
        %v1588 = vunpack.c.l.b16 %v1556
        %v1589 = vunpack.c.l.b16 %v1557
        %v1590 = vunpack.c.l.b16 %v1558
        %v1591 = vunpack.c.l.b16 %v1559
        %v1592 = vunpack.c.l.b16 %v1560
        %v1593 = vunpack.c.l.b16 %v1561
        %v1594 = vunpack.c.l.b16 %v1562
        %v1595 = vunpack.c.l.b16 %v1563
        %v1596 = vunpack.c.l.b16 %v1564
        %v1597 = vunpack.c.l.b16 %v1565
        %v1598 = vunpack.c.l.b16 %v1566
        %v1599 = vunpack.c.l.b16 %v1567
        %v1600 = vpack.c.b16 %v1585, %v1584
        %v1601 = vpack.c.b16 %v1587, %v1586
        %v1602 = vpack.c.b16 %v1589, %v1588
        %v1603 = vpack.c.b16 %v1591, %v1590
        %v1604 = vpack.c.b16 %v1593, %v1592
        %v1605 = vpack.c.b16 %v1595, %v1594
        %v1606 = vpack.c.b16 %v1597, %v1596
        %v1607 = vpack.c.b16 %v1599, %v1598
        %1616 = vmatprep.subr.bf16.mxu0 0
        %1617 = vmatpush1.bf16.msra.mxu0 %v1600
        %1618 = vmatprep.subr.bf16.mxu0 0
        %1619 = vmatpush1.bf16.msra.mxu0 %v1601
        %1620 = vmatprep.subr.bf16.mxu0 0
        %1621 = vmatpush1.bf16.msra.mxu0 %v1602
        %1622 = vmatprep.subr.bf16.mxu0 0
        %1623 = vmatpush1.bf16.msra.mxu0 %v1603
        %1624 = vmatprep.subr.bf16.mxu0 0
        %1625 = vmatpush1.bf16.msra.mxu0 %v1604
        %1626 = vmatprep.subr.bf16.mxu0 0
        %1627 = vmatpush1.bf16.msra.mxu0 %v1605
        %1628 = vmatprep.subr.bf16.mxu0 0
        %1629 = vmatpush1.bf16.msra.mxu0 %v1606
        %1630 = vmatprep.subr.bf16.mxu0 0
        %1631 = vmatpush1.bf16.msra.mxu0 %v1607
        %1632 = vmatprep.subr.bf16.mxu0 0
        %1633 = vmatpush1.bf16.msra.mxu0 0
        %1634 = vmatprep.subr.bf16.mxu0 0
        %1635 = vmatpush1.bf16.msra.mxu0 0
        %1636 = vmatprep.subr.bf16.mxu0 0
        %1637 = vmatpush1.bf16.msra.mxu0 0
        %1638 = vmatprep.subr.bf16.mxu0 0
        %1639 = vmatpush1.bf16.msra.mxu0 0
        %1640 = vmatprep.subr.bf16.mxu0 0
        %1641 = vmatpush1.bf16.msra.mxu0 0
        %1642 = vmatprep.subr.bf16.mxu0 0
        %1643 = vmatpush1.bf16.msra.mxu0 0
        %1644 = vmatprep.subr.bf16.mxu0 0
        %1645 = vmatpush1.bf16.msra.mxu0 0
        %1646 = vmatprep.subr.bf16.mxu0 0
        %1647 = vmatpush1.bf16.msra.mxu0 0
        %1648 = vmatprep.mubr.bf16.mxu0 0
        %1649 = vmatmul.mubr.bf16.gmra.mrb[0].mxu0 %v1546
        %v1650 = vpop.f32.mrb[0].mxu0
        %v1651 = vadd.f32 0.0, %v1650
        %v1652 = vpop.f32.mrb[0].mxu0
        %v1653 = vpop.f32.mrb[0].mxu0
        %v1654 = vadd.f32 0.0, %v1653
        %v1655 = vpop.f32.mrb[0].mxu0
        %1656 = vmatprep.mubr.bf16.mxu0 0
        %1657 = vmatmul.mubr.bf16.gmra.mrb[0].mxu0 %v1547
        %v1658 = vpop.f32.mrb[0].mxu0
        %v1659 = vadd.f32 0.0, %v1658
        %v1660 = vpop.f32.mrb[0].mxu0
        %v1661 = vpop.f32.mrb[0].mxu0
        %v1662 = vadd.f32 0.0, %v1661
        %v1663 = vpop.f32.mrb[0].mxu0
        %1664 = vmatprep.mubr.bf16.mxu0 0
        %1665 = vmatmul.mubr.bf16.gmra.mrb[0].mxu0 %v1548
        %v1666 = vpop.f32.mrb[0].mxu0
        %v1667 = vadd.f32 0.0, %v1666
        %v1668 = vpop.f32.mrb[0].mxu0
        %v1669 = vpop.f32.mrb[0].mxu0
        %v1670 = vadd.f32 0.0, %v1669
        %v1671 = vpop.f32.mrb[0].mxu0
        %1672 = vmatprep.mubr.bf16.mxu0 0
        %1673 = vmatmul.mubr.bf16.gmra.mrb[0].mxu0 %v1549
        %v1674 = vpop.f32.mrb[0].mxu0
        %v1675 = vadd.f32 0.0, %v1674
        %v1676 = vpop.f32.mrb[0].mxu0
        %v1677 = vpop.f32.mrb[0].mxu0
        %v1678 = vadd.f32 0.0, %v1677
        %v1679 = vpop.f32.mrb[0].mxu0
        %1680 = vmatprep.mubr.bf16.mxu0 0
        %1681 = vmatmul.mubr.bf16.gmra.mrb[0].mxu0 %v1550
        %v1682 = vpop.f32.mrb[0].mxu0
        %v1683 = vadd.f32 0.0, %v1682
        %v1684 = vpop.f32.mrb[0].mxu0
        %v1685 = vpop.f32.mrb[0].mxu0
        %v1686 = vadd.f32 0.0, %v1685
        %v1687 = vpop.f32.mrb[0].mxu0
        %1688 = vdwg.mxu0
        %v1689 = vadd.f32 %v1526, %v1651
        %v1690 = vadd.f32 %v1527, %v1654
        %v1691 = vadd.f32 %v1528, %v1659
        %v1692 = vadd.f32 %v1529, %v1662
        %v1693 = vadd.f32 %v1530, %v1667
        %v1694 = vadd.f32 %v1531, %v1670
        %v1695 = vadd.f32 %v1532, %v1675
        %v1696 = vadd.f32 %v1533, %v1678
        %v1697 = vadd.f32 %v1534, %v1683
        %v1698 = vadd.f32 %v1535, %v1686
        %v1699 = vld [vmem:[%s2] sm:$0x1]
        %v1701 = vlaneseq
        %v1702 = vshrl.u32 %v1701, 7
        %v1703 = vsub.s32 0, %v1702
        %v1704 = vrot.slane %v1699, %v1703
        %v1706 = vadd.f32 %v1689, %v1704
        %v1707 = vadd.f32 %v1690, %v1704
        %v1708 = vadd.f32 %v1691, %v1704
        %v1709 = vadd.f32 %v1692, %v1704
        %v1710 = vadd.f32 %v1693, %v1704
        %v1711 = vadd.f32 %v1694, %v1704
        %v1712 = vadd.f32 %v1695, %v1704
        %v1713 = vadd.f32 %v1696, %v1704
        %v1714 = vadd.f32 %v1697, %v1704
        %v1715 = vadd.f32 %v1698, %v1704
        %v1716 = vmax.f32 %v1706, 0.0
        %v1717 = vmax.f32 %v1707, 0.0
        %v1718 = vmax.f32 %v1708, 0.0
        %v1719 = vmax.f32 %v1709, 0.0
        %v1720 = vmax.f32 %v1710, 0.0
        %v1721 = vmax.f32 %v1711, 0.0
        %v1722 = vmax.f32 %v1712, 0.0
        %v1723 = vmax.f32 %v1713, 0.0
        %v1724 = vmax.f32 %v1714, 0.0
        %v1725 = vmax.f32 %v1715, 0.0
        %v1726 = vsel %vm584, %v1716, 0.0
        %v1727 = vsel %vm585, %v1717, 0.0
        %v1728 = vsel %vm586, %v1718, 0.0
        %v1729 = vsel %vm587, %v1719, 0.0
        %v1730 = vsel %vm588, %v1720, 0.0
        %v1731 = vsel %vm589, %v1721, 0.0
        %v1732 = vsel %vm590, %v1722, 0.0
        %v1733 = vsel %vm591, %v1723, 0.0
        %v1734 = vsel %vm592, %v1724, 0.0
        %v1735 = vsel %vm593, %v1725, 0.0
        %1736 = vst [vmem:[#allocation2 + $0x10] sm:$0xff] %v1726
        %1737 = vst [vmem:[#allocation2 + $0x18] sm:$0xff] %v1727
        %1738 = vst [vmem:[#allocation2 + $0x20] sm:$0xff] %v1728
        %1739 = vst [vmem:[#allocation2 + $0x28] sm:$0xff] %v1729
        %1740 = vst [vmem:[#allocation2 + $0x30] sm:$0xff] %v1730
        %1741 = vst [vmem:[#allocation2 + $0x38] sm:$0xff] %v1731
        %1742 = vst [vmem:[#allocation2 + $0x40] sm:$0xff] %v1732
        %1743 = vst [vmem:[#allocation2 + $0x48] sm:$0xff] %v1733
        %1744 = vst [vmem:[#allocation2 + $0x50] sm:$0xff] %v1734
        %1745 = vst [vmem:[#allocation2 + $0x58] sm:$0xff] %v1735
        %v1746 = vld [vmem:[#allocation2 + $0x5] sm:$0xff]
        %v1747 = vld [vmem:[#allocation2 + $0xd] sm:$0xff]
        %v1748 = vld [vmem:[#allocation2 + $0x15] sm:$0xff]
        %v1749 = vld [vmem:[#allocation2 + $0x1d] sm:$0xff]
        %v1750 = vld [vmem:[#allocation2 + $0x25] sm:$0xff]
        %v1751 = vld [vmem:[#allocation2 + $0x2d] sm:$0xff]
        %v1752 = vld [vmem:[#allocation2 + $0x35] sm:$0xff]
        %v1753 = vld [vmem:[#allocation2 + $0x3d] sm:$0xff]
        %v1754 = vld [vmem:[#allocation2 + $0x45] sm:$0xff]
        %v1755 = vld [vmem:[#allocation2 + $0x4d] sm:$0xff]
        %v1756 = vld [vmem:[#allocation2 + $0x6] sm:$0xff]
        %v1757 = vld [vmem:[#allocation2 + $0xe] sm:$0xff]
        %v1758 = vld [vmem:[#allocation2 + $0x16] sm:$0xff]
        %v1759 = vld [vmem:[#allocation2 + $0x1e] sm:$0xff]
        %v1760 = vld [vmem:[#allocation2 + $0x26] sm:$0xff]
        %v1761 = vld [vmem:[#allocation2 + $0x2e] sm:$0xff]
        %v1762 = vld [vmem:[#allocation2 + $0x36] sm:$0xff]
        %v1763 = vld [vmem:[#allocation2 + $0x3e] sm:$0xff]
        %v1764 = vld [vmem:[#allocation2 + $0x46] sm:$0xff]
        %v1765 = vld [vmem:[#allocation2 + $0x4e] sm:$0xff]
        %v1766 = vpack.c.bf16 %v1747, %v1746
        %v1767 = vpack.c.bf16 %v1757, %v1756
        %v1768 = vpack.c.bf16 %v1749, %v1748
        %v1769 = vpack.c.bf16 %v1759, %v1758
        %v1770 = vpack.c.bf16 %v1751, %v1750
        %v1771 = vpack.c.bf16 %v1761, %v1760
        %v1772 = vpack.c.bf16 %v1753, %v1752
        %v1773 = vpack.c.bf16 %v1763, %v1762
        %v1774 = vpack.c.bf16 %v1755, %v1754
        %v1775 = vpack.c.bf16 %v1765, %v1764
        %v1776 = vld [vmem:[#allocation8] sm:$0xf]
        %v1777 = vld [vmem:[#allocation8 + $0x4] sm:$0xf]
        %v1778 = vld [vmem:[#allocation8 + $0x8] sm:$0xf]
        %v1779 = vld [vmem:[#allocation8 + $0xc] sm:$0xf]
        %v1780 = vld [vmem:[#allocation8 + $0x10] sm:$0xf]
        %v1781 = vld [vmem:[#allocation8 + $0x14] sm:$0xf]
        %v1782 = vld [vmem:[#allocation8 + $0x18] sm:$0xf]
        %v1783 = vld [vmem:[#allocation8 + $0x1c] sm:$0xf]
        %v1784 = vld [vmem:[#allocation8 + $0x20] sm:$0xf]
        %v1785 = vld [vmem:[#allocation8 + $0x24] sm:$0xf]
        %v1786 = vld [vmem:[#allocation8 + $0x28] sm:$0xf]
        %v1787 = vld [vmem:[#allocation8 + $0x2c] sm:$0xf]
        %v1788 = vld [vmem:[#allocation8 + $0x30] sm:$0xf]
        %v1789 = vld [vmem:[#allocation8 + $0x34] sm:$0xf]
        %v1790 = vld [vmem:[#allocation8 + $0x38] sm:$0xf]
        %v1791 = vld [vmem:[#allocation8 + $0x3c] sm:$0xf]
        %v1792 = vld [vmem:[#allocation8 + $0x40] sm:$0xf]
        %v1793 = vld [vmem:[#allocation8 + $0x44] sm:$0xf]
        %v1794 = vld [vmem:[#allocation8 + $0x48] sm:$0xf]
        %v1795 = vld [vmem:[#allocation8 + $0x4c] sm:$0xf]
        %v1796 = vld [vmem:[#allocation8 + $0x50] sm:$0xf]
        %v1797 = vld [vmem:[#allocation8 + $0x54] sm:$0xf]
        %v1798 = vld [vmem:[#allocation8 + $0x58] sm:$0xf]
        %v1799 = vld [vmem:[#allocation8 + $0x5c] sm:$0xf]
        %v1800 = vld [vmem:[#allocation8 + $0x60] sm:$0xf]
        %v1801 = vld [vmem:[#allocation8 + $0x64] sm:$0xf]
        %v1802 = vld [vmem:[#allocation8 + $0x68] sm:$0xf]
        %v1803 = vld [vmem:[#allocation8 + $0x6c] sm:$0xf]
        %v1804 = vld [vmem:[#allocation8 + $0x70] sm:$0xf]
        %v1805 = vld [vmem:[#allocation8 + $0x74] sm:$0xf]
        %v1806 = vld [vmem:[#allocation8 + $0x78] sm:$0xf]
        %v1807 = vld [vmem:[#allocation8 + $0x7c] sm:$0xf]
        %v1808 = vld [vmem:[#allocation2 + $0x7] sm:$0xff]
        %v1809 = vld [vmem:[#allocation2 + $0xf] sm:$0xff]
        %v1810 = vld [vmem:[#allocation2 + $0x17] sm:$0xff]
        %v1811 = vld [vmem:[#allocation2 + $0x1f] sm:$0xff]
        %v1812 = vld [vmem:[#allocation2 + $0x27] sm:$0xff]
        %v1813 = vld [vmem:[#allocation2 + $0x2f] sm:$0xff]
        %v1814 = vld [vmem:[#allocation2 + $0x37] sm:$0xff]
        %v1815 = vld [vmem:[#allocation2 + $0x3f] sm:$0xff]
        %v1816 = vld [vmem:[#allocation2 + $0x47] sm:$0xff]
        %v1817 = vld [vmem:[#allocation2 + $0x4f] sm:$0xff]
        %v1818 = vld [vmem:[#allocation2 + $0x57] sm:$0xff]
        %v1819 = vpack.c.bf16 %v1809, %v1808
        %v1820 = vpack.c.bf16 %v1810, %v1809
        %v1821 = vpack.c.bf16 %v1811, %v1810
        %v1822 = vpack.c.bf16 %v1812, %v1811
        %v1823 = vpack.c.bf16 %v1813, %v1812
        %v1824 = vpack.c.bf16 %v1814, %v1813
        %v1825 = vpack.c.bf16 %v1815, %v1814
        %v1826 = vpack.c.bf16 %v1816, %v1815
        %v1827 = vpack.c.bf16 %v1817, %v1816
        %v1828 = vpack.c.bf16 %v1818, %v1817
        %s1829 = scalar_lea.vmem [#allocation8], 128
        %v1830 = vld [vmem:[%s1829] sm:$0xf]
        %v1831 = vld [vmem:[%s1829 + $0x4] sm:$0xf]
        %v1832 = vld [vmem:[%s1829 + $0x8] sm:$0xf]
        %v1833 = vld [vmem:[%s1829 + $0xc] sm:$0xf]
        %v1834 = vld [vmem:[%s1829 + $0x10] sm:$0xf]
        %v1835 = vld [vmem:[%s1829 + $0x14] sm:$0xf]
        %v1836 = vld [vmem:[%s1829 + $0x18] sm:$0xf]
        %v1837 = vld [vmem:[%s1829 + $0x1c] sm:$0xf]
        %v1838 = vld [vmem:[%s1829 + $0x20] sm:$0xf]
        %v1839 = vld [vmem:[%s1829 + $0x24] sm:$0xf]
        %v1840 = vld [vmem:[%s1829 + $0x28] sm:$0xf]
        %v1841 = vld [vmem:[%s1829 + $0x2c] sm:$0xf]
        %v1842 = vld [vmem:[%s1829 + $0x30] sm:$0xf]
        %v1843 = vld [vmem:[%s1829 + $0x34] sm:$0xf]
        %v1844 = vld [vmem:[%s1829 + $0x38] sm:$0xf]
        %v1845 = vld [vmem:[%s1829 + $0x3c] sm:$0xf]
        %v1846 = vld [vmem:[%s1829 + $0x40] sm:$0xf]
        %v1847 = vld [vmem:[%s1829 + $0x44] sm:$0xf]
        %v1848 = vld [vmem:[%s1829 + $0x48] sm:$0xf]
        %v1849 = vld [vmem:[%s1829 + $0x4c] sm:$0xf]
        %v1850 = vld [vmem:[%s1829 + $0x50] sm:$0xf]
        %v1851 = vld [vmem:[%s1829 + $0x54] sm:$0xf]
        %v1852 = vld [vmem:[%s1829 + $0x58] sm:$0xf]
        %v1853 = vld [vmem:[%s1829 + $0x5c] sm:$0xf]
        %v1854 = vld [vmem:[%s1829 + $0x60] sm:$0xf]
        %v1855 = vld [vmem:[%s1829 + $0x64] sm:$0xf]
        %v1856 = vld [vmem:[%s1829 + $0x68] sm:$0xf]
        %v1857 = vld [vmem:[%s1829 + $0x6c] sm:$0xf]
        %v1858 = vld [vmem:[%s1829 + $0x70] sm:$0xf]
        %v1859 = vld [vmem:[%s1829 + $0x74] sm:$0xf]
        %v1860 = vld [vmem:[%s1829 + $0x78] sm:$0xf]
        %v1861 = vld [vmem:[%s1829 + $0x7c] sm:$0xf]
        %v1894 = vunpack.c.l.b16 %v1830
        %v1895 = vunpack.c.l.b16 %v1831
        %v1896 = vunpack.c.l.b16 %v1832
        %v1897 = vunpack.c.l.b16 %v1833
        %v1898 = vunpack.c.l.b16 %v1834
        %v1899 = vunpack.c.l.b16 %v1835
        %v1900 = vunpack.c.l.b16 %v1836
        %v1901 = vunpack.c.l.b16 %v1837
        %v1902 = vunpack.c.l.b16 %v1838
        %v1903 = vunpack.c.l.b16 %v1839
        %v1904 = vunpack.c.l.b16 %v1840
        %v1905 = vunpack.c.l.b16 %v1841
        %v1906 = vunpack.c.l.b16 %v1842
        %v1907 = vunpack.c.l.b16 %v1843
        %v1908 = vunpack.c.l.b16 %v1844
        %v1909 = vunpack.c.l.b16 %v1845
        %v1910 = vunpack.c.l.b16 %v1846
        %v1911 = vunpack.c.l.b16 %v1847
        %v1912 = vunpack.c.l.b16 %v1848
        %v1913 = vunpack.c.l.b16 %v1849
        %v1914 = vunpack.c.l.b16 %v1850
        %v1915 = vunpack.c.l.b16 %v1851
        %v1916 = vunpack.c.l.b16 %v1852
        %v1917 = vunpack.c.l.b16 %v1853
        %v1918 = vunpack.c.l.b16 %v1854
        %v1919 = vunpack.c.l.b16 %v1855
        %v1920 = vunpack.c.l.b16 %v1856
        %v1921 = vunpack.c.l.b16 %v1857
        %v1922 = vunpack.c.l.b16 %v1858
        %v1923 = vunpack.c.l.b16 %v1859
        %v1924 = vunpack.c.l.b16 %v1860
        %v1925 = vunpack.c.l.b16 %v1861
        %v1926 = vpack.c.b16 %v1895, %v1894
        %v1927 = vpack.c.b16 %v1897, %v1896
        %v1928 = vpack.c.b16 %v1899, %v1898
        %v1929 = vpack.c.b16 %v1901, %v1900
        %v1930 = vpack.c.b16 %v1903, %v1902
        %v1931 = vpack.c.b16 %v1905, %v1904
        %v1932 = vpack.c.b16 %v1907, %v1906
        %v1933 = vpack.c.b16 %v1909, %v1908
        %v1934 = vpack.c.b16 %v1911, %v1910
        %v1935 = vpack.c.b16 %v1913, %v1912
        %v1936 = vpack.c.b16 %v1915, %v1914
        %v1937 = vpack.c.b16 %v1917, %v1916
        %v1938 = vpack.c.b16 %v1919, %v1918
        %v1939 = vpack.c.b16 %v1921, %v1920
        %v1940 = vpack.c.b16 %v1923, %v1922
        %v1941 = vpack.c.b16 %v1925, %v1924
        %1958 = vmatprep.subr.bf16.mxu0 0
        %1959 = vmatpush1.bf16.msra.mxu0 %v1926
        %1960 = vmatprep.subr.bf16.mxu0 0
        %1961 = vmatpush1.bf16.msra.mxu0 %v1927
        %1962 = vmatprep.subr.bf16.mxu0 0
        %1963 = vmatpush1.bf16.msra.mxu0 %v1928
        %1964 = vmatprep.subr.bf16.mxu0 0
        %1965 = vmatpush1.bf16.msra.mxu0 %v1929
        %1966 = vmatprep.subr.bf16.mxu0 0
        %1967 = vmatpush1.bf16.msra.mxu0 %v1930
        %1968 = vmatprep.subr.bf16.mxu0 0
        %1969 = vmatpush1.bf16.msra.mxu0 %v1931
        %1970 = vmatprep.subr.bf16.mxu0 0
        %1971 = vmatpush1.bf16.msra.mxu0 %v1932
        %1972 = vmatprep.subr.bf16.mxu0 0
        %1973 = vmatpush1.bf16.msra.mxu0 %v1933
        %1974 = vmatprep.subr.bf16.mxu0 0
        %1975 = vmatpush1.bf16.msra.mxu0 %v1934
        %1976 = vmatprep.subr.bf16.mxu0 0
        %1977 = vmatpush1.bf16.msra.mxu0 %v1935
        %1978 = vmatprep.subr.bf16.mxu0 0
        %1979 = vmatpush1.bf16.msra.mxu0 %v1936
        %1980 = vmatprep.subr.bf16.mxu0 0
        %1981 = vmatpush1.bf16.msra.mxu0 %v1937
        %1982 = vmatprep.subr.bf16.mxu0 0
        %1983 = vmatpush1.bf16.msra.mxu0 %v1938
        %1984 = vmatprep.subr.bf16.mxu0 0
        %1985 = vmatpush1.bf16.msra.mxu0 %v1939
        %1986 = vmatprep.subr.bf16.mxu0 0
        %1987 = vmatpush1.bf16.msra.mxu0 %v1940
        %1988 = vmatprep.subr.bf16.mxu0 0
        %1989 = vmatpush1.bf16.msra.mxu0 %v1941
        %1990 = vmatprep.mubr.bf16.mxu0 %v1820
        %1991 = vmatmul.mubr.bf16.gmra.mrb[0].mxu0 %v1819
        %v1992 = vpop.f32.mrb[0].mxu0
        %v1993 = vadd.f32 0.0, %v1992
        %v1994 = vpop.f32.mrb[0].mxu0
        %v1995 = vpop.f32.mrb[0].mxu0
        %v1996 = vadd.f32 0.0, %v1995
        %v1997 = vpop.f32.mrb[0].mxu0
        %1998 = vmatprep.mubr.bf16.mxu0 %v1822
        %1999 = vmatmul.mubr.bf16.gmra.mrb[0].mxu0 %v1821
        %v2000 = vpop.f32.mrb[0].mxu0
        %v2001 = vadd.f32 0.0, %v2000
        %v2002 = vpop.f32.mrb[0].mxu0
        %v2003 = vpop.f32.mrb[0].mxu0
        %v2004 = vadd.f32 0.0, %v2003
        %v2005 = vpop.f32.mrb[0].mxu0
        %2006 = vmatprep.mubr.bf16.mxu0 %v1824
        %2007 = vmatmul.mubr.bf16.gmra.mrb[0].mxu0 %v1823
        %v2008 = vpop.f32.mrb[0].mxu0
        %v2009 = vadd.f32 0.0, %v2008
        %v2010 = vpop.f32.mrb[0].mxu0
        %v2011 = vpop.f32.mrb[0].mxu0
        %v2012 = vadd.f32 0.0, %v2011
        %v2013 = vpop.f32.mrb[0].mxu0
        %2014 = vmatprep.mubr.bf16.mxu0 %v1826
        %2015 = vmatmul.mubr.bf16.gmra.mrb[0].mxu0 %v1825
        %v2016 = vpop.f32.mrb[0].mxu0
        %v2017 = vadd.f32 0.0, %v2016
        %v2018 = vpop.f32.mrb[0].mxu0
        %v2019 = vpop.f32.mrb[0].mxu0
        %v2020 = vadd.f32 0.0, %v2019
        %v2021 = vpop.f32.mrb[0].mxu0
        %2022 = vmatprep.mubr.bf16.mxu0 %v1828
        %2023 = vmatmul.mubr.bf16.gmra.mrb[0].mxu0 %v1827
        %v2024 = vpop.f32.mrb[0].mxu0
        %v2025 = vadd.f32 0.0, %v2024
        %v2026 = vpop.f32.mrb[0].mxu0
        %v2027 = vpop.f32.mrb[0].mxu0
        %v2028 = vadd.f32 0.0, %v2027
        %v2029 = vpop.f32.mrb[0].mxu0
        %2030 = vdwg.mxu0
        %v2063 = vunpack.c.l.b16 %v1776
        %v2064 = vunpack.c.l.b16 %v1777
        %v2065 = vunpack.c.l.b16 %v1778
        %v2066 = vunpack.c.l.b16 %v1779
        %v2067 = vunpack.c.l.b16 %v1780
        %v2068 = vunpack.c.l.b16 %v1781
        %v2069 = vunpack.c.l.b16 %v1782
        %v2070 = vunpack.c.l.b16 %v1783
        %v2071 = vunpack.c.l.b16 %v1784
        %v2072 = vunpack.c.l.b16 %v1785
        %v2073 = vunpack.c.l.b16 %v1786
        %v2074 = vunpack.c.l.b16 %v1787
        %v2075 = vunpack.c.l.b16 %v1788
        %v2076 = vunpack.c.l.b16 %v1789
        %v2077 = vunpack.c.l.b16 %v1790
        %v2078 = vunpack.c.l.b16 %v1791
        %v2079 = vunpack.c.l.b16 %v1792
        %v2080 = vunpack.c.l.b16 %v1793
        %v2081 = vunpack.c.l.b16 %v1794
        %v2082 = vunpack.c.l.b16 %v1795
        %v2083 = vunpack.c.l.b16 %v1796
        %v2084 = vunpack.c.l.b16 %v1797
        %v2085 = vunpack.c.l.b16 %v1798
        %v2086 = vunpack.c.l.b16 %v1799
        %v2087 = vunpack.c.l.b16 %v1800
        %v2088 = vunpack.c.l.b16 %v1801
        %v2089 = vunpack.c.l.b16 %v1802
        %v2090 = vunpack.c.l.b16 %v1803
        %v2091 = vunpack.c.l.b16 %v1804
        %v2092 = vunpack.c.l.b16 %v1805
        %v2093 = vunpack.c.l.b16 %v1806
        %v2094 = vunpack.c.l.b16 %v1807
        %v2095 = vpack.c.b16 %v2064, %v2063
        %v2096 = vpack.c.b16 %v2066, %v2065
        %v2097 = vpack.c.b16 %v2068, %v2067
        %v2098 = vpack.c.b16 %v2070, %v2069
        %v2099 = vpack.c.b16 %v2072, %v2071
        %v2100 = vpack.c.b16 %v2074, %v2073
        %v2101 = vpack.c.b16 %v2076, %v2075
        %v2102 = vpack.c.b16 %v2078, %v2077
        %v2103 = vpack.c.b16 %v2080, %v2079
        %v2104 = vpack.c.b16 %v2082, %v2081
        %v2105 = vpack.c.b16 %v2084, %v2083
        %v2106 = vpack.c.b16 %v2086, %v2085
        %v2107 = vpack.c.b16 %v2088, %v2087
        %v2108 = vpack.c.b16 %v2090, %v2089
        %v2109 = vpack.c.b16 %v2092, %v2091
        %v2110 = vpack.c.b16 %v2094, %v2093
        %2127 = vmatprep.subr.bf16.mxu0 0
        %2128 = vmatpush1.bf16.msra.mxu0 %v2095
        %2129 = vmatprep.subr.bf16.mxu0 0
        %2130 = vmatpush1.bf16.msra.mxu0 %v2096
        %2131 = vmatprep.subr.bf16.mxu0 0
        %2132 = vmatpush1.bf16.msra.mxu0 %v2097
        %2133 = vmatprep.subr.bf16.mxu0 0
        %2134 = vmatpush1.bf16.msra.mxu0 %v2098
        %2135 = vmatprep.subr.bf16.mxu0 0
        %2136 = vmatpush1.bf16.msra.mxu0 %v2099
        %2137 = vmatprep.subr.bf16.mxu0 0
        %2138 = vmatpush1.bf16.msra.mxu0 %v2100
        %2139 = vmatprep.subr.bf16.mxu0 0
        %2140 = vmatpush1.bf16.msra.mxu0 %v2101
        %2141 = vmatprep.subr.bf16.mxu0 0
        %2142 = vmatpush1.bf16.msra.mxu0 %v2102
        %2143 = vmatprep.subr.bf16.mxu0 0
        %2144 = vmatpush1.bf16.msra.mxu0 %v2103
        %2145 = vmatprep.subr.bf16.mxu0 0
        %2146 = vmatpush1.bf16.msra.mxu0 %v2104
        %2147 = vmatprep.subr.bf16.mxu0 0
        %2148 = vmatpush1.bf16.msra.mxu0 %v2105
        %2149 = vmatprep.subr.bf16.mxu0 0
        %2150 = vmatpush1.bf16.msra.mxu0 %v2106
        %2151 = vmatprep.subr.bf16.mxu0 0
        %2152 = vmatpush1.bf16.msra.mxu0 %v2107
        %2153 = vmatprep.subr.bf16.mxu0 0
        %2154 = vmatpush1.bf16.msra.mxu0 %v2108
        %2155 = vmatprep.subr.bf16.mxu0 0
        %2156 = vmatpush1.bf16.msra.mxu0 %v2109
        %2157 = vmatprep.subr.bf16.mxu0 0
        %2158 = vmatpush1.bf16.msra.mxu0 %v2110
        %2159 = vmatprep.mubr.bf16.mxu0 %v1767
        %2160 = vmatmul.mubr.bf16.gmra.mrb[0].mxu0 %v1766
        %v2161 = vpop.f32.mrb[0].mxu0
        %v2162 = vadd.f32 %v1993, %v2161
        %v2163 = vpop.f32.mrb[0].mxu0
        %v2164 = vpop.f32.mrb[0].mxu0
        %v2165 = vadd.f32 %v1996, %v2164
        %v2166 = vpop.f32.mrb[0].mxu0
        %2167 = vmatprep.mubr.bf16.mxu0 %v1769
        %2168 = vmatmul.mubr.bf16.gmra.mrb[0].mxu0 %v1768
        %v2169 = vpop.f32.mrb[0].mxu0
        %v2170 = vadd.f32 %v2001, %v2169
        %v2171 = vpop.f32.mrb[0].mxu0
        %v2172 = vpop.f32.mrb[0].mxu0
        %v2173 = vadd.f32 %v2004, %v2172
        %v2174 = vpop.f32.mrb[0].mxu0
        %2175 = vmatprep.mubr.bf16.mxu0 %v1771
        %2176 = vmatmul.mubr.bf16.gmra.mrb[0].mxu0 %v1770
        %v2177 = vpop.f32.mrb[0].mxu0
        %v2178 = vadd.f32 %v2009, %v2177
        %v2179 = vpop.f32.mrb[0].mxu0
        %v2180 = vpop.f32.mrb[0].mxu0
        %v2181 = vadd.f32 %v2012, %v2180
        %v2182 = vpop.f32.mrb[0].mxu0
        %2183 = vmatprep.mubr.bf16.mxu0 %v1773
        %2184 = vmatmul.mubr.bf16.gmra.mrb[0].mxu0 %v1772
        %v2185 = vpop.f32.mrb[0].mxu0
        %v2186 = vadd.f32 %v2017, %v2185
        %v2187 = vpop.f32.mrb[0].mxu0
        %v2188 = vpop.f32.mrb[0].mxu0
        %v2189 = vadd.f32 %v2020, %v2188
        %v2190 = vpop.f32.mrb[0].mxu0
        %2191 = vmatprep.mubr.bf16.mxu0 %v1775
        %2192 = vmatmul.mubr.bf16.gmra.mrb[0].mxu0 %v1774
        %v2193 = vpop.f32.mrb[0].mxu0
        %v2194 = vadd.f32 %v2025, %v2193
        %v2195 = vpop.f32.mrb[0].mxu0
        %v2196 = vpop.f32.mrb[0].mxu0
        %v2197 = vadd.f32 %v2028, %v2196
        %v2198 = vpop.f32.mrb[0].mxu0
        %2199 = vdwg.mxu0
        %v2200 = vld [vmem:[#allocation2 + $0x10] sm:$0xff]
        %v2201 = vld [vmem:[#allocation2 + $0x18] sm:$0xff]
        %v2202 = vld [vmem:[#allocation2 + $0x20] sm:$0xff]
        %v2203 = vld [vmem:[#allocation2 + $0x28] sm:$0xff]
        %v2204 = vld [vmem:[#allocation2 + $0x30] sm:$0xff]
        %v2205 = vld [vmem:[#allocation2 + $0x38] sm:$0xff]
        %v2206 = vld [vmem:[#allocation2 + $0x40] sm:$0xff]
        %v2207 = vld [vmem:[#allocation2 + $0x48] sm:$0xff]
        %v2208 = vld [vmem:[#allocation2 + $0x50] sm:$0xff]
        %v2209 = vld [vmem:[#allocation2 + $0x58] sm:$0xff]
        %v2210 = vld [vmem:[#allocation2 + $0x11] sm:$0xff]
        %v2211 = vld [vmem:[#allocation2 + $0x19] sm:$0xff]
        %v2212 = vld [vmem:[#allocation2 + $0x21] sm:$0xff]
        %v2213 = vld [vmem:[#allocation2 + $0x29] sm:$0xff]
        %v2214 = vld [vmem:[#allocation2 + $0x31] sm:$0xff]
        %v2215 = vld [vmem:[#allocation2 + $0x39] sm:$0xff]
        %v2216 = vld [vmem:[#allocation2 + $0x41] sm:$0xff]
        %v2217 = vld [vmem:[#allocation2 + $0x49] sm:$0xff]
        %v2218 = vld [vmem:[#allocation2 + $0x51] sm:$0xff]
        %v2219 = vld [vmem:[#allocation2 + $0x59] sm:$0xff]
        %v2220 = vpack.c.bf16 %v2201, %v2200
        %v2221 = vpack.c.bf16 %v2211, %v2210
        %v2222 = vpack.c.bf16 %v2203, %v2202
        %v2223 = vpack.c.bf16 %v2213, %v2212
        %v2224 = vpack.c.bf16 %v2205, %v2204
        %v2225 = vpack.c.bf16 %v2215, %v2214
        %v2226 = vpack.c.bf16 %v2207, %v2206
        %v2227 = vpack.c.bf16 %v2217, %v2216
        %v2228 = vpack.c.bf16 %v2209, %v2208
        %v2229 = vpack.c.bf16 %v2219, %v2218
        %s2230 = scalar_lea.vmem [#allocation8], 256
        %v2231 = vld [vmem:[%s2230] sm:$0xf]
        %v2232 = vld [vmem:[%s2230 + $0x4] sm:$0xf]
        %v2233 = vld [vmem:[%s2230 + $0x8] sm:$0xf]
        %v2234 = vld [vmem:[%s2230 + $0xc] sm:$0xf]
        %v2235 = vld [vmem:[%s2230 + $0x10] sm:$0xf]
        %v2236 = vld [vmem:[%s2230 + $0x14] sm:$0xf]
        %v2237 = vld [vmem:[%s2230 + $0x18] sm:$0xf]
        %v2238 = vld [vmem:[%s2230 + $0x1c] sm:$0xf]
        %v2239 = vld [vmem:[%s2230 + $0x20] sm:$0xf]
        %v2240 = vld [vmem:[%s2230 + $0x24] sm:$0xf]
        %v2241 = vld [vmem:[%s2230 + $0x28] sm:$0xf]
        %v2242 = vld [vmem:[%s2230 + $0x2c] sm:$0xf]
        %v2243 = vld [vmem:[%s2230 + $0x30] sm:$0xf]
        %v2244 = vld [vmem:[%s2230 + $0x34] sm:$0xf]
        %v2245 = vld [vmem:[%s2230 + $0x38] sm:$0xf]
        %v2246 = vld [vmem:[%s2230 + $0x3c] sm:$0xf]
        %v2247 = vld [vmem:[%s2230 + $0x40] sm:$0xf]
        %v2248 = vld [vmem:[%s2230 + $0x44] sm:$0xf]
        %v2249 = vld [vmem:[%s2230 + $0x48] sm:$0xf]
        %v2250 = vld [vmem:[%s2230 + $0x4c] sm:$0xf]
        %v2251 = vld [vmem:[%s2230 + $0x50] sm:$0xf]
        %v2252 = vld [vmem:[%s2230 + $0x54] sm:$0xf]
        %v2253 = vld [vmem:[%s2230 + $0x58] sm:$0xf]
        %v2254 = vld [vmem:[%s2230 + $0x5c] sm:$0xf]
        %v2255 = vld [vmem:[%s2230 + $0x60] sm:$0xf]
        %v2256 = vld [vmem:[%s2230 + $0x64] sm:$0xf]
        %v2257 = vld [vmem:[%s2230 + $0x68] sm:$0xf]
        %v2258 = vld [vmem:[%s2230 + $0x6c] sm:$0xf]
        %v2259 = vld [vmem:[%s2230 + $0x70] sm:$0xf]
        %v2260 = vld [vmem:[%s2230 + $0x74] sm:$0xf]
        %v2261 = vld [vmem:[%s2230 + $0x78] sm:$0xf]
        %v2262 = vld [vmem:[%s2230 + $0x7c] sm:$0xf]
        %v2295 = vunpack.c.l.b16 %v2231
        %v2296 = vunpack.c.l.b16 %v2232
        %v2297 = vunpack.c.l.b16 %v2233
        %v2298 = vunpack.c.l.b16 %v2234
        %v2299 = vunpack.c.l.b16 %v2235
        %v2300 = vunpack.c.l.b16 %v2236
        %v2301 = vunpack.c.l.b16 %v2237
        %v2302 = vunpack.c.l.b16 %v2238
        %v2303 = vunpack.c.l.b16 %v2239
        %v2304 = vunpack.c.l.b16 %v2240
        %v2305 = vunpack.c.l.b16 %v2241
        %v2306 = vunpack.c.l.b16 %v2242
        %v2307 = vunpack.c.l.b16 %v2243
        %v2308 = vunpack.c.l.b16 %v2244
        %v2309 = vunpack.c.l.b16 %v2245
        %v2310 = vunpack.c.l.b16 %v2246
        %v2311 = vunpack.c.l.b16 %v2247
        %v2312 = vunpack.c.l.b16 %v2248
        %v2313 = vunpack.c.l.b16 %v2249
        %v2314 = vunpack.c.l.b16 %v2250
        %v2315 = vunpack.c.l.b16 %v2251
        %v2316 = vunpack.c.l.b16 %v2252
        %v2317 = vunpack.c.l.b16 %v2253
        %v2318 = vunpack.c.l.b16 %v2254
        %v2319 = vunpack.c.l.b16 %v2255
        %v2320 = vunpack.c.l.b16 %v2256
        %v2321 = vunpack.c.l.b16 %v2257
        %v2322 = vunpack.c.l.b16 %v2258
        %v2323 = vunpack.c.l.b16 %v2259
        %v2324 = vunpack.c.l.b16 %v2260
        %v2325 = vunpack.c.l.b16 %v2261
        %v2326 = vunpack.c.l.b16 %v2262
        %v2327 = vpack.c.b16 %v2296, %v2295
        %v2328 = vpack.c.b16 %v2298, %v2297
        %v2329 = vpack.c.b16 %v2300, %v2299
        %v2330 = vpack.c.b16 %v2302, %v2301
        %v2331 = vpack.c.b16 %v2304, %v2303
        %v2332 = vpack.c.b16 %v2306, %v2305
        %v2333 = vpack.c.b16 %v2308, %v2307
        %v2334 = vpack.c.b16 %v2310, %v2309
        %v2335 = vpack.c.b16 %v2312, %v2311
        %v2336 = vpack.c.b16 %v2314, %v2313
        %v2337 = vpack.c.b16 %v2316, %v2315
        %v2338 = vpack.c.b16 %v2318, %v2317
        %v2339 = vpack.c.b16 %v2320, %v2319
        %v2340 = vpack.c.b16 %v2322, %v2321
        %v2341 = vpack.c.b16 %v2324, %v2323
        %v2342 = vpack.c.b16 %v2326, %v2325
        %2359 = vmatprep.subr.bf16.mxu0 0
        %2360 = vmatpush1.bf16.msra.mxu0 %v2327
        %2361 = vmatprep.subr.bf16.mxu0 0
        %2362 = vmatpush1.bf16.msra.mxu0 %v2328
        %2363 = vmatprep.subr.bf16.mxu0 0
        %2364 = vmatpush1.bf16.msra.mxu0 %v2329
        %2365 = vmatprep.subr.bf16.mxu0 0
        %2366 = vmatpush1.bf16.msra.mxu0 %v2330
        %2367 = vmatprep.subr.bf16.mxu0 0
        %2368 = vmatpush1.bf16.msra.mxu0 %v2331
        %2369 = vmatprep.subr.bf16.mxu0 0
        %2370 = vmatpush1.bf16.msra.mxu0 %v2332
        %2371 = vmatprep.subr.bf16.mxu0 0
        %2372 = vmatpush1.bf16.msra.mxu0 %v2333
        %2373 = vmatprep.subr.bf16.mxu0 0
        %2374 = vmatpush1.bf16.msra.mxu0 %v2334
        %2375 = vmatprep.subr.bf16.mxu0 0
        %2376 = vmatpush1.bf16.msra.mxu0 %v2335
        %2377 = vmatprep.subr.bf16.mxu0 0
        %2378 = vmatpush1.bf16.msra.mxu0 %v2336
        %2379 = vmatprep.subr.bf16.mxu0 0
        %2380 = vmatpush1.bf16.msra.mxu0 %v2337
        %2381 = vmatprep.subr.bf16.mxu0 0
        %2382 = vmatpush1.bf16.msra.mxu0 %v2338
        %2383 = vmatprep.subr.bf16.mxu0 0
        %2384 = vmatpush1.bf16.msra.mxu0 %v2339
        %2385 = vmatprep.subr.bf16.mxu0 0
        %2386 = vmatpush1.bf16.msra.mxu0 %v2340
        %2387 = vmatprep.subr.bf16.mxu0 0
        %2388 = vmatpush1.bf16.msra.mxu0 %v2341
        %2389 = vmatprep.subr.bf16.mxu0 0
        %2390 = vmatpush1.bf16.msra.mxu0 %v2342
        %2391 = vmatprep.mubr.bf16.mxu0 %v2221
        %2392 = vmatmul.mubr.bf16.gmra.mrb[0].mxu0 %v2220
        %v2393 = vpop.f32.mrb[0].mxu0
        %v2394 = vadd.f32 0.0, %v2393
        %v2395 = vpop.f32.mrb[0].mxu0
        %v2396 = vpop.f32.mrb[0].mxu0
        %v2397 = vadd.f32 0.0, %v2396
        %v2398 = vpop.f32.mrb[0].mxu0
        %2399 = vmatprep.mubr.bf16.mxu0 %v2223
        %2400 = vmatmul.mubr.bf16.gmra.mrb[0].mxu0 %v2222
        %v2401 = vpop.f32.mrb[0].mxu0
        %v2402 = vadd.f32 0.0, %v2401
        %v2403 = vpop.f32.mrb[0].mxu0
        %v2404 = vpop.f32.mrb[0].mxu0
        %v2405 = vadd.f32 0.0, %v2404
        %v2406 = vpop.f32.mrb[0].mxu0
        %2407 = vmatprep.mubr.bf16.mxu0 %v2225
        %2408 = vmatmul.mubr.bf16.gmra.mrb[0].mxu0 %v2224
        %v2409 = vpop.f32.mrb[0].mxu0
        %v2410 = vadd.f32 0.0, %v2409
        %v2411 = vpop.f32.mrb[0].mxu0
        %v2412 = vpop.f32.mrb[0].mxu0
        %v2413 = vadd.f32 0.0, %v2412
        %v2414 = vpop.f32.mrb[0].mxu0
        %2415 = vmatprep.mubr.bf16.mxu0 %v2227
        %2416 = vmatmul.mubr.bf16.gmra.mrb[0].mxu0 %v2226
        %v2417 = vpop.f32.mrb[0].mxu0
        %v2418 = vadd.f32 0.0, %v2417
        %v2419 = vpop.f32.mrb[0].mxu0
        %v2420 = vpop.f32.mrb[0].mxu0
        %v2421 = vadd.f32 0.0, %v2420
        %v2422 = vpop.f32.mrb[0].mxu0
        %2423 = vmatprep.mubr.bf16.mxu0 %v2229
        %2424 = vmatmul.mubr.bf16.gmra.mrb[0].mxu0 %v2228
        %v2425 = vpop.f32.mrb[0].mxu0
        %v2426 = vadd.f32 0.0, %v2425
        %v2427 = vpop.f32.mrb[0].mxu0
        %v2428 = vpop.f32.mrb[0].mxu0
        %v2429 = vadd.f32 0.0, %v2428
        %v2430 = vpop.f32.mrb[0].mxu0
        %2431 = vdwg.mxu0
        %v2432 = vadd.f32 %v2162, %v2394
        %v2433 = vadd.f32 %v2165, %v2397
        %v2434 = vadd.f32 %v2170, %v2402
        %v2435 = vadd.f32 %v2173, %v2405
        %v2436 = vadd.f32 %v2178, %v2410
        %v2437 = vadd.f32 %v2181, %v2413
        %v2438 = vadd.f32 %v2186, %v2418
        %v2439 = vadd.f32 %v2189, %v2421
        %v2440 = vadd.f32 %v2194, %v2426
        %v2441 = vadd.f32 %v2197, %v2429
        %v2442 = vld [vmem:[#allocation2 + $0x19] sm:$0xff]
        %v2443 = vld [vmem:[#allocation2 + $0x21] sm:$0xff]
        %v2444 = vld [vmem:[#allocation2 + $0x29] sm:$0xff]
        %v2445 = vld [vmem:[#allocation2 + $0x31] sm:$0xff]
        %v2446 = vld [vmem:[#allocation2 + $0x39] sm:$0xff]
        %v2447 = vld [vmem:[#allocation2 + $0x41] sm:$0xff]
        %v2448 = vld [vmem:[#allocation2 + $0x49] sm:$0xff]
        %v2449 = vld [vmem:[#allocation2 + $0x51] sm:$0xff]
        %v2450 = vld [vmem:[#allocation2 + $0x59] sm:$0xff]
        %v2451 = vld [vmem:[#allocation2 + $0x61] sm:$0xff]
        %v2452 = vld [vmem:[#allocation2 + $0x1a] sm:$0xff]
        %v2453 = vld [vmem:[#allocation2 + $0x22] sm:$0xff]
        %v2454 = vld [vmem:[#allocation2 + $0x2a] sm:$0xff]
        %v2455 = vld [vmem:[#allocation2 + $0x32] sm:$0xff]
        %v2456 = vld [vmem:[#allocation2 + $0x3a] sm:$0xff]
        %v2457 = vld [vmem:[#allocation2 + $0x42] sm:$0xff]
        %v2458 = vld [vmem:[#allocation2 + $0x4a] sm:$0xff]
        %v2459 = vld [vmem:[#allocation2 + $0x52] sm:$0xff]
        %v2460 = vld [vmem:[#allocation2 + $0x5a] sm:$0xff]
        %v2461 = vld [vmem:[#allocation2 + $0x62] sm:$0xff]
        %v2462 = vpack.c.bf16 %v2443, %v2442
        %v2463 = vpack.c.bf16 %v2453, %v2452
        %v2464 = vpack.c.bf16 %v2445, %v2444
        %v2465 = vpack.c.bf16 %v2455, %v2454
        %v2466 = vpack.c.bf16 %v2447, %v2446
        %v2467 = vpack.c.bf16 %v2457, %v2456
        %v2468 = vpack.c.bf16 %v2449, %v2448
        %v2469 = vpack.c.bf16 %v2459, %v2458
        %v2470 = vpack.c.bf16 %v2451, %v2450
        %v2471 = vpack.c.bf16 %v2461, %v2460
        %s2472 = scalar_lea.vmem [#allocation8], 384
        %v2473 = vld [vmem:[%s2472] sm:$0xf]
        %v2474 = vld [vmem:[%s2472 + $0x4] sm:$0xf]
        %v2475 = vld [vmem:[%s2472 + $0x8] sm:$0xf]
        %v2476 = vld [vmem:[%s2472 + $0xc] sm:$0xf]
        %v2477 = vld [vmem:[%s2472 + $0x10] sm:$0xf]
        %v2478 = vld [vmem:[%s2472 + $0x14] sm:$0xf]
        %v2479 = vld [vmem:[%s2472 + $0x18] sm:$0xf]
        %v2480 = vld [vmem:[%s2472 + $0x1c] sm:$0xf]
        %v2481 = vld [vmem:[%s2472 + $0x20] sm:$0xf]
        %v2482 = vld [vmem:[%s2472 + $0x24] sm:$0xf]
        %v2483 = vld [vmem:[%s2472 + $0x28] sm:$0xf]
        %v2484 = vld [vmem:[%s2472 + $0x2c] sm:$0xf]
        %v2485 = vld [vmem:[%s2472 + $0x30] sm:$0xf]
        %v2486 = vld [vmem:[%s2472 + $0x34] sm:$0xf]
        %v2487 = vld [vmem:[%s2472 + $0x38] sm:$0xf]
        %v2488 = vld [vmem:[%s2472 + $0x3c] sm:$0xf]
        %v2489 = vld [vmem:[%s2472 + $0x40] sm:$0xf]
        %v2490 = vld [vmem:[%s2472 + $0x44] sm:$0xf]
        %v2491 = vld [vmem:[%s2472 + $0x48] sm:$0xf]
        %v2492 = vld [vmem:[%s2472 + $0x4c] sm:$0xf]
        %v2493 = vld [vmem:[%s2472 + $0x50] sm:$0xf]
        %v2494 = vld [vmem:[%s2472 + $0x54] sm:$0xf]
        %v2495 = vld [vmem:[%s2472 + $0x58] sm:$0xf]
        %v2496 = vld [vmem:[%s2472 + $0x5c] sm:$0xf]
        %v2497 = vld [vmem:[%s2472 + $0x60] sm:$0xf]
        %v2498 = vld [vmem:[%s2472 + $0x64] sm:$0xf]
        %v2499 = vld [vmem:[%s2472 + $0x68] sm:$0xf]
        %v2500 = vld [vmem:[%s2472 + $0x6c] sm:$0xf]
        %v2501 = vld [vmem:[%s2472 + $0x70] sm:$0xf]
        %v2502 = vld [vmem:[%s2472 + $0x74] sm:$0xf]
        %v2503 = vld [vmem:[%s2472 + $0x78] sm:$0xf]
        %v2504 = vld [vmem:[%s2472 + $0x7c] sm:$0xf]
        %v2537 = vunpack.c.l.b16 %v2473
        %v2538 = vunpack.c.l.b16 %v2474
        %v2539 = vunpack.c.l.b16 %v2475
        %v2540 = vunpack.c.l.b16 %v2476
        %v2541 = vunpack.c.l.b16 %v2477
        %v2542 = vunpack.c.l.b16 %v2478
        %v2543 = vunpack.c.l.b16 %v2479
        %v2544 = vunpack.c.l.b16 %v2480
        %v2545 = vunpack.c.l.b16 %v2481
        %v2546 = vunpack.c.l.b16 %v2482
        %v2547 = vunpack.c.l.b16 %v2483
        %v2548 = vunpack.c.l.b16 %v2484
        %v2549 = vunpack.c.l.b16 %v2485
        %v2550 = vunpack.c.l.b16 %v2486
        %v2551 = vunpack.c.l.b16 %v2487
        %v2552 = vunpack.c.l.b16 %v2488
        %v2553 = vunpack.c.l.b16 %v2489
        %v2554 = vunpack.c.l.b16 %v2490
        %v2555 = vunpack.c.l.b16 %v2491
        %v2556 = vunpack.c.l.b16 %v2492
        %v2557 = vunpack.c.l.b16 %v2493
        %v2558 = vunpack.c.l.b16 %v2494
        %v2559 = vunpack.c.l.b16 %v2495
        %v2560 = vunpack.c.l.b16 %v2496
        %v2561 = vunpack.c.l.b16 %v2497
        %v2562 = vunpack.c.l.b16 %v2498
        %v2563 = vunpack.c.l.b16 %v2499
        %v2564 = vunpack.c.l.b16 %v2500
        %v2565 = vunpack.c.l.b16 %v2501
        %v2566 = vunpack.c.l.b16 %v2502
        %v2567 = vunpack.c.l.b16 %v2503
        %v2568 = vunpack.c.l.b16 %v2504
        %v2569 = vpack.c.b16 %v2538, %v2537
        %v2570 = vpack.c.b16 %v2540, %v2539
        %v2571 = vpack.c.b16 %v2542, %v2541
        %v2572 = vpack.c.b16 %v2544, %v2543
        %v2573 = vpack.c.b16 %v2546, %v2545
        %v2574 = vpack.c.b16 %v2548, %v2547
        %v2575 = vpack.c.b16 %v2550, %v2549
        %v2576 = vpack.c.b16 %v2552, %v2551
        %v2577 = vpack.c.b16 %v2554, %v2553
        %v2578 = vpack.c.b16 %v2556, %v2555
        %v2579 = vpack.c.b16 %v2558, %v2557
        %v2580 = vpack.c.b16 %v2560, %v2559
        %v2581 = vpack.c.b16 %v2562, %v2561
        %v2582 = vpack.c.b16 %v2564, %v2563
        %v2583 = vpack.c.b16 %v2566, %v2565
        %v2584 = vpack.c.b16 %v2568, %v2567
        %2601 = vmatprep.subr.bf16.mxu0 0
        %2602 = vmatpush1.bf16.msra.mxu0 %v2569
        %2603 = vmatprep.subr.bf16.mxu0 0
        %2604 = vmatpush1.bf16.msra.mxu0 %v2570
        %2605 = vmatprep.subr.bf16.mxu0 0
        %2606 = vmatpush1.bf16.msra.mxu0 %v2571
        %2607 = vmatprep.subr.bf16.mxu0 0
        %2608 = vmatpush1.bf16.msra.mxu0 %v2572
        %2609 = vmatprep.subr.bf16.mxu0 0
        %2610 = vmatpush1.bf16.msra.mxu0 %v2573
        %2611 = vmatprep.subr.bf16.mxu0 0
        %2612 = vmatpush1.bf16.msra.mxu0 %v2574
        %2613 = vmatprep.subr.bf16.mxu0 0
        %2614 = vmatpush1.bf16.msra.mxu0 %v2575
        %2615 = vmatprep.subr.bf16.mxu0 0
        %2616 = vmatpush1.bf16.msra.mxu0 %v2576
        %2617 = vmatprep.subr.bf16.mxu0 0
        %2618 = vmatpush1.bf16.msra.mxu0 %v2577
        %2619 = vmatprep.subr.bf16.mxu0 0
        %2620 = vmatpush1.bf16.msra.mxu0 %v2578
        %2621 = vmatprep.subr.bf16.mxu0 0
        %2622 = vmatpush1.bf16.msra.mxu0 %v2579
        %2623 = vmatprep.subr.bf16.mxu0 0
        %2624 = vmatpush1.bf16.msra.mxu0 %v2580
        %2625 = vmatprep.subr.bf16.mxu0 0
        %2626 = vmatpush1.bf16.msra.mxu0 %v2581
        %2627 = vmatprep.subr.bf16.mxu0 0
        %2628 = vmatpush1.bf16.msra.mxu0 %v2582
        %2629 = vmatprep.subr.bf16.mxu0 0
        %2630 = vmatpush1.bf16.msra.mxu0 %v2583
        %2631 = vmatprep.subr.bf16.mxu0 0
        %2632 = vmatpush1.bf16.msra.mxu0 %v2584
        %2633 = vmatprep.mubr.bf16.mxu0 %v2463
        %2634 = vmatmul.mubr.bf16.gmra.mrb[0].mxu0 %v2462
        %v2635 = vpop.f32.mrb[0].mxu0
        %v2636 = vadd.f32 0.0, %v2635
        %v2637 = vpop.f32.mrb[0].mxu0
        %v2638 = vpop.f32.mrb[0].mxu0
        %v2639 = vadd.f32 0.0, %v2638
        %v2640 = vpop.f32.mrb[0].mxu0
        %2641 = vmatprep.mubr.bf16.mxu0 %v2465
        %2642 = vmatmul.mubr.bf16.gmra.mrb[0].mxu0 %v2464
        %v2643 = vpop.f32.mrb[0].mxu0
        %v2644 = vadd.f32 0.0, %v2643
        %v2645 = vpop.f32.mrb[0].mxu0
        %v2646 = vpop.f32.mrb[0].mxu0
        %v2647 = vadd.f32 0.0, %v2646
        %v2648 = vpop.f32.mrb[0].mxu0
        %2649 = vmatprep.mubr.bf16.mxu0 %v2467
        %2650 = vmatmul.mubr.bf16.gmra.mrb[0].mxu0 %v2466
        %v2651 = vpop.f32.mrb[0].mxu0
        %v2652 = vadd.f32 0.0, %v2651
        %v2653 = vpop.f32.mrb[0].mxu0
        %v2654 = vpop.f32.mrb[0].mxu0
        %v2655 = vadd.f32 0.0, %v2654
        %v2656 = vpop.f32.mrb[0].mxu0
        %2657 = vmatprep.mubr.bf16.mxu0 %v2469
        %2658 = vmatmul.mubr.bf16.gmra.mrb[0].mxu0 %v2468
        %v2659 = vpop.f32.mrb[0].mxu0
        %v2660 = vadd.f32 0.0, %v2659
        %v2661 = vpop.f32.mrb[0].mxu0
        %v2662 = vpop.f32.mrb[0].mxu0
        %v2663 = vadd.f32 0.0, %v2662
        %v2664 = vpop.f32.mrb[0].mxu0
        %2665 = vmatprep.mubr.bf16.mxu0 %v2471
        %2666 = vmatmul.mubr.bf16.gmra.mrb[0].mxu0 %v2470
        %v2667 = vpop.f32.mrb[0].mxu0
        %v2668 = vadd.f32 0.0, %v2667
        %v2669 = vpop.f32.mrb[0].mxu0
        %v2670 = vpop.f32.mrb[0].mxu0
        %v2671 = vadd.f32 0.0, %v2670
        %v2672 = vpop.f32.mrb[0].mxu0
        %2673 = vdwg.mxu0
        %v2674 = vadd.f32 %v2432, %v2636
        %v2675 = vadd.f32 %v2433, %v2639
        %v2676 = vadd.f32 %v2434, %v2644
        %v2677 = vadd.f32 %v2435, %v2647
        %v2678 = vadd.f32 %v2436, %v2652
        %v2679 = vadd.f32 %v2437, %v2655
        %v2680 = vadd.f32 %v2438, %v2660
        %v2681 = vadd.f32 %v2439, %v2663
        %v2682 = vadd.f32 %v2440, %v2668
        %v2683 = vadd.f32 %v2441, %v2671
        %v2684 = vld [vmem:[#allocation2 + $0x1b] sm:$0xff]
        %v2685 = vld [vmem:[#allocation2 + $0x23] sm:$0xff]
        %v2686 = vld [vmem:[#allocation2 + $0x2b] sm:$0xff]
        %v2687 = vld [vmem:[#allocation2 + $0x33] sm:$0xff]
        %v2688 = vld [vmem:[#allocation2 + $0x3b] sm:$0xff]
        %v2689 = vld [vmem:[#allocation2 + $0x43] sm:$0xff]
        %v2690 = vld [vmem:[#allocation2 + $0x4b] sm:$0xff]
        %v2691 = vld [vmem:[#allocation2 + $0x53] sm:$0xff]
        %v2692 = vld [vmem:[#allocation2 + $0x5b] sm:$0xff]
        %v2693 = vld [vmem:[#allocation2 + $0x63] sm:$0xff]
        %v2694 = vpack.c.bf16 %v2685, %v2684
        %v2695 = vpack.c.bf16 %v2687, %v2686
        %v2696 = vpack.c.bf16 %v2689, %v2688
        %v2697 = vpack.c.bf16 %v2691, %v2690
        %v2698 = vpack.c.bf16 %v2693, %v2692
        %s2699 = scalar_lea.vmem [#allocation8], 512
        %v2700 = vld [vmem:[%s2699] sm:$0xf]
        %v2701 = vld [vmem:[%s2699 + $0x4] sm:$0xf]
        %v2702 = vld [vmem:[%s2699 + $0x8] sm:$0xf]
        %v2703 = vld [vmem:[%s2699 + $0xc] sm:$0xf]
        %v2704 = vld [vmem:[%s2699 + $0x10] sm:$0xf]
        %v2705 = vld [vmem:[%s2699 + $0x14] sm:$0xf]
        %v2706 = vld [vmem:[%s2699 + $0x18] sm:$0xf]
        %v2707 = vld [vmem:[%s2699 + $0x1c] sm:$0xf]
        %v2708 = vld [vmem:[%s2699 + $0x20] sm:$0xf]
        %v2709 = vld [vmem:[%s2699 + $0x24] sm:$0xf]
        %v2710 = vld [vmem:[%s2699 + $0x28] sm:$0xf]
        %v2711 = vld [vmem:[%s2699 + $0x2c] sm:$0xf]
        %v2712 = vld [vmem:[%s2699 + $0x30] sm:$0xf]
        %v2713 = vld [vmem:[%s2699 + $0x34] sm:$0xf]
        %v2714 = vld [vmem:[%s2699 + $0x38] sm:$0xf]
        %v2715 = vld [vmem:[%s2699 + $0x3c] sm:$0xf]
        %v2732 = vunpack.c.l.b16 %v2700
        %v2733 = vunpack.c.l.b16 %v2701
        %v2734 = vunpack.c.l.b16 %v2702
        %v2735 = vunpack.c.l.b16 %v2703
        %v2736 = vunpack.c.l.b16 %v2704
        %v2737 = vunpack.c.l.b16 %v2705
        %v2738 = vunpack.c.l.b16 %v2706
        %v2739 = vunpack.c.l.b16 %v2707
        %v2740 = vunpack.c.l.b16 %v2708
        %v2741 = vunpack.c.l.b16 %v2709
        %v2742 = vunpack.c.l.b16 %v2710
        %v2743 = vunpack.c.l.b16 %v2711
        %v2744 = vunpack.c.l.b16 %v2712
        %v2745 = vunpack.c.l.b16 %v2713
        %v2746 = vunpack.c.l.b16 %v2714
        %v2747 = vunpack.c.l.b16 %v2715
        %v2748 = vpack.c.b16 %v2733, %v2732
        %v2749 = vpack.c.b16 %v2735, %v2734
        %v2750 = vpack.c.b16 %v2737, %v2736
        %v2751 = vpack.c.b16 %v2739, %v2738
        %v2752 = vpack.c.b16 %v2741, %v2740
        %v2753 = vpack.c.b16 %v2743, %v2742
        %v2754 = vpack.c.b16 %v2745, %v2744
        %v2755 = vpack.c.b16 %v2747, %v2746
        %2764 = vmatprep.subr.bf16.mxu0 0
        %2765 = vmatpush1.bf16.msra.mxu0 %v2748
        %2766 = vmatprep.subr.bf16.mxu0 0
        %2767 = vmatpush1.bf16.msra.mxu0 %v2749
        %2768 = vmatprep.subr.bf16.mxu0 0
        %2769 = vmatpush1.bf16.msra.mxu0 %v2750
        %2770 = vmatprep.subr.bf16.mxu0 0
        %2771 = vmatpush1.bf16.msra.mxu0 %v2751
        %2772 = vmatprep.subr.bf16.mxu0 0
        %2773 = vmatpush1.bf16.msra.mxu0 %v2752
        %2774 = vmatprep.subr.bf16.mxu0 0
        %2775 = vmatpush1.bf16.msra.mxu0 %v2753
        %2776 = vmatprep.subr.bf16.mxu0 0
        %2777 = vmatpush1.bf16.msra.mxu0 %v2754
        %2778 = vmatprep.subr.bf16.mxu0 0
        %2779 = vmatpush1.bf16.msra.mxu0 %v2755
        %2780 = vmatprep.subr.bf16.mxu0 0
        %2781 = vmatpush1.bf16.msra.mxu0 0
        %2782 = vmatprep.subr.bf16.mxu0 0
        %2783 = vmatpush1.bf16.msra.mxu0 0
        %2784 = vmatprep.subr.bf16.mxu0 0
        %2785 = vmatpush1.bf16.msra.mxu0 0
        %2786 = vmatprep.subr.bf16.mxu0 0
        %2787 = vmatpush1.bf16.msra.mxu0 0
        %2788 = vmatprep.subr.bf16.mxu0 0
        %2789 = vmatpush1.bf16.msra.mxu0 0
        %2790 = vmatprep.subr.bf16.mxu0 0
        %2791 = vmatpush1.bf16.msra.mxu0 0
        %2792 = vmatprep.subr.bf16.mxu0 0
        %2793 = vmatpush1.bf16.msra.mxu0 0
        %2794 = vmatprep.subr.bf16.mxu0 0
        %2795 = vmatpush1.bf16.msra.mxu0 0
        %2796 = vmatprep.mubr.bf16.mxu0 0
        %2797 = vmatmul.mubr.bf16.gmra.mrb[0].mxu0 %v2694
        %v2798 = vpop.f32.mrb[0].mxu0
        %v2799 = vadd.f32 0.0, %v2798
        %v2800 = vpop.f32.mrb[0].mxu0
        %v2801 = vpop.f32.mrb[0].mxu0
        %v2802 = vadd.f32 0.0, %v2801
        %v2803 = vpop.f32.mrb[0].mxu0
        %2804 = vmatprep.mubr.bf16.mxu0 0
        %2805 = vmatmul.mubr.bf16.gmra.mrb[0].mxu0 %v2695
        %v2806 = vpop.f32.mrb[0].mxu0
        %v2807 = vadd.f32 0.0, %v2806
        %v2808 = vpop.f32.mrb[0].mxu0
        %v2809 = vpop.f32.mrb[0].mxu0
        %v2810 = vadd.f32 0.0, %v2809
        %v2811 = vpop.f32.mrb[0].mxu0
        %2812 = vmatprep.mubr.bf16.mxu0 0
        %2813 = vmatmul.mubr.bf16.gmra.mrb[0].mxu0 %v2696
        %v2814 = vpop.f32.mrb[0].mxu0
        %v2815 = vadd.f32 0.0, %v2814
        %v2816 = vpop.f32.mrb[0].mxu0
        %v2817 = vpop.f32.mrb[0].mxu0
        %v2818 = vadd.f32 0.0, %v2817
        %v2819 = vpop.f32.mrb[0].mxu0
        %2820 = vmatprep.mubr.bf16.mxu0 0
        %2821 = vmatmul.mubr.bf16.gmra.mrb[0].mxu0 %v2697
        %v2822 = vpop.f32.mrb[0].mxu0
        %v2823 = vadd.f32 0.0, %v2822
        %v2824 = vpop.f32.mrb[0].mxu0
        %v2825 = vpop.f32.mrb[0].mxu0
        %v2826 = vadd.f32 0.0, %v2825
        %v2827 = vpop.f32.mrb[0].mxu0
        %2828 = vmatprep.mubr.bf16.mxu0 0
        %2829 = vmatmul.mubr.bf16.gmra.mrb[0].mxu0 %v2698
        %v2830 = vpop.f32.mrb[0].mxu0
        %v2831 = vadd.f32 0.0, %v2830
        %v2832 = vpop.f32.mrb[0].mxu0
        %v2833 = vpop.f32.mrb[0].mxu0
        %v2834 = vadd.f32 0.0, %v2833
        %v2835 = vpop.f32.mrb[0].mxu0
        %2836 = vdwg.mxu0
        %v2837 = vadd.f32 %v2674, %v2799
        %v2838 = vadd.f32 %v2675, %v2802
        %v2839 = vadd.f32 %v2676, %v2807
        %v2840 = vadd.f32 %v2677, %v2810
        %v2841 = vadd.f32 %v2678, %v2815
        %v2842 = vadd.f32 %v2679, %v2818
        %v2843 = vadd.f32 %v2680, %v2823
        %v2844 = vadd.f32 %v2681, %v2826
        %v2845 = vadd.f32 %v2682, %v2831
        %v2846 = vadd.f32 %v2683, %v2834
        %v2847 = vld [vmem:[%s4] sm:$0x1]
        %v2849 = vlaneseq
        %v2850 = vshrl.u32 %v2849, 7
        %v2851 = vsub.s32 0, %v2850
        %v2852 = vrot.slane %v2847, %v2851
        %v2854 = vadd.f32 %v2837, %v2852
        %v2855 = vadd.f32 %v2838, %v2852
        %v2856 = vadd.f32 %v2839, %v2852
        %v2857 = vadd.f32 %v2840, %v2852
        %v2858 = vadd.f32 %v2841, %v2852
        %v2859 = vadd.f32 %v2842, %v2852
        %v2860 = vadd.f32 %v2843, %v2852
        %v2861 = vadd.f32 %v2844, %v2852
        %v2862 = vadd.f32 %v2845, %v2852
        %v2863 = vadd.f32 %v2846, %v2852
        %v2864 = vld [vmem:[%s237 + $0xb] sm:$0xff]
        %v2865 = vld [vmem:[%s237 + $0x13] sm:$0xff]
        %v2866 = vld [vmem:[%s237 + $0x1b] sm:$0xff]
        %v2867 = vld [vmem:[%s237 + $0x23] sm:$0xff]
        %v2868 = vld [vmem:[%s237 + $0x2b] sm:$0xff]
        %v2869 = vld [vmem:[%s237 + $0x33] sm:$0xff]
        %v2870 = vld [vmem:[%s237 + $0x3b] sm:$0xff]
        %v2871 = vld [vmem:[%s237 + $0x43] sm:$0xff]
        %v2872 = vld [vmem:[%s237 + $0x4b] sm:$0xff]
        %v2873 = vld [vmem:[%s237 + $0x53] sm:$0xff]
        %v2874 = vadd.f32 %v2854, %v2864
        %v2875 = vadd.f32 %v2855, %v2865
        %v2876 = vadd.f32 %v2856, %v2866
        %v2877 = vadd.f32 %v2857, %v2867
        %v2878 = vadd.f32 %v2858, %v2868
        %v2879 = vadd.f32 %v2859, %v2869
        %v2880 = vadd.f32 %v2860, %v2870
        %v2881 = vadd.f32 %v2861, %v2871
        %v2882 = vadd.f32 %v2862, %v2872
        %v2883 = vadd.f32 %v2863, %v2873
        %v2884 = vmax.f32 %v2874, 0.0
        %v2885 = vmax.f32 %v2875, 0.0
        %v2886 = vmax.f32 %v2876, 0.0
        %v2887 = vmax.f32 %v2877, 0.0
        %v2888 = vmax.f32 %v2878, 0.0
        %v2889 = vmax.f32 %v2879, 0.0
        %v2890 = vmax.f32 %v2880, 0.0
        %v2891 = vmax.f32 %v2881, 0.0
        %v2892 = vmax.f32 %v2882, 0.0
        %v2893 = vmax.f32 %v2883, 0.0
        %2894 = vst [vmem:[%s271] sm:$0xff] %v2884
        %2895 = vst [vmem:[%s271 + $0x6] sm:$0xfc] %v2885
        %2896 = vst [vmem:[%s271 + $0xe] sm:$0x3] %v2886
        %2897 = vst [vmem:[%s271 + $0xc] sm:$0xf0] %v2886
        %2898 = vst [vmem:[%s271 + $0x14] sm:$0xf] %v2887
        %2899 = vst [vmem:[%s271 + $0x12] sm:$0xc0] %v2887
        %2900 = vst [vmem:[%s271 + $0x1a] sm:$0x3f] %v2888
        %2901 = vst [vmem:[%s271 + $0x20] sm:$0xff] %v2889
        %2902 = vst [vmem:[%s271 + $0x26] sm:$0xfc] %v2890
        %2903 = vst [vmem:[%s271 + $0x2e] sm:$0x3] %v2891
        %2904 = vst [vmem:[%s271 + $0x2c] sm:$0xf0] %v2891
        %2905 = vst [vmem:[%s271 + $0x34] sm:$0xf] %v2892
        %2906 = vst [vmem:[%s271 + $0x32] sm:$0xc0] %v2892
        %2907 = vst [vmem:[%s271 + $0x3a] sm:$0x3f] %v2893
        %s2908 = sand.u32 %s141, 1
        %s2909 = scalar_lea.sflag [#allocation5], %s2908
        %s2910 = sand.u32 %s141, 1
        %s2911 = smul.addr %s2910, 64
        %s2912 = scalar_lea.vmem [#allocation9], %s2911
        // Predicated region
        $region53: #{tpu_custom_call.1} parent=39 // pred_check
          %p2913 = pneg %p151
        $region54: #{tpu_custom_call.1} parent=39 // pred_check_branch
          %2915 = sbr.rel (%p2913) target = $region56
        $region55: #{tpu_custom_call.1} parent=39 // pred_region
          %s2917 = ssub.s32 1024, 1024
          %2918 = vsyncadd %s2909, %s2917
          %s2919 = smul.addr %s23, 8
          %s2920 = smul.addr %s2919, 128
          %s2921 = scalar_lea.hbm %s5, %s2920
          %s2922 = sshll.u32 %s2912, 4
          %s2923 = int_to_ptr.vmem [resolvable:$true] %s2922
          %2928 = dma.vmem_to_hbm [thread:$0]  %s2923, 1024, %s2921, %s2909, 128, 128, 8
        $region56: #{tpu_custom_call.1} parent=39 // pred_fallthru
          _
      $region40: #{tpu_custom_call.1} parent=5 // pred_fallthru
        _
      %p2929 = scmp.le.s32.totalorder 2, %s18
      // Predicated region
      $region57: #{tpu_custom_call.1} parent=5 // pred_check
        %p2930 = pneg %p2929
      $region58: #{tpu_custom_call.1} parent=5 // pred_check_branch
        %2932 = sbr.rel (%p2930) target = $region60
      $region59: #{tpu_custom_call.1} parent=5 // pred_region
        %s2933 = ssub.s32 %s18, 2
        // Predicated region
        $region61: #{tpu_custom_call.1} parent=59 // pred_check
          %p2934 = pneg %p157
        $region62: #{tpu_custom_call.1} parent=59 // pred_check_branch
          %2936 = sbr.rel (%p2934) target = $region64
        $region63: #{tpu_custom_call.1} parent=59 // pred_region
          %s2937 = sand.u32 %s142, 1
          %s2938 = scalar_lea.sflag [#allocation5], %s2937
          %s2939 = sand.u32 %s142, 1
          %s2940 = smul.addr %s2939, 64
          %s2941 = scalar_lea.vmem [#allocation9], %s2940
          %2942 = dma.done %s2938, 1024
        $region64: #{tpu_custom_call.1} parent=59 // pred_fallthru
          _
      $region60: #{tpu_custom_call.1} parent=5 // pred_fallthru
        _
    $region6: #{tpu_custom_call.1} parent=1 // loop_footer
      %s22 = sadd.s32 1, %s18
    $region7: #{tpu_custom_call.1} parent=1 // loop_footer_branch
      %17 = sbr.rel target = $region3
    $region8: #{tpu_custom_call.1} parent=1 // loop_exit
      _
    %2943 = vsyncpa [#allocation4], 1
    %s2944 = scalar_lea.sflag [#allocation4], 1
    %2945 = vsyncpa %s2944, 1
    %2946 = vsyncpa [#allocation7], 1
    %2947 = vsyncpa [#allocation5], 1
    %s2948 = scalar_lea.sflag [#allocation5], 1
    %2949 = vsyncpa %s2948, 1

</llo_original>
